<compile_context>
chip_gen: v6e
topology: v6e:2x2x1
jax: 0.10.0
libtpu: 0.0.40
codegen_flags: <defaults>
</compile_context>

<pallas_src>
import jax
import jax.numpy as jnp
from jax.experimental import pallas as pl
from jax.experimental.pallas import tpu as pltpu

EPS = 1e-5
LANES = 128
PADL = 8  # left column offset of the conv2 scratch interior -> aligned stores

# Matmul-input dtype.  float32 keeps exact parity with the f32 PyTorch module;
# switch to jnp.bfloat16 on v6e/v7x for ~2x MXU throughput and half the vld
# traffic (the accumulators and all BatchNorm math stay float32 either way).
MXU_DTYPE = jnp.float32

_PARAMS_2D = pltpu.CompilerParams(
    dimension_semantics=("parallel", "parallel"),
    vmem_limit_bytes=32 * 1024 * 1024)
_PARAMS_1D = pltpu.CompilerParams(
    dimension_semantics=("parallel",),
    vmem_limit_bytes=32 * 1024 * 1024)


def _conv1_stats_kernel(p_ref, w_ref, b_ref, act_ref, st_ref):
    """conv1 as a single im2col matmul + bias + BN partial stats.

    p_ref:   (1, 1, TH*W, 9*Cin)   im2col patches (built in the wrapper)
    w_ref:   (9*Cin, Cp)           conv1 weights, lane-padded
    b_ref:   (1, Cp)               conv1 bias
    act_ref: (1, 1, TH*W, Cp)      pre-BN conv1 activation (lane-dense)
    st_ref:  (1, 1, 2, Cp)         per-tile [sum, sum_of_squares]
    """
    acc = jnp.dot(p_ref[0, 0], w_ref[...],
                  preferred_element_type=jnp.float32)          # (TH*W, Cp)
    acc = acc + b_ref[...]
    act_ref[0, 0] = acc.astype(act_ref.dtype)
    st_ref[0, 0] = jnp.concatenate(
        [jnp.sum(acc, axis=0, keepdims=True),
         jnp.sum(acc * acc, axis=0, keepdims=True)], axis=0)


def _bn_relu_conv2_stats_kernel(y_ref, s_ref, t_ref, w_ref, b_ref,
                                act_ref, st_ref, pad_ref):
    """Fused BN1(scale/shift)+ReLU -> 3x3 conv2 -> bias -> BN2 partial stats.

    y_ref:   (1, H, W, Cp)  pre-BN conv1 activation
    s_ref/t_ref: (1, Cp)    folded BN1 scale / shift
    w_ref:   (3, 3, Cp, Cp) conv2 weights
    b_ref:   (1, Cp)        conv2 bias
    act_ref: (1, H, W, Cp)  pre-BN conv2 activation
    st_ref:  (1, 2, Cp)     per-image [sum, sum_of_squares]
    pad_ref: (H+2, W+PADL+8, Cp) VMEM scratch (interior at rows 1.., cols PADL..)
    """
    _, h, w, cp = y_ref.shape

    # Zero only the 1-px halo ring the taps read (NOT the whole buffer); done
    # every step so it is megacore-safe.
    zrow = jnp.zeros((1, w + 2, cp), pad_ref.dtype)
    zcol = jnp.zeros((h + 2, 1, cp), pad_ref.dtype)
    pad_ref[0:1, PADL - 1:PADL + w + 1, :] = zrow
    pad_ref[h + 1:h + 2, PADL - 1:PADL + w + 1, :] = zrow
    pad_ref[:, PADL - 1:PADL, :] = zcol
    pad_ref[:, PADL + w:PADL + w + 1, :] = zcol

    # BN1 + ReLU (f32 math), stored at a sublane-aligned column offset so the
    # interior store is an unmasked vst.
    y = jnp.maximum(y_ref[0] * s_ref[...] + t_ref[...], 0.0)
    pad_ref[1:h + 1, PADL:PADL + w, :] = y.astype(pad_ref.dtype)

    # 3x3 conv as 9 channel-contraction matmuls, K = Cp = 128 per tap.
    acc = jnp.zeros((h * w, cp), jnp.float32)
    for ky in range(3):
        for kx in range(3):
            patch = pad_ref[ky:ky + h, PADL - 1 + kx:PADL - 1 + kx + w, :]
            acc = acc + jnp.dot(patch.reshape(h * w, cp), w_ref[ky, kx],
                                preferred_element_type=jnp.float32)
    acc = acc + b_ref[...]
    act_ref[0] = acc.reshape(h, w, cp).astype(act_ref.dtype)
    st_ref[0] = jnp.concatenate(
        [jnp.sum(acc, axis=0, keepdims=True),
         jnp.sum(acc * acc, axis=0, keepdims=True)], axis=0)


def _bn_relu_kernel(x_ref, s_ref, t_ref, o_ref):
    """Elementwise folded BN + ReLU (lane-dense)."""
    o_ref[0] = jnp.maximum(x_ref[0] * s_ref[...] + t_ref[...],
                           0.0).astype(o_ref.dtype)


def _fold_bn(total, count, gamma_p, beta_p):
    """(sum, sumsq) -> folded BN scale/shift (training-mode, biased variance)."""
    mean = total[0] / count
    var = jnp.maximum(total[1] / count - mean * mean, 0.0)
    scale = gamma_p / jnp.sqrt(var + EPS)
    shift = beta_p - mean * scale
    return scale.reshape(1, -1), shift.reshape(1, -1)


@jax.jit
def double_conv(x_nchw, w1, b1, g1, be1, w2, b2, g2, be2):
    """DoubleConv forward.

    x_nchw: (N, Cin, H, W) f32.  w1: (3,3,Cin,Cout) HWIO, w2: (3,3,Cout,Cout),
    biases / BN gammas / betas: (Cout,).  Returns (N, Cout, H, W) f32.
    """
    N, Cin, H, W = x_nchw.shape
    Cout = w1.shape[-1]
    Cp = ((Cout + LANES - 1) // LANES) * LANES     # lane-padded channel count
    K1 = 9 * Cin
    TH = 8 if H % 8 == 0 else H                    # row-tile height
    T = H // TH
    THW = TH * W
    M = N * H * W                                  # BN reduction size

    # ---- layout plumbing (XLA): NHWC, lane-padded params, conv1 im2col ----
    x = jnp.transpose(x_nchw, (0, 2, 3, 1))                       # (N,H,W,Cin)
    xp = jnp.pad(x, ((0, 0), (1, 1), (1, 1), (0, 0)))
    # im2col for conv1 -> single K=9*Cin matmul in-kernel (cheap: Cin is small;
    # a large-Cin conv1 should use the conv2-style in-kernel tap path instead).
    patches = jnp.concatenate(
        [xp[:, ky:ky + H, kx:kx + W, :] for ky in range(3) for kx in range(3)],
        axis=-1)                                                  # (N,H,W,9Cin)
    patches = patches.reshape(N, T, THW, K1).astype(MXU_DTYPE)

    w1m = jnp.pad(w1.reshape(K1, Cout),
                  ((0, 0), (0, Cp - Cout))).astype(MXU_DTYPE)
    w2p = jnp.pad(w2, ((0, 0), (0, 0), (0, Cp - Cout),
                       (0, Cp - Cout))).astype(MXU_DTYPE)

    def _vec(v):
        return jnp.pad(v, (0, Cp - Cout)).astype(jnp.float32)

    b1r = _vec(b1).reshape(1, Cp)
    b2r = _vec(b2).reshape(1, Cp)
    g1p, be1p = _vec(g1), _vec(be1)
    g2p, be2p = _vec(g2), _vec(be2)

    # ---- kernel A: conv1 (one K=9*Cin matmul) + bias + BN1 partial stats ----
    act1, st1 = pl.pallas_call(
        _conv1_stats_kernel,
        grid=(N, T),
        in_specs=[
            pl.BlockSpec((1, 1, THW, K1), lambda n, t: (n, t, 0, 0)),
            pl.BlockSpec((K1, Cp), lambda n, t: (0, 0)),
            pl.BlockSpec((1, Cp), lambda n, t: (0, 0)),
        ],
        out_specs=(
            pl.BlockSpec((1, 1, THW, Cp), lambda n, t: (n, t, 0, 0)),
            pl.BlockSpec((1, 1, 2, Cp), lambda n, t: (n, t, 0, 0)),
        ),
        out_shape=(
            jax.ShapeDtypeStruct((N, T, THW, Cp), jnp.float32),
            jax.ShapeDtypeStruct((N, T, 2, Cp), jnp.float32),
        ),
        compiler_params=_PARAMS_2D,
    )(patches, w1m, b1r)

    scale1, shift1 = _fold_bn(jnp.sum(st1, axis=(0, 1)), M, g1p, be1p)
    act1 = act1.reshape(N, H, W, Cp)               # free (contiguous) reshape

    # ---- kernel B: BN1+ReLU fused with conv2 (9 K=128 taps) + BN2 stats ----
    # TODO(synk): for production H (e.g. 256) also tile rows here, fetching the
    # 1-row halo via a manual make_async_copy window (v7x 64 MiB VMEM budget).
    act2, st2 = pl.pallas_call(
        _bn_relu_conv2_stats_kernel,
        grid=(N,),
        in_specs=[
            pl.BlockSpec((1, H, W, Cp), lambda n: (n, 0, 0, 0)),
            pl.BlockSpec((1, Cp), lambda n: (0, 0)),
            pl.BlockSpec((1, Cp), lambda n: (0, 0)),
            pl.BlockSpec((3, 3, Cp, Cp), lambda n: (0, 0, 0, 0)),
            pl.BlockSpec((1, Cp), lambda n: (0, 0)),
        ],
        out_specs=(
            pl.BlockSpec((1, H, W, Cp), lambda n: (n, 0, 0, 0)),
            pl.BlockSpec((1, 2, Cp), lambda n: (n, 0, 0)),
        ),
        out_shape=(
            jax.ShapeDtypeStruct((N, H, W, Cp), jnp.float32),
            jax.ShapeDtypeStruct((N, 2, Cp), jnp.float32),
        ),
        scratch_shapes=[pltpu.VMEM((H + 2, W + PADL + 8, Cp), MXU_DTYPE)],
        compiler_params=_PARAMS_1D,
    )(act1, scale1, shift1, w2p, b2r)

    scale2, shift2 = _fold_bn(jnp.sum(st2, axis=0), M, g2p, be2p)

    # ---- kernel C: BN2 + ReLU (lane-dense elementwise) ----
    out_p = pl.pallas_call(
        _bn_relu_kernel,
        grid=(N, T),
        in_specs=[
            pl.BlockSpec((1, TH, W, Cp), lambda n, t: (n, t, 0, 0)),
            pl.BlockSpec((1, Cp), lambda n, t: (0, 0)),
            pl.BlockSpec((1, Cp), lambda n, t: (0, 0)),
        ],
        out_specs=pl.BlockSpec((1, TH, W, Cp), lambda n, t: (n, t, 0, 0)),
        out_shape=jax.ShapeDtypeStruct((N, H, W, Cp), jnp.float32),
        compiler_params=_PARAMS_2D,
    )(act2, scale2, shift2)

    out = out_p[..., :Cout]
    return jnp.transpose(out, (0, 3, 1, 2))


def _reference(x_nchw, w1, b1, g1, be1, w2, b2, g2, be2):
    """Pure-JAX reference mirroring the PyTorch module (training-mode BN)."""
    x = jnp.transpose(x_nchw, (0, 2, 3, 1))

    def conv(x, w, b):
        out = jax.lax.conv_general_dilated(
            x, w, window_strides=(1, 1), padding="SAME",
            dimension_numbers=("NHWC", "HWIO", "NHWC"))
        return out + b.reshape(1, 1, 1, -1)

    def bn_relu(x, g, be):
        mean = x.mean(axis=(0, 1, 2), keepdims=True)
        var = ((x - mean) ** 2).mean(axis=(0, 1, 2), keepdims=True)
        y = (x - mean) / jnp.sqrt(var + EPS)
        y = y * g.reshape(1, 1, 1, -1) + be.reshape(1, 1, 1, -1)
        return jnp.maximum(y, 0.0)

    y = bn_relu(conv(x, w1, b1), g1, be1)
    y = bn_relu(conv(y, w2, b2), g2, be2)
    return jnp.transpose(y, (0, 3, 1, 2))


if __name__ == "__main__":
    N, Cin, Cout, H, W = 2, 4, 8, 16, 16

    key = jax.random.PRNGKey(0)
    ks = jax.random.split(key, 9)
    w1 = jax.random.normal(ks[0], (3, 3, Cin, Cout), jnp.float32) * 0.2
    b1 = jax.random.normal(ks[1], (Cout,), jnp.float32) * 0.1
    g1 = 1.0 + jax.random.normal(ks[2], (Cout,), jnp.float32) * 0.05
    be1 = jax.random.normal(ks[3], (Cout,), jnp.float32) * 0.1
    w2 = jax.random.normal(ks[4], (3, 3, Cout, Cout), jnp.float32) * 0.2
    b2 = jax.random.normal(ks[5], (Cout,), jnp.float32) * 0.1
    g2 = 1.0 + jax.random.normal(ks[6], (Cout,), jnp.float32) * 0.05
    be2 = jax.random.normal(ks[7], (Cout,), jnp.float32) * 0.1
    x = jax.random.normal(ks[8], (N, Cin, H, W), jnp.float32)

    out = jax.block_until_ready(
        double_conv(x, w1, b1, g1, be1, w2, b2, g2, be2))
    ref = _reference(x, w1, b1, g1, be1, w2, b2, g2, be2)

    assert out.shape == (N, Cout, H, W)
    assert jnp.allclose(out, ref, atol=2e-4, rtol=2e-4), (
        float(jnp.max(jnp.abs(out - ref))))

    print("KERNEL_OK")
</pallas_src>

<mosaic_0001>
module attributes {stable_mosaic.version = 11 : i64} {
  func.func @_conv1_stats_kernel(%arg0: i32, %arg1: i32, %arg2: memref<1x1x128x36xf32, #tpu.memory_space<vmem>>, %arg3: memref<36x128xf32, #tpu.memory_space<vmem>>, %arg4: memref<1x128xf32, #tpu.memory_space<vmem>>, %arg5: memref<1x1x128x128xf32, #tpu.memory_space<vmem>>, %arg6: memref<1x1x2x128xf32, #tpu.memory_space<vmem>>) attributes {dimension_semantics = [#tpu.dimension_semantics<parallel>, #tpu.dimension_semantics<parallel>], iteration_bounds = array<i64: 2, 2>, scalar_prefetch = 0 : i64, scratch_operands = 0 : i64, tpu.core_type = #tpu.core_type<tc>, window_params = [{transform_indices = @transform_0, window_bounds = array<i64: 1, 1, 128, 36>}, {pipeline_mode = #tpu.pipeline_mode<synchronous>, transform_indices = @transform_1, window_bounds = array<i64: 36, 128>}, {pipeline_mode = #tpu.pipeline_mode<synchronous>, transform_indices = @transform_2, window_bounds = array<i64: 1, 128>}, {transform_indices = @transform_3, window_bounds = array<i64: 1, 1, 128, 128>}, {transform_indices = @transform_4, window_bounds = array<i64: 1, 1, 2, 128>}]} {
    %c0 = arith.constant 0 : index
    %c0_0 = arith.constant 0 : index
    %c0_1 = arith.constant 0 : index
    %c0_2 = arith.constant 0 : index
    %0 = vector.load %arg2[%c0, %c0_0, %c0_1, %c0_2] : memref<1x1x128x36xf32, #tpu.memory_space<vmem>>, vector<1x1x128x36xf32>
    %1 = vector.shape_cast %0 : vector<1x1x128x36xf32> to vector<128x36xf32>
    %c0_3 = arith.constant 0 : index
    %c0_4 = arith.constant 0 : index
    %2 = vector.load %arg3[%c0_3, %c0_4] : memref<36x128xf32, #tpu.memory_space<vmem>>, vector<36x128xf32>
    %cst = arith.constant dense<0.000000e+00> : vector<128x128xf32>
    %3 = tpu.matmul %1, %2, %cst {dimension_numbers = #tpu.dot_dimension_numbers<[1], [0], [0], [1], [0, 0, 1, 1], [], []>} : vector<128x36xf32>, vector<36x128xf32>, vector<128x128xf32> -> vector<128x128xf32>
    %c0_5 = arith.constant 0 : index
    %c0_6 = arith.constant 0 : index
    %4 = vector.load %arg4[%c0_5, %c0_6] : memref<1x128xf32, #tpu.memory_space<vmem>>, vector<1x128xf32>
    %5 = vector.broadcast %4 : vector<1x128xf32> to vector<128x128xf32>
    %6 = arith.addf %3, %5 : vector<128x128xf32>
    %c0_7 = arith.constant 0 : index
    %c0_8 = arith.constant 0 : index
    %c0_9 = arith.constant 0 : index
    %c0_10 = arith.constant 0 : index
    %7 = vector.load %arg5[%c0_7, %c0_8, %c0_9, %c0_10] : memref<1x1x128x128xf32, #tpu.memory_space<vmem>>, vector<1x1x128x128xf32>
    %8 = vector.shape_cast %7 : vector<1x1x128x128xf32> to vector<128x128xf32>
    %9 = vector.shape_cast %6 : vector<128x128xf32> to vector<1x1x128x128xf32>
    tpu.vector_store %arg5[%c0_7, %c0_8, %c0_9, %c0_10], %9 {strides = array<i32>} : memref<1x1x128x128xf32, #tpu.memory_space<vmem>>, vector<1x1x128x128xf32>,
    %cst_11 = arith.constant dense<0.000000e+00> : vector<128xf32>
    %10 = vector.multi_reduction <add>, %6, %cst_11 [0] : vector<128x128xf32> to vector<128xf32>
    %11 = vector.shape_cast %10 : vector<128xf32> to vector<1x128xf32>
    %12 = arith.mulf %6, %6 : vector<128x128xf32>
    %cst_12 = arith.constant dense<0.000000e+00> : vector<128xf32>
    %13 = vector.multi_reduction <add>, %12, %cst_12 [0] : vector<128x128xf32> to vector<128xf32>
    %14 = vector.shape_cast %13 : vector<128xf32> to vector<1x128xf32>
    %15 = tpu.concatenate %11, %14 in 0 : vector<1x128xf32>, vector<1x128xf32> -> vector<2x128xf32>
    %c0_13 = arith.constant 0 : index
    %c0_14 = arith.constant 0 : index
    %c0_15 = arith.constant 0 : index
    %c0_16 = arith.constant 0 : index
    %16 = vector.load %arg6[%c0_13, %c0_14, %c0_15, %c0_16] : memref<1x1x2x128xf32, #tpu.memory_space<vmem>>, vector<1x1x2x128xf32>
    %17 = vector.shape_cast %16 : vector<1x1x2x128xf32> to vector<2x128xf32>
    %18 = vector.shape_cast %15 : vector<2x128xf32> to vector<1x1x2x128xf32>
    tpu.vector_store %arg6[%c0_13, %c0_14, %c0_15, %c0_16], %18 {strides = array<i32>} : memref<1x1x2x128xf32, #tpu.memory_space<vmem>>, vector<1x1x2x128xf32>,
    return
  }
  func.func @transform_0(%arg0: i32, %arg1: i32) -> (i32, i32, i32, i32) {
    %c0_i32 = arith.constant 0 : i32
    %c0_i32_0 = arith.constant 0 : i32
    %c0_i32_1 = arith.constant 0 : i32
    return %arg0, %arg1, %c0_i32, %c0_i32_0 : i32, i32, i32, i32
  }
  func.func @transform_1(%arg0: i32, %arg1: i32) -> (i32, i32) {
    %c0_i32 = arith.constant 0 : i32
    %c0_i32_0 = arith.constant 0 : i32
    %c0_i32_1 = arith.constant 0 : i32
    return %c0_i32, %c0_i32_0 : i32, i32
  }
  func.func @transform_2(%arg0: i32, %arg1: i32) -> (i32, i32) {
    %c0_i32 = arith.constant 0 : i32
    %c0_i32_0 = arith.constant 0 : i32
    %c0_i32_1 = arith.constant 0 : i32
    return %c0_i32, %c0_i32_0 : i32, i32
  }
  func.func @transform_3(%arg0: i32, %arg1: i32) -> (i32, i32, i32, i32) {
    %c0_i32 = arith.constant 0 : i32
    %c0_i32_0 = arith.constant 0 : i32
    %c0_i32_1 = arith.constant 0 : i32
    return %arg0, %arg1, %c0_i32, %c0_i32_0 : i32, i32, i32, i32
  }
  func.func @transform_4(%arg0: i32, %arg1: i32) -> (i32, i32, i32, i32) {
    %c0_i32 = arith.constant 0 : i32
    %c0_i32_0 = arith.constant 0 : i32
    %c0_i32_1 = arith.constant 0 : i32
    return %arg0, %arg1, %c0_i32, %c0_i32_0 : i32, i32, i32, i32
  }
}

module attributes {stable_mosaic.version = 11 : i64} {
  func.func @_bn_relu_conv2_stats_kernel(%arg0: i32, %arg1: memref<1x16x16x128xf32, #tpu.memory_space<vmem>>, %arg2: memref<1x128xf32, #tpu.memory_space<vmem>>, %arg3: memref<1x128xf32, #tpu.memory_space<vmem>>, %arg4: memref<3x3x128x128xf32, #tpu.memory_space<vmem>>, %arg5: memref<1x128xf32, #tpu.memory_space<vmem>>, %arg6: memref<1x16x16x128xf32, #tpu.memory_space<vmem>>, %arg7: memref<1x2x128xf32, #tpu.memory_space<vmem>>, %arg8: memref<18x32x128xf32, #tpu.memory_space<vmem>>) attributes {dimension_semantics = [#tpu.dimension_semantics<parallel>], iteration_bounds = array<i64: 2>, scalar_prefetch = 0 : i64, scratch_operands = 1 : i64, tpu.core_type = #tpu.core_type<tc>, window_params = [{transform_indices = @transform_0, window_bounds = array<i64: 1, 16, 16, 128>}, {pipeline_mode = #tpu.pipeline_mode<synchronous>, transform_indices = @transform_1, window_bounds = array<i64: 1, 128>}, {pipeline_mode = #tpu.pipeline_mode<synchronous>, transform_indices = @transform_2, window_bounds = array<i64: 1, 128>}, {pipeline_mode = #tpu.pipeline_mode<synchronous>, transform_indices = @transform_3, window_bounds = array<i64: 3, 3, 128, 128>}, {pipeline_mode = #tpu.pipeline_mode<synchronous>, transform_indices = @transform_4, window_bounds = array<i64: 1, 128>}, {transform_indices = @transform_5, window_bounds = array<i64: 1, 16, 16, 128>}, {transform_indices = @transform_6, window_bounds = array<i64: 1, 2, 128>}]} {
    %cst = arith.constant 0.000000e+00 : f32
    %0 = vector.broadcast %cst : f32 to vector<1x18x128xf32>
    %cst_0 = arith.constant 0.000000e+00 : f32
    %1 = vector.broadcast %cst_0 : f32 to vector<18x1x128xf32>
    %c0 = arith.constant 0 : index
    %c7 = arith.constant 7 : index
    %c0_1 = arith.constant 0 : index
    %2 = vector.load %arg8[%c0, %c7, %c0_1] : memref<18x32x128xf32, #tpu.memory_space<vmem>>, vector<1x18x128xf32>
    tpu.vector_store %arg8[%c0, %c7, %c0_1], %0 {strides = array<i32>} : memref<18x32x128xf32, #tpu.memory_space<vmem>>, vector<1x18x128xf32>,
    %c17 = arith.constant 17 : index
    %c7_2 = arith.constant 7 : index
    %c0_3 = arith.constant 0 : index
    %3 = vector.load %arg8[%c17, %c7_2, %c0_3] : memref<18x32x128xf32, #tpu.memory_space<vmem>>, vector<1x18x128xf32>
    tpu.vector_store %arg8[%c17, %c7_2, %c0_3], %0 {strides = array<i32>} : memref<18x32x128xf32, #tpu.memory_space<vmem>>, vector<1x18x128xf32>,
    %c0_4 = arith.constant 0 : index
    %c7_5 = arith.constant 7 : index
    %c0_6 = arith.constant 0 : index
    %4 = vector.load %arg8[%c0_4, %c7_5, %c0_6] : memref<18x32x128xf32, #tpu.memory_space<vmem>>, vector<18x1x128xf32>
    tpu.vector_store %arg8[%c0_4, %c7_5, %c0_6], %1 {strides = array<i32>} : memref<18x32x128xf32, #tpu.memory_space<vmem>>, vector<18x1x128xf32>,
    %c0_7 = arith.constant 0 : index
    %c24 = arith.constant 24 : index
    %c0_8 = arith.constant 0 : index
    %5 = vector.load %arg8[%c0_7, %c24, %c0_8] : memref<18x32x128xf32, #tpu.memory_space<vmem>>, vector<18x1x128xf32>
    tpu.vector_store %arg8[%c0_7, %c24, %c0_8], %1 {strides = array<i32>} : memref<18x32x128xf32, #tpu.memory_space<vmem>>, vector<18x1x128xf32>,
    %c0_9 = arith.constant 0 : index
    %c0_10 = arith.constant 0 : index
    %c0_11 = arith.constant 0 : index
    %c0_12 = arith.constant 0 : index
    %6 = vector.load %arg1[%c0_9, %c0_10, %c0_11, %c0_12] : memref<1x16x16x128xf32, #tpu.memory_space<vmem>>, vector<1x16x16x128xf32>
    %7 = vector.shape_cast %6 : vector<1x16x16x128xf32> to vector<16x16x128xf32>
    %c0_13 = arith.constant 0 : index
    %c0_14 = arith.constant 0 : index
    %8 = vector.load %arg2[%c0_13, %c0_14] : memref<1x128xf32, #tpu.memory_space<vmem>>, vector<1x128xf32>
    %9 = vector.shape_cast %8 : vector<1x128xf32> to vector<1x1x128xf32>
    %10 = vector.broadcast %9 : vector<1x1x128xf32> to vector<16x16x128xf32>
    %11 = arith.mulf %7, %10 : vector<16x16x128xf32>
    %c0_15 = arith.constant 0 : index
    %c0_16 = arith.constant 0 : index
    %12 = vector.load %arg3[%c0_15, %c0_16] : memref<1x128xf32, #tpu.memory_space<vmem>>, vector<1x128xf32>
    %13 = vector.shape_cast %12 : vector<1x128xf32> to vector<1x1x128xf32>
    %14 = vector.broadcast %13 : vector<1x1x128xf32> to vector<16x16x128xf32>
    %15 = arith.addf %11, %14 : vector<16x16x128xf32>
    %cst_17 = arith.constant 0.000000e+00 : f32
    %16 = vector.broadcast %cst_17 : f32 to vector<16x16x128xf32>
    %17 = arith.maximumf %15, %16 : vector<16x16x128xf32>
    %c1 = arith.constant 1 : index
    %c8 = arith.constant 8 : index
    %c0_18 = arith.constant 0 : index
    %18 = vector.load %arg8[%c1, %c8, %c0_18] : memref<18x32x128xf32, #tpu.memory_space<vmem>>, vector<16x16x128xf32>
    tpu.vector_store %arg8[%c1, %c8, %c0_18], %17 {strides = array<i32>} : memref<18x32x128xf32, #tpu.memory_space<vmem>>, vector<16x16x128xf32>,
    %cst_19 = arith.constant 0.000000e+00 : f32
    %19 = vector.broadcast %cst_19 : f32 to vector<256x128xf32>
    %c0_20 = arith.constant 0 : index
    %c7_21 = arith.constant 7 : index
    %c0_22 = arith.constant 0 : index
    %20 = vector.load %arg8[%c0_20, %c7_21, %c0_22] : memref<18x32x128xf32, #tpu.memory_space<vmem>>, vector<16x16x128xf32>
    %21 = vector.shape_cast %20 : vector<16x16x128xf32> to vector<256x128xf32>
    %c0_23 = arith.constant 0 : index
    %c0_24 = arith.constant 0 : index
    %c0_25 = arith.constant 0 : index
    %c0_26 = arith.constant 0 : index
    %22 = vector.load %arg4[%c0_23, %c0_24, %c0_25, %c0_26] : memref<3x3x128x128xf32, #tpu.memory_space<vmem>>, vector<1x1x128x128xf32>
    %23 = vector.shape_cast %22 : vector<1x1x128x128xf32> to vector<128x128xf32>
    %cst_27 = arith.constant dense<0.000000e+00> : vector<256x128xf32>
    %24 = tpu.matmul %21, %23, %cst_27 {dimension_numbers = #tpu.dot_dimension_numbers<[1], [0], [0], [1], [0, 0, 1, 1], [], []>} : vector<256x128xf32>, vector<128x128xf32>, vector<256x128xf32> -> vector<256x128xf32>
    %25 = arith.addf %19, %24 : vector<256x128xf32>
    %c0_28 = arith.constant 0 : index
    %c8_29 = arith.constant 8 : index
    %c0_30 = arith.constant 0 : index
    %26 = vector.load %arg8[%c0_28, %c8_29, %c0_30] : memref<18x32x128xf32, #tpu.memory_space<vmem>>, vector<16x16x128xf32>
    %27 = vector.shape_cast %26 : vector<16x16x128xf32> to vector<256x128xf32>
    %c0_31 = arith.constant 0 : index
    %c1_32 = arith.constant 1 : index
    %c0_33 = arith.constant 0 : index
    %c0_34 = arith.constant 0 : index
    %28 = vector.load %arg4[%c0_31, %c1_32, %c0_33, %c0_34] : memref<3x3x128x128xf32, #tpu.memory_space<vmem>>, vector<1x1x128x128xf32>
    %29 = vector.shape_cast %28 : vector<1x1x128x128xf32> to vector<128x128xf32>
    %cst_35 = arith.constant dense<0.000000e+00> : vector<256x128xf32>
    %30 = tpu.matmul %27, %29, %cst_35 {dimension_numbers = #tpu.dot_dimension_numbers<[1], [0], [0], [1], [0, 0, 1, 1], [], []>} : vector<256x128xf32>, vector<128x128xf32>, vector<256x128xf32> -> vector<256x128xf32>
    %31 = arith.addf %25, %30 : vector<256x128xf32>
    %c0_36 = arith.constant 0 : index
    %c9 = arith.constant 9 : index
    %c0_37 = arith.constant 0 : index
    %32 = vector.load %arg8[%c0_36, %c9, %c0_37] : memref<18x32x128xf32, #tpu.memory_space<vmem>>, vector<16x16x128xf32>
    %33 = vector.shape_cast %32 : vector<16x16x128xf32> to vector<256x128xf32>
    %c0_38 = arith.constant 0 : index
    %c2 = arith.constant 2 : index
    %c0_39 = arith.constant 0 : index
    %c0_40 = arith.constant 0 : index
    %34 = vector.load %arg4[%c0_38, %c2, %c0_39, %c0_40] : memref<3x3x128x128xf32, #tpu.memory_space<vmem>>, vector<1x1x128x128xf32>
    %35 = vector.shape_cast %34 : vector<1x1x128x128xf32> to vector<128x128xf32>
    %cst_41 = arith.constant dense<0.000000e+00> : vector<256x128xf32>
    %36 = tpu.matmul %33, %35, %cst_41 {dimension_numbers = #tpu.dot_dimension_numbers<[1], [0], [0], [1], [0, 0, 1, 1], [], []>} : vector<256x128xf32>, vector<128x128xf32>, vector<256x128xf32> -> vector<256x128xf32>
    %37 = arith.addf %31, %36 : vector<256x128xf32>
    %c1_42 = arith.constant 1 : index
    %c7_43 = arith.constant 7 : index
    %c0_44 = arith.constant 0 : index
    %38 = vector.load %arg8[%c1_42, %c7_43, %c0_44] : memref<18x32x128xf32, #tpu.memory_space<vmem>>, vector<16x16x128xf32>
    %39 = vector.shape_cast %38 : vector<16x16x128xf32> to vector<256x128xf32>
    %c1_45 = arith.constant 1 : index
    %c0_46 = arith.constant 0 : index
    %c0_47 = arith.constant 0 : index
    %c0_48 = arith.constant 0 : index
    %40 = vector.load %arg4[%c1_45, %c0_46, %c0_47, %c0_48] : memref<3x3x128x128xf32, #tpu.memory_space<vmem>>, vector<1x1x128x128xf32>
    %41 = vector.shape_cast %40 : vector<1x1x128x128xf32> to vector<128x128xf32>
    %cst_49 = arith.constant dense<0.000000e+00> : vector<256x128xf32>
    %42 = tpu.matmul %39, %41, %cst_49 {dimension_numbers = #tpu.dot_dimension_numbers<[1], [0], [0], [1], [0, 0, 1, 1], [], []>} : vector<256x128xf32>, vector<128x128xf32>, vector<256x128xf32> -> vector<256x128xf32>
    %43 = arith.addf %37, %42 : vector<256x128xf32>
    %c1_50 = arith.constant 1 : index
    %c8_51 = arith.constant 8 : index
    %c0_52 = arith.constant 0 : index
    %44 = vector.load %arg8[%c1_50, %c8_51, %c0_52] : memref<18x32x128xf32, #tpu.memory_space<vmem>>, vector<16x16x128xf32>
    %45 = vector.shape_cast %44 : vector<16x16x128xf32> to vector<256x128xf32>
    %c1_53 = arith.constant 1 : index
    %c1_54 = arith.constant 1 : index
    %c0_55 = arith.constant 0 : index
    %c0_56 = arith.constant 0 : index
    %46 = vector.load %arg4[%c1_53, %c1_54, %c0_55, %c0_56] : memref<3x3x128x128xf32, #tpu.memory_space<vmem>>, vector<1x1x128x128xf32>
    %47 = vector.shape_cast %46 : vector<1x1x128x128xf32> to vector<128x128xf32>
    %cst_57 = arith.constant dense<0.000000e+00> : vector<256x128xf32>
    %48 = tpu.matmul %45, %47, %cst_57 {dimension_numbers = #tpu.dot_dimension_numbers<[1], [0], [0], [1], [0, 0, 1, 1], [], []>} : vector<256x128xf32>, vector<128x128xf32>, vector<256x128xf32> -> vector<256x128xf32>
    %49 = arith.addf %43, %48 : vector<256x128xf32>
    %c1_58 = arith.constant 1 : index
    %c9_59 = arith.constant 9 : index
    %c0_60 = arith.constant 0 : index
    %50 = vector.load %arg8[%c1_58, %c9_59, %c0_60] : memref<18x32x128xf32, #tpu.memory_space<vmem>>, vector<16x16x128xf32>
    %51 = vector.shape_cast %50 : vector<16x16x128xf32> to vector<256x128xf32>
    %c1_61 = arith.constant 1 : index
    %c2_62 = arith.constant 2 : index
    %c0_63 = arith.constant 0 : index
    %c0_64 = arith.constant 0 : index
    %52 = vector.load %arg4[%c1_61, %c2_62, %c0_63, %c0_64] : memref<3x3x128x128xf32, #tpu.memory_space<vmem>>, vector<1x1x128x128xf32>
    %53 = vector.shape_cast %52 : vector<1x1x128x128xf32> to vector<128x128xf32>
    %cst_65 = arith.constant dense<0.000000e+00> : vector<256x128xf32>
    %54 = tpu.matmul %51, %53, %cst_65 {dimension_numbers = #tpu.dot_dimension_numbers<[1], [0], [0], [1], [0, 0, 1, 1], [], []>} : vector<256x128xf32>, vector<128x128xf32>, vector<256x128xf32> -> vector<256x128xf32>
    %55 = arith.addf %49, %54 : vector<256x128xf32>
    %c2_66 = arith.constant 2 : index
    %c7_67 = arith.constant 7 : index
    %c0_68 = arith.constant 0 : index
    %56 = vector.load %arg8[%c2_66, %c7_67, %c0_68] : memref<18x32x128xf32, #tpu.memory_space<vmem>>, vector<16x16x128xf32>
    %57 = vector.shape_cast %56 : vector<16x16x128xf32> to vector<256x128xf32>
    %c2_69 = arith.constant 2 : index
    %c0_70 = arith.constant 0 : index
    %c0_71 = arith.constant 0 : index
    %c0_72 = arith.constant 0 : index
    %58 = vector.load %arg4[%c2_69, %c0_70, %c0_71, %c0_72] : memref<3x3x128x128xf32, #tpu.memory_space<vmem>>, vector<1x1x128x128xf32>
    %59 = vector.shape_cast %58 : vector<1x1x128x128xf32> to vector<128x128xf32>
    %cst_73 = arith.constant dense<0.000000e+00> : vector<256x128xf32>
    %60 = tpu.matmul %57, %59, %cst_73 {dimension_numbers = #tpu.dot_dimension_numbers<[1], [0], [0], [1], [0, 0, 1, 1], [], []>} : vector<256x128xf32>, vector<128x128xf32>, vector<256x128xf32> -> vector<256x128xf32>
    %61 = arith.addf %55, %60 : vector<256x128xf32>
    %c2_74 = arith.constant 2 : index
    %c8_75 = arith.constant 8 : index
    %c0_76 = arith.constant 0 : index
    %62 = vector.load %arg8[%c2_74, %c8_75, %c0_76] : memref<18x32x128xf32, #tpu.memory_space<vmem>>, vector<16x16x128xf32>
    %63 = vector.shape_cast %62 : vector<16x16x128xf32> to vector<256x128xf32>
    %c2_77 = arith.constant 2 : index
    %c1_78 = arith.constant 1 : index
    %c0_79 = arith.constant 0 : index
    %c0_80 = arith.constant 0 : index
    %64 = vector.load %arg4[%c2_77, %c1_78, %c0_79, %c0_80] : memref<3x3x128x128xf32, #tpu.memory_space<vmem>>, vector<1x1x128x128xf32>
    %65 = vector.shape_cast %64 : vector<1x1x128x128xf32> to vector<128x128xf32>
    %cst_81 = arith.constant dense<0.000000e+00> : vector<256x128xf32>
    %66 = tpu.matmul %63, %65, %cst_81 {dimension_numbers = #tpu.dot_dimension_numbers<[1], [0], [0], [1], [0, 0, 1, 1], [], []>} : vector<256x128xf32>, vector<128x128xf32>, vector<256x128xf32> -> vector<256x128xf32>
    %67 = arith.addf %61, %66 : vector<256x128xf32>
    %c2_82 = arith.constant 2 : index
    %c9_83 = arith.constant 9 : index
    %c0_84 = arith.constant 0 : index
    %68 = vector.load %arg8[%c2_82, %c9_83, %c0_84] : memref<18x32x128xf32, #tpu.memory_space<vmem>>, vector<16x16x128xf32>
    %69 = vector.shape_cast %68 : vector<16x16x128xf32> to vector<256x128xf32>
    %c2_85 = arith.constant 2 : index
    %c2_86 = arith.constant 2 : index
    %c0_87 = arith.constant 0 : index
    %c0_88 = arith.constant 0 : index
    %70 = vector.load %arg4[%c2_85, %c2_86, %c0_87, %c0_88] : memref<3x3x128x128xf32, #tpu.memory_space<vmem>>, vector<1x1x128x128xf32>
    %71 = vector.shape_cast %70 : vector<1x1x128x128xf32> to vector<128x128xf32>
    %cst_89 = arith.constant dense<0.000000e+00> : vector<256x128xf32>
    %72 = tpu.matmul %69, %71, %cst_89 {dimension_numbers = #tpu.dot_dimension_numbers<[1], [0], [0], [1], [0, 0, 1, 1], [], []>} : vector<256x128xf32>, vector<128x128xf32>, vector<256x128xf32> -> vector<256x128xf32>
    %73 = arith.addf %67, %72 : vector<256x128xf32>
    %c0_90 = arith.constant 0 : index
    %c0_91 = arith.constant 0 : index
    %74 = vector.load %arg5[%c0_90, %c0_91] : memref<1x128xf32, #tpu.memory_space<vmem>>, vector<1x128xf32>
    %75 = vector.broadcast %74 : vector<1x128xf32> to vector<256x128xf32>
    %76 = arith.addf %73, %75 : vector<256x128xf32>
    %77 = vector.shape_cast %76 : vector<256x128xf32> to vector<16x16x128xf32>
    %c0_92 = arith.constant 0 : index
    %c0_93 = arith.constant 0 : index
    %c0_94 = arith.constant 0 : index
    %c0_95 = arith.constant 0 : index
    %78 = vector.load %arg6[%c0_92, %c0_93, %c0_94, %c0_95] : memref<1x16x16x128xf32, #tpu.memory_space<vmem>>, vector<1x16x16x128xf32>
    %79 = vector.shape_cast %78 : vector<1x16x16x128xf32> to vector<16x16x128xf32>
    %80 = vector.shape_cast %77 : vector<16x16x128xf32> to vector<1x16x16x128xf32>
    tpu.vector_store %arg6[%c0_92, %c0_93, %c0_94, %c0_95], %80 {strides = array<i32>} : memref<1x16x16x128xf32, #tpu.memory_space<vmem>>, vector<1x16x16x128xf32>,
    %cst_96 = arith.constant dense<0.000000e+00> : vector<128xf32>
    %81 = vector.multi_reduction <add>, %76, %cst_96 [0] : vector<256x128xf32> to vector<128xf32>
    %82 = vector.shape_cast %81 : vector<128xf32> to vector<1x128xf32>
    %83 = arith.mulf %76, %76 : vector<256x128xf32>
    %cst_97 = arith.constant dense<0.000000e+00> : vector<128xf32>
    %84 = vector.multi_reduction <add>, %83, %cst_97 [0] : vector<256x128xf32> to vector<128xf32>
    %85 = vector.shape_cast %84 : vector<128xf32> to vector<1x128xf32>
    %86 = tpu.concatenate %82, %85 in 0 : vector<1x128xf32>, vector<1x128xf32> -> vector<2x128xf32>
    %c0_98 = arith.constant 0 : index
    %c0_99 = arith.constant 0 : index
    %c0_100 = arith.constant 0 : index
    %87 = vector.load %arg7[%c0_98, %c0_99, %c0_100] : memref<1x2x128xf32, #tpu.memory_space<vmem>>, vector<1x2x128xf32>
    %88 = vector.shape_cast %87 : vector<1x2x128xf32> to vector<2x128xf32>
    %89 = vector.shape_cast %86 : vector<2x128xf32> to vector<1x2x128xf32>
    tpu.vector_store %arg7[%c0_98, %c0_99, %c0_100], %89 {strides = array<i32>} : memref<1x2x128xf32, #tpu.memory_space<vmem>>, vector<1x2x128xf32>,
    return
  }
  func.func @transform_0(%arg0: i32) -> (i32, i32, i32, i32) {
    %c0_i32 = arith.constant 0 : i32
    %c0_i32_0 = arith.constant 0 : i32
    %c0_i32_1 = arith.constant 0 : i32
    %c0_i32_2 = arith.constant 0 : i32
    return %arg0, %c0_i32, %c0_i32_0, %c0_i32_1 : i32, i32, i32, i32
  }
  func.func @transform_1(%arg0: i32) -> (i32, i32) {
    %c0_i32 = arith.constant 0 : i32
    %c0_i32_0 = arith.constant 0 : i32
    %c0_i32_1 = arith.constant 0 : i32
    return %c0_i32, %c0_i32_0 : i32, i32
  }
  func.func @transform_2(%arg0: i32) -> (i32, i32) {
    %c0_i32 = arith.constant 0 : i32
    %c0_i32_0 = arith.constant 0 : i32
    %c0_i32_1 = arith.constant 0 : i32
    return %c0_i32, %c0_i32_0 : i32, i32
  }
  func.func @transform_3(%arg0: i32) -> (i32, i32, i32, i32) {
    %c0_i32 = arith.constant 0 : i32
    %c0_i32_0 = arith.constant 0 : i32
    %c0_i32_1 = arith.constant 0 : i32
    %c0_i32_2 = arith.constant 0 : i32
    %c0_i32_3 = arith.constant 0 : i32
    return %c0_i32, %c0_i32_0, %c0_i32_1, %c0_i32_2 : i32, i32, i32, i32
  }
  func.func @transform_4(%arg0: i32) -> (i32, i32) {
    %c0_i32 = arith.constant 0 : i32
    %c0_i32_0 = arith.constant 0 : i32
    %c0_i32_1 = arith.constant 0 : i32
    return %c0_i32, %c0_i32_0 : i32, i32
  }
  func.func @transform_5(%arg0: i32) -> (i32, i32, i32, i32) {
    %c0_i32 = arith.constant 0 : i32
    %c0_i32_0 = arith.constant 0 : i32
    %c0_i32_1 = arith.constant 0 : i32
    %c0_i32_2 = arith.constant 0 : i32
    return %arg0, %c0_i32, %c0_i32_0, %c0_i32_1 : i32, i32, i32, i32
  }
  func.func @transform_6(%arg0: i32) -> (i32, i32, i32) {
    %c0_i32 = arith.constant 0 : i32
    %c0_i32_0 = arith.constant 0 : i32
    %c0_i32_1 = arith.constant 0 : i32
    return %arg0, %c0_i32, %c0_i32_0 : i32, i32, i32
  }
}

module attributes {stable_mosaic.version = 11 : i64} {
  func.func @_bn_relu_kernel(%arg0: i32, %arg1: i32, %arg2: memref<1x8x16x128xf32, #tpu.memory_space<vmem>>, %arg3: memref<1x128xf32, #tpu.memory_space<vmem>>, %arg4: memref<1x128xf32, #tpu.memory_space<vmem>>, %arg5: memref<1x8x16x128xf32, #tpu.memory_space<vmem>>) attributes {dimension_semantics = [#tpu.dimension_semantics<parallel>, #tpu.dimension_semantics<parallel>], iteration_bounds = array<i64: 2, 2>, scalar_prefetch = 0 : i64, scratch_operands = 0 : i64, tpu.core_type = #tpu.core_type<tc>, window_params = [{transform_indices = @transform_0, window_bounds = array<i64: 1, 8, 16, 128>}, {pipeline_mode = #tpu.pipeline_mode<synchronous>, transform_indices = @transform_1, window_bounds = array<i64: 1, 128>}, {pipeline_mode = #tpu.pipeline_mode<synchronous>, transform_indices = @transform_2, window_bounds = array<i64: 1, 128>}, {transform_indices = @transform_3, window_bounds = array<i64: 1, 8, 16, 128>}]} {
    %c0 = arith.constant 0 : index
    %c0_0 = arith.constant 0 : index
    %c0_1 = arith.constant 0 : index
    %c0_2 = arith.constant 0 : index
    %0 = vector.load %arg2[%c0, %c0_0, %c0_1, %c0_2] : memref<1x8x16x128xf32, #tpu.memory_space<vmem>>, vector<1x8x16x128xf32>
    %1 = vector.shape_cast %0 : vector<1x8x16x128xf32> to vector<8x16x128xf32>
    %c0_3 = arith.constant 0 : index
    %c0_4 = arith.constant 0 : index
    %2 = vector.load %arg3[%c0_3, %c0_4] : memref<1x128xf32, #tpu.memory_space<vmem>>, vector<1x128xf32>
    %3 = vector.shape_cast %2 : vector<1x128xf32> to vector<1x1x128xf32>
    %4 = vector.broadcast %3 : vector<1x1x128xf32> to vector<8x16x128xf32>
    %5 = arith.mulf %1, %4 : vector<8x16x128xf32>
    %c0_5 = arith.constant 0 : index
    %c0_6 = arith.constant 0 : index
    %6 = vector.load %arg4[%c0_5, %c0_6] : memref<1x128xf32, #tpu.memory_space<vmem>>, vector<1x128xf32>
    %7 = vector.shape_cast %6 : vector<1x128xf32> to vector<1x1x128xf32>
    %8 = vector.broadcast %7 : vector<1x1x128xf32> to vector<8x16x128xf32>
    %9 = arith.addf %5, %8 : vector<8x16x128xf32>
    %cst = arith.constant 0.000000e+00 : f32
    %10 = vector.broadcast %cst : f32 to vector<8x16x128xf32>
    %11 = arith.maximumf %9, %10 : vector<8x16x128xf32>
    %c0_7 = arith.constant 0 : index
    %c0_8 = arith.constant 0 : index
    %c0_9 = arith.constant 0 : index
    %c0_10 = arith.constant 0 : index
    %12 = vector.load %arg5[%c0_7, %c0_8, %c0_9, %c0_10] : memref<1x8x16x128xf32, #tpu.memory_space<vmem>>, vector<1x8x16x128xf32>
    %13 = vector.shape_cast %12 : vector<1x8x16x128xf32> to vector<8x16x128xf32>
    %14 = vector.shape_cast %11 : vector<8x16x128xf32> to vector<1x8x16x128xf32>
    tpu.vector_store %arg5[%c0_7, %c0_8, %c0_9, %c0_10], %14 {strides = array<i32>} : memref<1x8x16x128xf32, #tpu.memory_space<vmem>>, vector<1x8x16x128xf32>,
    return
  }
  func.func @transform_0(%arg0: i32, %arg1: i32) -> (i32, i32, i32, i32) {
    %c0_i32 = arith.constant 0 : i32
    %c0_i32_0 = arith.constant 0 : i32
    %c0_i32_1 = arith.constant 0 : i32
    return %arg0, %arg1, %c0_i32, %c0_i32_0 : i32, i32, i32, i32
  }
  func.func @transform_1(%arg0: i32, %arg1: i32) -> (i32, i32) {
    %c0_i32 = arith.constant 0 : i32
    %c0_i32_0 = arith.constant 0 : i32
    %c0_i32_1 = arith.constant 0 : i32
    return %c0_i32, %c0_i32_0 : i32, i32
  }
  func.func @transform_2(%arg0: i32, %arg1: i32) -> (i32, i32) {
    %c0_i32 = arith.constant 0 : i32
    %c0_i32_0 = arith.constant 0 : i32
    %c0_i32_1 = arith.constant 0 : i32
    return %c0_i32, %c0_i32_0 : i32, i32
  }
  func.func @transform_3(%arg0: i32, %arg1: i32) -> (i32, i32, i32, i32) {
    %c0_i32 = arith.constant 0 : i32
    %c0_i32_0 = arith.constant 0 : i32
    %c0_i32_1 = arith.constant 0 : i32
    return %arg0, %arg1, %c0_i32, %c0_i32_0 : i32, i32, i32, i32
  }
}

</mosaic_0001>

<llo_original>
// kernel: double_conv.3
$region0: #{double_conv.3}
  #allocation0 [shape = 'u32[]', space=smem, size = 0x4, offset = 0x4, fixed_abs, tag = 'smem constant byte address 0x4 - core index']
  #allocation1 [shape = 'u32[144,128]{1,0:T(1,128)}', space=vmem, size = 0x12000, scoped, tag = 'internal scratch']
  %s0 = inlined_call_operand.vmem [shape: f32[2,2,128,36], index: 0, kind: input, shape index: {}]
  %s1 = inlined_call_operand.vmem [shape: f32[36,128], index: 1, kind: input, shape index: {}]
  %s2 = inlined_call_operand.vmem [shape: f32[1,128], index: 2, kind: input, shape index: {}]
  %s3 = inlined_call_operand.vmem [shape: f32[2,2,128,128], index: 3, kind: output, shape index: {0}]
  %s4 = inlined_call_operand.vmem [shape: f32[2,2,2,128], index: 4, kind: output, shape index: {1}]
  %5 = xla_tuple %s3, %s4
  %s6 = sld [smem:[#allocation0]]
  $region53: #{double_conv.3} parent=0
    _
  %s8 = ssub.s32 1, %s6
  %s9 = scalar_select 0, %s8, %s6
  loop: start=0, step=1, limit=6
  $region2: #{double_conv.3} parent=0 // loop_pre_header
    _
  $region3: #{double_conv.3} parent=0 // loop_header
    %s11 = sphi 0, %s15
    %p12 = scmp.ge.s32.totalorder %s11, 6
    %s18 = sphi 0, %s30
    %s19 = sphi 0, %s26
    %s20 = sphi 0, %s18
    %s21 = sphi 0, %s19
    %s22 = sphi 0, %s20
    %s23 = sphi 0, %s21
    %s35 = sphi 0, %s37
    %s38 = sphi 0, %s35
    %s39 = sphi 0, %s38
    %s55 = sphi 0, %s39
    %s59 = sphi 0, %s59
    %s61 = sphi 0, %s59
    %s62 = sphi 0, %s61
    %s76 = sphi 0, %s62
    %s80 = sphi 0, %s80
    %s82 = sphi 0, %s80
    %s83 = sphi 0, %s82
    %s97 = sphi 0, %s83
    %s105 = sphi 0, %s107
    %s108 = sphi 0, %s105
    %s109 = sphi 0, %s108
    %s125 = sphi 0, %s109
    %s133 = sphi 0, %s135
    %s136 = sphi 0, %s133
    %s137 = sphi 0, %s136
    %s153 = sphi 0, %s137
  $region4: #{double_conv.3} parent=0 // loop_header_branch
    %14 = sbr.rel (%p12) target = $region8
  $region5: #{double_conv.3} parent=0 // loop_body
    %s16 = ssub.s32 %s11, 1
    %s17 = ssub.s32 %s11, 2
    %s24 = sadd.s32 1, %s19
    %p25 = scmp.ge.s32.totalorder %s24, 2
    %s26 = scalar_select %p25, 0, %s24
    %s27 = sadd.s32 1, %s18
    %s28 = scalar_select %p25, %s27, %s18
    %p29 = scmp.ge.s32.totalorder %s28, 2
    %s30 = scalar_select %p29, 0, %s28
    %s31 = ssub.s32 %s18, %s30
    %s32 = ssub.s32 %s19, %s26
    %s33 = sor.u32 %s31, %s32
    %p34 = scmp.eq.s32.totalorder %s33, 0
    %s36 = sadd.s32 %s35, 1
    %s37 = scalar_select %p34, %s35, %s36
    %p40 = pneg %p34
    %p41 = scmp.eq.s32.totalorder %s11, 3
    %p42 = por %p40, %p41
    %p43 = scmp.ne.s32.totalorder %s35, %s38
    %p44 = scmp.eq.s32.totalorder %s11, 0
    %p45 = por %p43, %p44
    %p46 = scmp.ne.s32.totalorder %s35, %s38
    %p47 = scmp.eq.s32.totalorder %s16, 3
    %p48 = por %p46, %p47
    %p49 = scmp.ne.s32.totalorder %s38, %s39
    %p50 = scmp.eq.s32.totalorder %s16, 0
    %p51 = por %p49, %p50
    %p52 = scmp.ne.s32.totalorder %s38, %s39
    %p53 = scmp.eq.s32.totalorder %s17, 3
    %p54 = por %p52, %p53
    %p56 = scmp.ne.s32.totalorder %s39, %s55
    %p57 = scmp.eq.s32.totalorder %s17, 0
    %p58 = por %p56, %p57
    %s60 = sadd.s32 %s59, 1
    %p63 = scmp.eq.s32.totalorder %s11, 3
    %p64 = scmp.ne.s32.totalorder %s59, %s61
    %p65 = scmp.eq.s32.totalorder %s11, 0
    %p66 = por %p64, %p65
    %p67 = scmp.ne.s32.totalorder %s59, %s61
    %p68 = scmp.eq.s32.totalorder %s16, 3
    %p69 = por %p67, %p68
    %p70 = scmp.ne.s32.totalorder %s61, %s62
    %p71 = scmp.eq.s32.totalorder %s16, 0
    %p72 = por %p70, %p71
    %p73 = scmp.ne.s32.totalorder %s61, %s62
    %p74 = scmp.eq.s32.totalorder %s17, 3
    %p75 = por %p73, %p74
    %p77 = scmp.ne.s32.totalorder %s62, %s76
    %p78 = scmp.eq.s32.totalorder %s17, 0
    %p79 = por %p77, %p78
    %s81 = sadd.s32 %s80, 1
    %p84 = scmp.eq.s32.totalorder %s11, 3
    %p85 = scmp.ne.s32.totalorder %s80, %s82
    %p86 = scmp.eq.s32.totalorder %s11, 0
    %p87 = por %p85, %p86
    %p88 = scmp.ne.s32.totalorder %s80, %s82
    %p89 = scmp.eq.s32.totalorder %s16, 3
    %p90 = por %p88, %p89
    %p91 = scmp.ne.s32.totalorder %s82, %s83
    %p92 = scmp.eq.s32.totalorder %s16, 0
    %p93 = por %p91, %p92
    %p94 = scmp.ne.s32.totalorder %s82, %s83
    %p95 = scmp.eq.s32.totalorder %s17, 3
    %p96 = por %p94, %p95
    %p98 = scmp.ne.s32.totalorder %s83, %s97
    %p99 = scmp.eq.s32.totalorder %s17, 0
    %p100 = por %p98, %p99
    %s101 = ssub.s32 %s18, %s30
    %s102 = ssub.s32 %s19, %s26
    %s103 = sor.u32 %s101, %s102
    %p104 = scmp.eq.s32.totalorder %s103, 0
    %s106 = sadd.s32 %s105, 1
    %s107 = scalar_select %p104, %s105, %s106
    %p110 = pneg %p104
    %p111 = scmp.eq.s32.totalorder %s11, 3
    %p112 = por %p110, %p111
    %p113 = scmp.ne.s32.totalorder %s105, %s108
    %p114 = scmp.eq.s32.totalorder %s11, 0
    %p115 = por %p113, %p114
    %p116 = scmp.ne.s32.totalorder %s105, %s108
    %p117 = scmp.eq.s32.totalorder %s16, 3
    %p118 = por %p116, %p117
    %p119 = scmp.ne.s32.totalorder %s108, %s109
    %p120 = scmp.eq.s32.totalorder %s16, 0
    %p121 = por %p119, %p120
    %p122 = scmp.ne.s32.totalorder %s108, %s109
    %p123 = scmp.eq.s32.totalorder %s17, 3
    %p124 = por %p122, %p123
    %p126 = scmp.ne.s32.totalorder %s109, %s125
    %p127 = scmp.eq.s32.totalorder %s17, 0
    %p128 = por %p126, %p127
    %s129 = ssub.s32 %s18, %s30
    %s130 = ssub.s32 %s19, %s26
    %s131 = sor.u32 %s129, %s130
    %p132 = scmp.eq.s32.totalorder %s131, 0
    %s134 = sadd.s32 %s133, 1
    %s135 = scalar_select %p132, %s133, %s134
    %p138 = pneg %p132
    %p139 = scmp.eq.s32.totalorder %s11, 3
    %p140 = por %p138, %p139
    %p141 = scmp.ne.s32.totalorder %s133, %s136
    %p142 = scmp.eq.s32.totalorder %s11, 0
    %p143 = por %p141, %p142
    %p144 = scmp.ne.s32.totalorder %s133, %s136
    %p145 = scmp.eq.s32.totalorder %s16, 3
    %p146 = por %p144, %p145
    %p147 = scmp.ne.s32.totalorder %s136, %s137
    %p148 = scmp.eq.s32.totalorder %s16, 0
    %p149 = por %p147, %p148
    %p150 = scmp.ne.s32.totalorder %s136, %s137
    %p151 = scmp.eq.s32.totalorder %s17, 3
    %p152 = por %p150, %p151
    %p154 = scmp.ne.s32.totalorder %s137, %s153
    %p155 = scmp.eq.s32.totalorder %s17, 0
    %p156 = por %p154, %p155
    %p157 = scmp.le.s32.totalorder 1, %s11
    %p158 = scmp.lt.s32.totalorder %s11, 5
    %p159 = pnand %p157, %p158
    %p160 = pneg %p159
    // Predicated region
    $region9: #{double_conv.3} parent=5 // pred_check
      _
    $region10: #{double_conv.3} parent=5 // pred_check_branch
      %162 = sbr.rel (%p159) target = $region12
    $region11: #{double_conv.3} parent=5 // pred_region
      %s163 = ssub.s32 %s11, 1
      // Predicated region
      $region13: #{double_conv.3} parent=11 // pred_check
        %p164 = pneg %p72
      $region14: #{double_conv.3} parent=11 // pred_check_branch
        %166 = sbr.rel (%p164) target = $region16
      $region15: #{double_conv.3} parent=11 // pred_region
        _
      $region16: #{double_conv.3} parent=11 // pred_fallthru
        _
      // Predicated region
      $region17: #{double_conv.3} parent=11 // pred_check
        %p167 = pneg %p93
      $region18: #{double_conv.3} parent=11 // pred_check_branch
        %169 = sbr.rel (%p167) target = $region20
      $region19: #{double_conv.3} parent=11 // pred_region
        _
      $region20: #{double_conv.3} parent=11 // pred_fallthru
        _
    $region12: #{double_conv.3} parent=5 // pred_fallthru
      _
    %p170 = scmp.lt.s32.totalorder %s11, 4
    // Predicated region
    $region21: #{double_conv.3} parent=5 // pred_check
      %p171 = pneg %p170
    $region22: #{double_conv.3} parent=5 // pred_check_branch
      %173 = sbr.rel (%p171) target = $region24
    $region23: #{double_conv.3} parent=5 // pred_region
      // Predicated region
      $region25: #{double_conv.3} parent=23 // pred_check
        %p174 = pneg %p45
      $region26: #{double_conv.3} parent=23 // pred_check_branch
        %176 = sbr.rel (%p174) target = $region28
      $region27: #{double_conv.3} parent=23 // pred_region
        %p177 = scmp.lt.s32.totalorder %s18, 1
        %s178 = scalar_select %p177, %s18, 1
        %p179 = scmp.lt.s32.totalorder %s19, 1
        %s180 = scalar_select %p179, %s19, 1
        %s181 = smul.addr %s180, 16
        %s182 = smul.addr %s178, 32
        %s183 = sadd.s32 %s181, %s182
        %s184 = smul.addr %s183, 8
        %s185 = scalar_lea.vmem %s0, %s184
      $region28: #{double_conv.3} parent=23 // pred_fallthru
        _
    $region24: #{double_conv.3} parent=5 // pred_fallthru
      _
    %p186 = scmp.le.s32.totalorder 1, %s11
    %p187 = scmp.lt.s32.totalorder %s11, 5
    %p188 = pnand %p186, %p187
    %p189 = pneg %p188
    // Predicated region
    $region29: #{double_conv.3} parent=5 // pred_check
      _
    $region30: #{double_conv.3} parent=5 // pred_check_branch
      %191 = sbr.rel (%p188) target = $region32
    $region31: #{double_conv.3} parent=5 // pred_region
      %s192 = ssub.s32 %s11, 1
      %p193 = scmp.lt.s32.totalorder %s20, 1
      %s194 = scalar_select %p193, %s20, 1
      %p195 = scmp.lt.s32.totalorder %s21, 1
      %s196 = scalar_select %p195, %s21, 1
      %s197 = smul.addr %s196, 16
      %s198 = smul.addr %s194, 32
      %s199 = sadd.s32 %s197, %s198
      %s200 = smul.addr %s199, 8
      %s201 = scalar_lea.vmem %s0, %s200
      %p202 = pneg %p51
      %p203 = pneg %p48
      %p204 = pneg %p72
      %p205 = pneg %p69
      %p206 = pneg %p93
      %p207 = pneg %p90
      %p208 = pneg %p121
      %p209 = pneg %p118
      %p210 = scmp.lt.s32.totalorder %s20, 1
      %s211 = scalar_select %p210, %s20, 1
      %p212 = scmp.lt.s32.totalorder %s21, 1
      %s213 = scalar_select %p212, %s21, 1
      %s214 = smul.addr %s213, 16
      %s215 = smul.addr %s211, 32
      %s216 = sadd.s32 %s214, %s215
      %s217 = smul.addr %s216, 8
      %s218 = scalar_lea.vmem %s3, %s217
      %p219 = pneg %p149
      %p220 = pneg %p146
      %p221 = scmp.lt.s32.totalorder %s20, 1
      %s222 = scalar_select %p221, %s20, 1
      %p223 = scmp.lt.s32.totalorder %s21, 1
      %s224 = scalar_select %p223, %s21, 1
      %s225 = smul.addr %s222, 2
      %s226 = sadd.s32 %s224, %s225
      %s227 = smul.addr %s226, 2
      %s228 = scalar_lea.vmem %s4, %s227
      %p229 = scmp.lt.s32.totalorder %s20, 1
      %s230 = scalar_select %p229, %s20, 1
      %p231 = scmp.lt.s32.totalorder %s21, 1
      %s232 = scalar_select %p231, %s21, 1
      %s233 = smul.addr %s232, 16
      %s234 = smul.addr %s230, 32
      %s235 = sadd.s32 %s233, %s234
      %s236 = smul.addr %s235, 8
      %s237 = scalar_lea.vmem %s0, %s236
      %p238 = scmp.lt.s32.totalorder %s20, 1
      %s239 = scalar_select %p238, %s20, 1
      %p240 = scmp.lt.s32.totalorder %s21, 1
      %s241 = scalar_select %p240, %s21, 1
      %s242 = smul.addr %s241, 16
      %s243 = smul.addr %s239, 32
      %s244 = sadd.s32 %s242, %s243
      %s245 = smul.addr %s244, 8
      %s246 = scalar_lea.vmem %s3, %s245
      %p247 = scmp.lt.s32.totalorder %s20, 1
      %s248 = scalar_select %p247, %s20, 1
      %p249 = scmp.lt.s32.totalorder %s21, 1
      %s250 = scalar_select %p249, %s21, 1
      %s251 = smul.addr %s248, 2
      %s252 = sadd.s32 %s250, %s251
      %s253 = smul.addr %s252, 2
      %s254 = scalar_lea.vmem %s4, %s253
      %v255 = vld [vmem:[%s237] sm:$0xff]
      %v256 = vld [vmem:[%s237 + $0x8] sm:$0xff]
      %v257 = vld [vmem:[%s237 + $0x10] sm:$0xff]
      %v258 = vld [vmem:[%s237 + $0x18] sm:$0xff]
      %v259 = vld [vmem:[%s237 + $0x20] sm:$0xff]
      %v260 = vld [vmem:[%s237 + $0x28] sm:$0xff]
      %v261 = vld [vmem:[%s237 + $0x30] sm:$0xff]
      %v262 = vld [vmem:[%s237 + $0x38] sm:$0xff]
      %v263 = vld [vmem:[%s237 + $0x40] sm:$0xff]
      %v264 = vld [vmem:[%s237 + $0x48] sm:$0xff]
      %v265 = vld [vmem:[%s237 + $0x50] sm:$0xff]
      %v266 = vld [vmem:[%s237 + $0x58] sm:$0xff]
      %v267 = vld [vmem:[%s237 + $0x60] sm:$0xff]
      %v268 = vld [vmem:[%s237 + $0x68] sm:$0xff]
      %v269 = vld [vmem:[%s237 + $0x70] sm:$0xff]
      %v270 = vld [vmem:[%s237 + $0x78] sm:$0xff]
      %v271 = vld [vmem:[%s1] sm:$0xff]
      %v272 = vld [vmem:[%s1 + $0x8] sm:$0xff]
      %v273 = vld [vmem:[%s1 + $0x10] sm:$0xff]
      %v274 = vld [vmem:[%s1 + $0x18] sm:$0xff]
      %v275 = vld [vmem:[%s1 + $0x20] sm:$0xf]
      %v276 = vld [vmem:[%s2] sm:$0x1]
      %v278 = vlaneseq
      %v279 = vshrl.u32 %v278, 7
      %v280 = vsub.s32 0, %v279
      %v281 = vrot.slane %v276, %v280
      %vm283 = vcmask 293888
      %v285 = vsel %vm283, %v255, 0
      %v288 = vsel %vm283, %v256, 0
      %v291 = vsel %vm283, %v257, 0
      %v294 = vsel %vm283, %v258, 0
      %v297 = vsel %vm283, %v259, 0
      %v300 = vsel %vm283, %v260, 0
      %v303 = vsel %vm283, %v261, 0
      %v306 = vsel %vm283, %v262, 0
      %v309 = vsel %vm283, %v263, 0
      %v312 = vsel %vm283, %v264, 0
      %v315 = vsel %vm283, %v265, 0
      %v318 = vsel %vm283, %v266, 0
      %v321 = vsel %vm283, %v267, 0
      %v324 = vsel %vm283, %v268, 0
      %v327 = vsel %vm283, %v269, 0
      %v330 = vsel %vm283, %v270, 0
      %vm332 = vcmask 1043456
      %v334 = vsel %vm332, %v275, 0
      %336 = vmatprep.subr.mxu0 0.0
      %337 = vmatpush1.msra.mxu0 0.0
      %338 = vmatprep.subr.mxu0 0.0
      %339 = vmatpush1.msra.mxu0 0.0
      %340 = vmatprep.subr.mxu0 0.0
      %341 = vmatpush1.msra.mxu0 0.0
      %342 = vmatprep.subr.mxu0 0.0
      %343 = vmatpush1.msra.mxu0 0.0
      %344 = vmatprep.subr.mxu0 0.0
      %345 = vmatpush1.msra.mxu0 0.0
      %346 = vmatprep.subr.mxu0 0.0
      %347 = vmatpush1.msra.mxu0 0.0
      %348 = vmatprep.subr.mxu0 0.0
      %349 = vmatpush1.msra.mxu0 0.0
      %350 = vmatprep.subr.mxu0 0.0
      %351 = vmatpush1.msra.mxu0 0.0
      %352 = vmatprep.subr.mxu0 0.0
      %353 = vmatpush1.msra.mxu0 0.0
      %354 = vmatprep.subr.mxu0 0.0
      %355 = vmatpush1.msra.mxu0 0.0
      %356 = vmatprep.subr.mxu0 0.0
      %357 = vmatpush1.msra.mxu0 0.0
      %358 = vmatprep.subr.mxu0 0.0
      %359 = vmatpush1.msra.mxu0 %v334
      %360 = vmatprep.subr.mxu0 0.0
      %361 = vmatpush1.msra.mxu0 %v274
      %362 = vmatprep.subr.mxu0 0.0
      %363 = vmatpush1.msra.mxu0 %v273
      %364 = vmatprep.subr.mxu0 0.0
      %365 = vmatpush1.msra.mxu0 %v272
      %366 = vmatprep.subr.mxu0 0.0
      %367 = vmatpush1.msra.mxu0 %v271
      %368 = vmatprep.subr.mxu0 0.0
      %369 = vmatpush2.msra.mxu0 0.0
      %370 = vmatprep.subr.mxu0 0.0
      %371 = vmatpush2.msra.mxu0 0.0
      %372 = vmatprep.subr.mxu0 0.0
      %373 = vmatpush2.msra.mxu0 0.0
      %374 = vmatprep.subr.mxu0 0.0
      %375 = vmatpush2.msra.mxu0 0.0
      %376 = vmatprep.subr.mxu0 0.0
      %377 = vmatpush2.msra.mxu0 0.0
      %378 = vmatprep.subr.mxu0 0.0
      %379 = vmatpush2.msra.mxu0 0.0
      %380 = vmatprep.subr.mxu0 0.0
      %381 = vmatpush2.msra.mxu0 0.0
      %382 = vmatprep.subr.mxu0 0.0
      %383 = vmatpush2.msra.mxu0 0.0
      %384 = vmatprep.subr.mxu0 0.0
      %385 = vmatpush2.msra.mxu0 0.0
      %386 = vmatprep.subr.mxu0 0.0
      %387 = vmatpush2.msra.mxu0 0.0
      %388 = vmatprep.subr.mxu0 0.0
      %389 = vmatpush2.msra.mxu0 0.0
      %390 = vmatprep.subr.mxu0 0.0
      %391 = vmatpush2.msra.mxu0 0.0
      %392 = vmatprep.subr.mxu0 0.0
      %393 = vmatpush2.msra.mxu0 0.0
      %394 = vmatprep.subr.mxu0 0.0
      %395 = vmatpush2.msra.mxu0 0.0
      %396 = vmatprep.subr.mxu0 0.0
      %397 = vmatpush2.msra.mxu0 0.0
      %398 = vmatprep.subr.mxu0 0.0
      %399 = vmatpush2.msra.mxu0 0.0
      %400 = vmatprep.mubr.f32.mxu0 0.0
      %401 = vmatmul.mubr.f32.gmra.mxu0 %v285
      %v402 = vpop.f32.mrf.mxu0
      %v403 = vadd.f32 %v281, %v402
      %v404 = vpop.f32.mrf.mxu0
      %405 = vmatprep.mubr.f32.mxu0 0.0
      %406 = vmatmul.mubr.f32.gmra.mxu0 %v288
      %v407 = vpop.f32.mrf.mxu0
      %v408 = vadd.f32 %v281, %v407
      %v409 = vpop.f32.mrf.mxu0
      %410 = vmatprep.mubr.f32.mxu0 0.0
      %411 = vmatmul.mubr.f32.gmra.mxu0 %v291
      %v412 = vpop.f32.mrf.mxu0
      %v413 = vadd.f32 %v281, %v412
      %v414 = vpop.f32.mrf.mxu0
      %415 = vmatprep.mubr.f32.mxu0 0.0
      %416 = vmatmul.mubr.f32.gmra.mxu0 %v294
      %v417 = vpop.f32.mrf.mxu0
      %v418 = vadd.f32 %v281, %v417
      %v419 = vpop.f32.mrf.mxu0
      %420 = vmatprep.mubr.f32.mxu0 0.0
      %421 = vmatmul.mubr.f32.gmra.mxu0 %v297
      %v422 = vpop.f32.mrf.mxu0
      %v423 = vadd.f32 %v281, %v422
      %v424 = vpop.f32.mrf.mxu0
      %425 = vmatprep.mubr.f32.mxu0 0.0
      %426 = vmatmul.mubr.f32.gmra.mxu0 %v300
      %v427 = vpop.f32.mrf.mxu0
      %v428 = vadd.f32 %v281, %v427
      %v429 = vpop.f32.mrf.mxu0
      %430 = vmatprep.mubr.f32.mxu0 0.0
      %431 = vmatmul.mubr.f32.gmra.mxu0 %v303
      %v432 = vpop.f32.mrf.mxu0
      %v433 = vadd.f32 %v281, %v432
      %v434 = vpop.f32.mrf.mxu0
      %435 = vmatprep.mubr.f32.mxu0 0.0
      %436 = vmatmul.mubr.f32.gmra.mxu0 %v306
      %v437 = vpop.f32.mrf.mxu0
      %v438 = vadd.f32 %v281, %v437
      %v439 = vpop.f32.mrf.mxu0
      %440 = vmatprep.mubr.f32.mxu0 0.0
      %441 = vmatmul.mubr.f32.gmra.mxu0 %v309
      %v442 = vpop.f32.mrf.mxu0
      %v443 = vadd.f32 %v281, %v442
      %v444 = vpop.f32.mrf.mxu0
      %445 = vmatprep.mubr.f32.mxu0 0.0
      %446 = vmatmul.mubr.f32.gmra.mxu0 %v312
      %v447 = vpop.f32.mrf.mxu0
      %v448 = vadd.f32 %v281, %v447
      %v449 = vpop.f32.mrf.mxu0
      %450 = vmatprep.mubr.f32.mxu0 0.0
      %451 = vmatmul.mubr.f32.gmra.mxu0 %v315
      %v452 = vpop.f32.mrf.mxu0
      %v453 = vadd.f32 %v281, %v452
      %v454 = vpop.f32.mrf.mxu0
      %455 = vmatprep.mubr.f32.mxu0 0.0
      %456 = vmatmul.mubr.f32.gmra.mxu0 %v318
      %v457 = vpop.f32.mrf.mxu0
      %v458 = vadd.f32 %v281, %v457
      %v459 = vpop.f32.mrf.mxu0
      %460 = vmatprep.mubr.f32.mxu0 0.0
      %461 = vmatmul.mubr.f32.gmra.mxu0 %v321
      %v462 = vpop.f32.mrf.mxu0
      %v463 = vadd.f32 %v281, %v462
      %v464 = vpop.f32.mrf.mxu0
      %465 = vmatprep.mubr.f32.mxu0 0.0
      %466 = vmatmul.mubr.f32.gmra.mxu0 %v324
      %v467 = vpop.f32.mrf.mxu0
      %v468 = vadd.f32 %v281, %v467
      %v469 = vpop.f32.mrf.mxu0
      %470 = vmatprep.mubr.f32.mxu0 0.0
      %471 = vmatmul.mubr.f32.gmra.mxu0 %v327
      %v472 = vpop.f32.mrf.mxu0
      %v473 = vadd.f32 %v281, %v472
      %v474 = vpop.f32.mrf.mxu0
      %475 = vmatprep.mubr.f32.mxu0 0.0
      %476 = vmatmul.mubr.f32.gmra.mxu0 %v330
      %v477 = vpop.f32.mrf.mxu0
      %v478 = vadd.f32 %v281, %v477
      %v479 = vpop.f32.mrf.mxu0
      %480 = vdwg.mxu0
      %481 = vst [vmem:[%s246] sm:$0xff] %v403
      %482 = vst [vmem:[%s246 + $0x8] sm:$0xff] %v408
      %483 = vst [vmem:[%s246 + $0x10] sm:$0xff] %v413
      %484 = vst [vmem:[%s246 + $0x18] sm:$0xff] %v418
      %485 = vst [vmem:[%s246 + $0x20] sm:$0xff] %v423
      %486 = vst [vmem:[%s246 + $0x28] sm:$0xff] %v428
      %487 = vst [vmem:[%s246 + $0x30] sm:$0xff] %v433
      %488 = vst [vmem:[%s246 + $0x38] sm:$0xff] %v438
      %489 = vst [vmem:[%s246 + $0x40] sm:$0xff] %v443
      %490 = vst [vmem:[%s246 + $0x48] sm:$0xff] %v448
      %491 = vst [vmem:[%s246 + $0x50] sm:$0xff] %v453
      %492 = vst [vmem:[%s246 + $0x58] sm:$0xff] %v458
      %493 = vst [vmem:[%s246 + $0x60] sm:$0xff] %v463
      %494 = vst [vmem:[%s246 + $0x68] sm:$0xff] %v468
      %495 = vst [vmem:[%s246 + $0x70] sm:$0xff] %v473
      %496 = vst [vmem:[%s246 + $0x78] sm:$0xff] %v478
      %v497 = vadd.f32 %v403, %v408
      %v498 = vadd.f32 %v497, %v413
      %v499 = vadd.f32 %v498, %v418
      %v500 = vadd.f32 %v499, %v423
      %v501 = vadd.f32 %v500, %v428
      %v502 = vadd.f32 %v501, %v433
      %v503 = vadd.f32 %v502, %v438
      %v504 = vadd.f32 %v503, %v443
      %v505 = vadd.f32 %v504, %v448
      %v506 = vadd.f32 %v505, %v453
      %v507 = vadd.f32 %v506, %v458
      %v508 = vadd.f32 %v507, %v463
      %v509 = vadd.f32 %v508, %v468
      %v510 = vadd.f32 %v509, %v473
      %v511 = vadd.f32 %v510, %v478
      %v512 = vrot.slane %v511, 4
      %v513 = vadd.f32 %v511, %v512
      %v514 = vrot.slane %v513, 2
      %v515 = vadd.f32 %v513, %v514
      %v516 = vrot.slane %v515, 1
      %v517 = vadd.f32 %v515, %v516
      %v518 = vmul.f32 %v403, %v403
      %v519 = vmul.f32 %v408, %v408
      %v520 = vmul.f32 %v413, %v413
      %v521 = vmul.f32 %v418, %v418
      %v522 = vmul.f32 %v423, %v423
      %v523 = vmul.f32 %v428, %v428
      %v524 = vmul.f32 %v433, %v433
      %v525 = vmul.f32 %v438, %v438
      %v526 = vmul.f32 %v443, %v443
      %v527 = vmul.f32 %v448, %v448
      %v528 = vmul.f32 %v453, %v453
      %v529 = vmul.f32 %v458, %v458
      %v530 = vmul.f32 %v463, %v463
      %v531 = vmul.f32 %v468, %v468
      %v532 = vmul.f32 %v473, %v473
      %v533 = vmul.f32 %v478, %v478
      %v534 = vadd.f32 %v518, %v519
      %v535 = vadd.f32 %v534, %v520
      %v536 = vadd.f32 %v535, %v521
      %v537 = vadd.f32 %v536, %v522
      %v538 = vadd.f32 %v537, %v523
      %v539 = vadd.f32 %v538, %v524
      %v540 = vadd.f32 %v539, %v525
      %v541 = vadd.f32 %v540, %v526
      %v542 = vadd.f32 %v541, %v527
      %v543 = vadd.f32 %v542, %v528
      %v544 = vadd.f32 %v543, %v529
      %v545 = vadd.f32 %v544, %v530
      %v546 = vadd.f32 %v545, %v531
      %v547 = vadd.f32 %v546, %v532
      %v548 = vadd.f32 %v547, %v533
      %v549 = vrot.slane %v548, 4
      %v550 = vadd.f32 %v548, %v549
      %v551 = vrot.slane %v550, 2
      %v552 = vadd.f32 %v550, %v551
      %v553 = vrot.slane %v552, 1
      %v554 = vadd.f32 %v552, %v553
      %vm555 = vcmask 1040384
      %v556 = vsel %vm555, %v517, %v554
      %557 = vst [vmem:[%s254] sm:$0x3] %v556
      %p558 = scmp.lt.s32.totalorder %s20, 1
      %s559 = scalar_select %p558, %s20, 1
      %p560 = scmp.lt.s32.totalorder %s21, 1
      %s561 = scalar_select %p560, %s21, 1
      %s562 = smul.addr %s561, 16
      %s563 = smul.addr %s559, 32
      %s564 = sadd.s32 %s562, %s563
      %s565 = smul.addr %s564, 8
      %s566 = scalar_lea.vmem %s3, %s565
      %p567 = scmp.lt.s32.totalorder %s20, 1
      %s568 = scalar_select %p567, %s20, 1
      %p569 = scmp.lt.s32.totalorder %s21, 1
      %s570 = scalar_select %p569, %s21, 1
      %s571 = smul.addr %s568, 2
      %s572 = sadd.s32 %s570, %s571
      %s573 = smul.addr %s572, 2
      %s574 = scalar_lea.vmem %s4, %s573
      // Predicated region
      $region33: #{double_conv.3} parent=31 // pred_check
        %p575 = pneg %p118
      $region34: #{double_conv.3} parent=31 // pred_check_branch
        %577 = sbr.rel (%p575) target = $region36
      $region35: #{double_conv.3} parent=31 // pred_region
        _
      $region36: #{double_conv.3} parent=31 // pred_fallthru
        _
      // Predicated region
      $region37: #{double_conv.3} parent=31 // pred_check
        %p578 = pneg %p146
      $region38: #{double_conv.3} parent=31 // pred_check_branch
        %580 = sbr.rel (%p578) target = $region40
      $region39: #{double_conv.3} parent=31 // pred_region
        _
      $region40: #{double_conv.3} parent=31 // pred_fallthru
        _
    $region32: #{double_conv.3} parent=5 // pred_fallthru
      _
    %p581 = scmp.le.s32.totalorder 2, %s11
    // Predicated region
    $region41: #{double_conv.3} parent=5 // pred_check
      %p582 = pneg %p581
    $region42: #{double_conv.3} parent=5 // pred_check_branch
      %584 = sbr.rel (%p582) target = $region44
    $region43: #{double_conv.3} parent=5 // pred_region
      %s585 = ssub.s32 %s11, 2
      // Predicated region
      $region45: #{double_conv.3} parent=43 // pred_check
        %p586 = pneg %p124
      $region46: #{double_conv.3} parent=43 // pred_check_branch
        %588 = sbr.rel (%p586) target = $region48
      $region47: #{double_conv.3} parent=43 // pred_region
        %p589 = scmp.lt.s32.totalorder %s22, 1
        %s590 = scalar_select %p589, %s22, 1
        %p591 = scmp.lt.s32.totalorder %s23, 1
        %s592 = scalar_select %p591, %s23, 1
        %s593 = smul.addr %s592, 16
        %s594 = smul.addr %s590, 32
        %s595 = sadd.s32 %s593, %s594
        %s596 = smul.addr %s595, 8
        %s597 = scalar_lea.vmem %s3, %s596
      $region48: #{double_conv.3} parent=43 // pred_fallthru
        _
      // Predicated region
      $region49: #{double_conv.3} parent=43 // pred_check
        %p598 = pneg %p152
      $region50: #{double_conv.3} parent=43 // pred_check_branch
        %600 = sbr.rel (%p598) target = $region52
      $region51: #{double_conv.3} parent=43 // pred_region
        %p601 = scmp.lt.s32.totalorder %s22, 1
        %s602 = scalar_select %p601, %s22, 1
        %p603 = scmp.lt.s32.totalorder %s23, 1
        %s604 = scalar_select %p603, %s23, 1
        %s605 = smul.addr %s602, 2
        %s606 = sadd.s32 %s604, %s605
        %s607 = smul.addr %s606, 2
        %s608 = scalar_lea.vmem %s4, %s607
      $region52: #{double_conv.3} parent=43 // pred_fallthru
        _
    $region44: #{double_conv.3} parent=5 // pred_fallthru
      _
  $region6: #{double_conv.3} parent=0 // loop_footer
    %s15 = sadd.s32 1, %s11
  $region7: #{double_conv.3} parent=0 // loop_footer_branch
    %10 = sbr.rel target = $region3
  $region8: #{double_conv.3} parent=0 // loop_exit
    _

// kernel: double_conv.5
$region0: #{double_conv.5}
  #allocation0 [shape = 'u32[]', space=smem, size = 0x4, offset = 0x4, fixed_abs, tag = 'smem constant byte address 0x4 - core index']
  #allocation1 [shape = 'u32[144,128]{1,0:T(1,128)}', space=vmem, size = 0x12000, scoped, tag = 'internal scratch']
  %s0 = inlined_call_operand.vmem [shape: f32[2,16,16,128], index: 0, kind: input, shape index: {}]
  %s1 = inlined_call_operand.vmem [shape: f32[1,128], index: 1, kind: input, shape index: {}]
  %s2 = inlined_call_operand.vmem [shape: f32[1,128], index: 2, kind: input, shape index: {}]
  %s3 = inlined_call_operand.vmem [shape: f32[2,16,16,128], index: 3, kind: output, shape index: {}]
  %s4 = sld [smem:[#allocation0]]
  $region45: #{double_conv.5} parent=0
    _
  %s6 = ssub.s32 1, %s4
  %s7 = scalar_select 0, %s6, %s4
  loop: start=0, step=1, limit=6
  $region2: #{double_conv.5} parent=0 // loop_pre_header
    _
  $region3: #{double_conv.5} parent=0 // loop_header
    %s9 = sphi 0, %s13
    %p10 = scmp.ge.s32.totalorder %s9, 6
    %s16 = sphi 0, %s28
    %s17 = sphi 0, %s24
    %s18 = sphi 0, %s16
    %s19 = sphi 0, %s17
    %s20 = sphi 0, %s18
    %s21 = sphi 0, %s19
    %s33 = sphi 0, %s35
    %s36 = sphi 0, %s33
    %s37 = sphi 0, %s36
    %s53 = sphi 0, %s37
    %s57 = sphi 0, %s57
    %s59 = sphi 0, %s57
    %s60 = sphi 0, %s59
    %s74 = sphi 0, %s60
    %s78 = sphi 0, %s78
    %s80 = sphi 0, %s78
    %s81 = sphi 0, %s80
    %s95 = sphi 0, %s81
    %s103 = sphi 0, %s105
    %s106 = sphi 0, %s103
    %s107 = sphi 0, %s106
    %s123 = sphi 0, %s107
  $region4: #{double_conv.5} parent=0 // loop_header_branch
    %12 = sbr.rel (%p10) target = $region8
  $region5: #{double_conv.5} parent=0 // loop_body
    %s14 = ssub.s32 %s9, 1
    %s15 = ssub.s32 %s9, 2
    %s22 = sadd.s32 1, %s17
    %p23 = scmp.ge.s32.totalorder %s22, 2
    %s24 = scalar_select %p23, 0, %s22
    %s25 = sadd.s32 1, %s16
    %s26 = scalar_select %p23, %s25, %s16
    %p27 = scmp.ge.s32.totalorder %s26, 2
    %s28 = scalar_select %p27, 0, %s26
    %s29 = ssub.s32 %s16, %s28
    %s30 = ssub.s32 %s17, %s24
    %s31 = sor.u32 %s29, %s30
    %p32 = scmp.eq.s32.totalorder %s31, 0
    %s34 = sadd.s32 %s33, 1
    %s35 = scalar_select %p32, %s33, %s34
    %p38 = pneg %p32
    %p39 = scmp.eq.s32.totalorder %s9, 3
    %p40 = por %p38, %p39
    %p41 = scmp.ne.s32.totalorder %s33, %s36
    %p42 = scmp.eq.s32.totalorder %s9, 0
    %p43 = por %p41, %p42
    %p44 = scmp.ne.s32.totalorder %s33, %s36
    %p45 = scmp.eq.s32.totalorder %s14, 3
    %p46 = por %p44, %p45
    %p47 = scmp.ne.s32.totalorder %s36, %s37
    %p48 = scmp.eq.s32.totalorder %s14, 0
    %p49 = por %p47, %p48
    %p50 = scmp.ne.s32.totalorder %s36, %s37
    %p51 = scmp.eq.s32.totalorder %s15, 3
    %p52 = por %p50, %p51
    %p54 = scmp.ne.s32.totalorder %s37, %s53
    %p55 = scmp.eq.s32.totalorder %s15, 0
    %p56 = por %p54, %p55
    %s58 = sadd.s32 %s57, 1
    %p61 = scmp.eq.s32.totalorder %s9, 3
    %p62 = scmp.ne.s32.totalorder %s57, %s59
    %p63 = scmp.eq.s32.totalorder %s9, 0
    %p64 = por %p62, %p63
    %p65 = scmp.ne.s32.totalorder %s57, %s59
    %p66 = scmp.eq.s32.totalorder %s14, 3
    %p67 = por %p65, %p66
    %p68 = scmp.ne.s32.totalorder %s59, %s60
    %p69 = scmp.eq.s32.totalorder %s14, 0
    %p70 = por %p68, %p69
    %p71 = scmp.ne.s32.totalorder %s59, %s60
    %p72 = scmp.eq.s32.totalorder %s15, 3
    %p73 = por %p71, %p72
    %p75 = scmp.ne.s32.totalorder %s60, %s74
    %p76 = scmp.eq.s32.totalorder %s15, 0
    %p77 = por %p75, %p76
    %s79 = sadd.s32 %s78, 1
    %p82 = scmp.eq.s32.totalorder %s9, 3
    %p83 = scmp.ne.s32.totalorder %s78, %s80
    %p84 = scmp.eq.s32.totalorder %s9, 0
    %p85 = por %p83, %p84
    %p86 = scmp.ne.s32.totalorder %s78, %s80
    %p87 = scmp.eq.s32.totalorder %s14, 3
    %p88 = por %p86, %p87
    %p89 = scmp.ne.s32.totalorder %s80, %s81
    %p90 = scmp.eq.s32.totalorder %s14, 0
    %p91 = por %p89, %p90
    %p92 = scmp.ne.s32.totalorder %s80, %s81
    %p93 = scmp.eq.s32.totalorder %s15, 3
    %p94 = por %p92, %p93
    %p96 = scmp.ne.s32.totalorder %s81, %s95
    %p97 = scmp.eq.s32.totalorder %s15, 0
    %p98 = por %p96, %p97
    %s99 = ssub.s32 %s16, %s28
    %s100 = ssub.s32 %s17, %s24
    %s101 = sor.u32 %s99, %s100
    %p102 = scmp.eq.s32.totalorder %s101, 0
    %s104 = sadd.s32 %s103, 1
    %s105 = scalar_select %p102, %s103, %s104
    %p108 = pneg %p102
    %p109 = scmp.eq.s32.totalorder %s9, 3
    %p110 = por %p108, %p109
    %p111 = scmp.ne.s32.totalorder %s103, %s106
    %p112 = scmp.eq.s32.totalorder %s9, 0
    %p113 = por %p111, %p112
    %p114 = scmp.ne.s32.totalorder %s103, %s106
    %p115 = scmp.eq.s32.totalorder %s14, 3
    %p116 = por %p114, %p115
    %p117 = scmp.ne.s32.totalorder %s106, %s107
    %p118 = scmp.eq.s32.totalorder %s14, 0
    %p119 = por %p117, %p118
    %p120 = scmp.ne.s32.totalorder %s106, %s107
    %p121 = scmp.eq.s32.totalorder %s15, 3
    %p122 = por %p120, %p121
    %p124 = scmp.ne.s32.totalorder %s107, %s123
    %p125 = scmp.eq.s32.totalorder %s15, 0
    %p126 = por %p124, %p125
    %p127 = scmp.le.s32.totalorder 1, %s9
    %p128 = scmp.lt.s32.totalorder %s9, 5
    %p129 = pnand %p127, %p128
    %p130 = pneg %p129
    // Predicated region
    $region9: #{double_conv.5} parent=5 // pred_check
      _
    $region10: #{double_conv.5} parent=5 // pred_check_branch
      %132 = sbr.rel (%p129) target = $region12
    $region11: #{double_conv.5} parent=5 // pred_region
      %s133 = ssub.s32 %s9, 1
      // Predicated region
      $region13: #{double_conv.5} parent=11 // pred_check
        %p134 = pneg %p70
      $region14: #{double_conv.5} parent=11 // pred_check_branch
        %136 = sbr.rel (%p134) target = $region16
      $region15: #{double_conv.5} parent=11 // pred_region
        _
      $region16: #{double_conv.5} parent=11 // pred_fallthru
        _
      // Predicated region
      $region17: #{double_conv.5} parent=11 // pred_check
        %p137 = pneg %p91
      $region18: #{double_conv.5} parent=11 // pred_check_branch
        %139 = sbr.rel (%p137) target = $region20
      $region19: #{double_conv.5} parent=11 // pred_region
        _
      $region20: #{double_conv.5} parent=11 // pred_fallthru
        _
    $region12: #{double_conv.5} parent=5 // pred_fallthru
      _
    %p140 = scmp.lt.s32.totalorder %s9, 4
    // Predicated region
    $region21: #{double_conv.5} parent=5 // pred_check
      %p141 = pneg %p140
    $region22: #{double_conv.5} parent=5 // pred_check_branch
      %143 = sbr.rel (%p141) target = $region24
    $region23: #{double_conv.5} parent=5 // pred_region
      // Predicated region
      $region25: #{double_conv.5} parent=23 // pred_check
        %p144 = pneg %p43
      $region26: #{double_conv.5} parent=23 // pred_check_branch
        %146 = sbr.rel (%p144) target = $region28
      $region27: #{double_conv.5} parent=23 // pred_region
        %s147 = smul.u32 8, %s17
        %p148 = scmp.lt.s32.totalorder %s16, 1
        %s149 = scalar_select %p148, %s16, 1
        %p150 = scmp.lt.s32.totalorder %s147, 15
        %s151 = scalar_select %p150, %s147, 15
        %s152 = smul.addr %s151, 2
        %s153 = smul.addr %s149, 32
        %s154 = sadd.s32 %s152, %s153
        %s155 = smul.addr %s154, 8
        %s156 = scalar_lea.vmem %s0, %s155
        %s157 = smul.u32 8, %s17
      $region28: #{double_conv.5} parent=23 // pred_fallthru
        _
    $region24: #{double_conv.5} parent=5 // pred_fallthru
      _
    %p158 = scmp.le.s32.totalorder 1, %s9
    %p159 = scmp.lt.s32.totalorder %s9, 5
    %p160 = pnand %p158, %p159
    %p161 = pneg %p160
    // Predicated region
    $region29: #{double_conv.5} parent=5 // pred_check
      _
    $region30: #{double_conv.5} parent=5 // pred_check_branch
      %163 = sbr.rel (%p160) target = $region32
    $region31: #{double_conv.5} parent=5 // pred_region
      %s164 = ssub.s32 %s9, 1
      %s165 = smul.u32 8, %s19
      %p166 = scmp.lt.s32.totalorder %s18, 1
      %s167 = scalar_select %p166, %s18, 1
      %p168 = scmp.lt.s32.totalorder %s165, 15
      %s169 = scalar_select %p168, %s165, 15
      %s170 = smul.addr %s169, 2
      %s171 = smul.addr %s167, 32
      %s172 = sadd.s32 %s170, %s171
      %s173 = smul.addr %s172, 8
      %s174 = scalar_lea.vmem %s0, %s173
      %p175 = pneg %p49
      %p176 = pneg %p46
      %p177 = pneg %p70
      %p178 = pneg %p67
      %p179 = pneg %p91
      %p180 = pneg %p88
      %p181 = pneg %p119
      %p182 = pneg %p116
      %s183 = smul.u32 8, %s19
      %p184 = scmp.lt.s32.totalorder %s18, 1
      %s185 = scalar_select %p184, %s18, 1
      %p186 = scmp.lt.s32.totalorder %s183, 15
      %s187 = scalar_select %p186, %s183, 15
      %s188 = smul.addr %s187, 2
      %s189 = smul.addr %s185, 32
      %s190 = sadd.s32 %s188, %s189
      %s191 = smul.addr %s190, 8
      %s192 = scalar_lea.vmem %s3, %s191
      %s193 = smul.u32 8, %s19
      %p194 = scmp.lt.s32.totalorder %s18, 1
      %s195 = scalar_select %p194, %s18, 1
      %p196 = scmp.lt.s32.totalorder %s193, 15
      %s197 = scalar_select %p196, %s193, 15
      %s198 = smul.addr %s197, 2
      %s199 = smul.addr %s195, 32
      %s200 = sadd.s32 %s198, %s199
      %s201 = smul.addr %s200, 8
      %s202 = scalar_lea.vmem %s0, %s201
      %s203 = smul.u32 8, %s19
      %s204 = smul.u32 8, %s19
      %p205 = scmp.lt.s32.totalorder %s18, 1
      %s206 = scalar_select %p205, %s18, 1
      %p207 = scmp.lt.s32.totalorder %s204, 15
      %s208 = scalar_select %p207, %s204, 15
      %s209 = smul.addr %s208, 2
      %s210 = smul.addr %s206, 32
      %s211 = sadd.s32 %s209, %s210
      %s212 = smul.addr %s211, 8
      %s213 = scalar_lea.vmem %s3, %s212
      %s214 = smul.u32 8, %s19
      %v215 = vld [vmem:[%s202] sm:$0xff]
      %v216 = vld [vmem:[%s202 + $0x8] sm:$0xff]
      %v217 = vld [vmem:[%s202 + $0x10] sm:$0xff]
      %v218 = vld [vmem:[%s202 + $0x18] sm:$0xff]
      %v219 = vld [vmem:[%s202 + $0x20] sm:$0xff]
      %v220 = vld [vmem:[%s202 + $0x28] sm:$0xff]
      %v221 = vld [vmem:[%s202 + $0x30] sm:$0xff]
      %v222 = vld [vmem:[%s202 + $0x38] sm:$0xff]
      %v223 = vld [vmem:[%s202 + $0x40] sm:$0xff]
      %v224 = vld [vmem:[%s202 + $0x48] sm:$0xff]
      %v225 = vld [vmem:[%s202 + $0x50] sm:$0xff]
      %v226 = vld [vmem:[%s202 + $0x58] sm:$0xff]
      %v227 = vld [vmem:[%s202 + $0x60] sm:$0xff]
      %v228 = vld [vmem:[%s202 + $0x68] sm:$0xff]
      %v229 = vld [vmem:[%s202 + $0x70] sm:$0xff]
      %v230 = vld [vmem:[%s202 + $0x78] sm:$0xff]
      %v231 = vld [vmem:[%s1] sm:$0x1]
      %v233 = vlaneseq
      %v234 = vshrl.u32 %v233, 7
      %v235 = vsub.s32 0, %v234
      %v236 = vrot.slane %v231, %v235
      %v238 = vmul.f32 %v215, %v236
      %v239 = vmul.f32 %v216, %v236
      %v240 = vmul.f32 %v217, %v236
      %v241 = vmul.f32 %v218, %v236
      %v242 = vmul.f32 %v219, %v236
      %v243 = vmul.f32 %v220, %v236
      %v244 = vmul.f32 %v221, %v236
      %v245 = vmul.f32 %v222, %v236
      %v246 = vmul.f32 %v223, %v236
      %v247 = vmul.f32 %v224, %v236
      %v248 = vmul.f32 %v225, %v236
      %v249 = vmul.f32 %v226, %v236
      %v250 = vmul.f32 %v227, %v236
      %v251 = vmul.f32 %v228, %v236
      %v252 = vmul.f32 %v229, %v236
      %v253 = vmul.f32 %v230, %v236
      %v254 = vld [vmem:[%s2] sm:$0x1]
      %v256 = vlaneseq
      %v257 = vshrl.u32 %v256, 7
      %v258 = vsub.s32 0, %v257
      %v259 = vrot.slane %v254, %v258
      %v261 = vadd.f32 %v238, %v259
      %v262 = vadd.f32 %v239, %v259
      %v263 = vadd.f32 %v240, %v259
      %v264 = vadd.f32 %v241, %v259
      %v265 = vadd.f32 %v242, %v259
      %v266 = vadd.f32 %v243, %v259
      %v267 = vadd.f32 %v244, %v259
      %v268 = vadd.f32 %v245, %v259
      %v269 = vadd.f32 %v246, %v259
      %v270 = vadd.f32 %v247, %v259
      %v271 = vadd.f32 %v248, %v259
      %v272 = vadd.f32 %v249, %v259
      %v273 = vadd.f32 %v250, %v259
      %v274 = vadd.f32 %v251, %v259
      %v275 = vadd.f32 %v252, %v259
      %v276 = vadd.f32 %v253, %v259
      %v277 = vmax.f32 %v261, 0.0
      %v278 = vmax.f32 %v262, 0.0
      %v279 = vmax.f32 %v263, 0.0
      %v280 = vmax.f32 %v264, 0.0
      %v281 = vmax.f32 %v265, 0.0
      %v282 = vmax.f32 %v266, 0.0
      %v283 = vmax.f32 %v267, 0.0
      %v284 = vmax.f32 %v268, 0.0
      %v285 = vmax.f32 %v269, 0.0
      %v286 = vmax.f32 %v270, 0.0
      %v287 = vmax.f32 %v271, 0.0
      %v288 = vmax.f32 %v272, 0.0
      %v289 = vmax.f32 %v273, 0.0
      %v290 = vmax.f32 %v274, 0.0
      %v291 = vmax.f32 %v275, 0.0
      %v292 = vmax.f32 %v276, 0.0
      %293 = vst [vmem:[%s213] sm:$0xff] %v277
      %294 = vst [vmem:[%s213 + $0x8] sm:$0xff] %v278
      %295 = vst [vmem:[%s213 + $0x10] sm:$0xff] %v279
      %296 = vst [vmem:[%s213 + $0x18] sm:$0xff] %v280
      %297 = vst [vmem:[%s213 + $0x20] sm:$0xff] %v281
      %298 = vst [vmem:[%s213 + $0x28] sm:$0xff] %v282
      %299 = vst [vmem:[%s213 + $0x30] sm:$0xff] %v283
      %300 = vst [vmem:[%s213 + $0x38] sm:$0xff] %v284
      %301 = vst [vmem:[%s213 + $0x40] sm:$0xff] %v285
      %302 = vst [vmem:[%s213 + $0x48] sm:$0xff] %v286
      %303 = vst [vmem:[%s213 + $0x50] sm:$0xff] %v287
      %304 = vst [vmem:[%s213 + $0x58] sm:$0xff] %v288
      %305 = vst [vmem:[%s213 + $0x60] sm:$0xff] %v289
      %306 = vst [vmem:[%s213 + $0x68] sm:$0xff] %v290
      %307 = vst [vmem:[%s213 + $0x70] sm:$0xff] %v291
      %308 = vst [vmem:[%s213 + $0x78] sm:$0xff] %v292
      %s309 = smul.u32 8, %s19
      %p310 = scmp.lt.s32.totalorder %s18, 1
      %s311 = scalar_select %p310, %s18, 1
      %p312 = scmp.lt.s32.totalorder %s309, 15
      %s313 = scalar_select %p312, %s309, 15
      %s314 = smul.addr %s313, 2
      %s315 = smul.addr %s311, 32
      %s316 = sadd.s32 %s314, %s315
      %s317 = smul.addr %s316, 8
      %s318 = scalar_lea.vmem %s3, %s317
      // Predicated region
      $region33: #{double_conv.5} parent=31 // pred_check
        %p319 = pneg %p116
      $region34: #{double_conv.5} parent=31 // pred_check_branch
        %321 = sbr.rel (%p319) target = $region36
      $region35: #{double_conv.5} parent=31 // pred_region
        %s322 = smul.u32 8, %s19
      $region36: #{double_conv.5} parent=31 // pred_fallthru
        _
    $region32: #{double_conv.5} parent=5 // pred_fallthru
      _
    %p323 = scmp.le.s32.totalorder 2, %s9
    // Predicated region
    $region37: #{double_conv.5} parent=5 // pred_check
      %p324 = pneg %p323
    $region38: #{double_conv.5} parent=5 // pred_check_branch
      %326 = sbr.rel (%p324) target = $region40
    $region39: #{double_conv.5} parent=5 // pred_region
      %s327 = ssub.s32 %s9, 2
      // Predicated region
      $region41: #{double_conv.5} parent=39 // pred_check
        %p328 = pneg %p122
      $region42: #{double_conv.5} parent=39 // pred_check_branch
        %330 = sbr.rel (%p328) target = $region44
      $region43: #{double_conv.5} parent=39 // pred_region
        %s331 = smul.u32 8, %s21
        %p332 = scmp.lt.s32.totalorder %s20, 1
        %s333 = scalar_select %p332, %s20, 1
        %p334 = scmp.lt.s32.totalorder %s331, 15
        %s335 = scalar_select %p334, %s331, 15
        %s336 = smul.addr %s335, 2
        %s337 = smul.addr %s333, 32
        %s338 = sadd.s32 %s336, %s337
        %s339 = smul.addr %s338, 8
        %s340 = scalar_lea.vmem %s3, %s339
      $region44: #{double_conv.5} parent=39 // pred_fallthru
        _
    $region40: #{double_conv.5} parent=5 // pred_fallthru
      _
  $region6: #{double_conv.5} parent=0 // loop_footer
    %s13 = sadd.s32 1, %s9
  $region7: #{double_conv.5} parent=0 // loop_footer_branch
    %8 = sbr.rel target = $region3
  $region8: #{double_conv.5} parent=0 // loop_exit
    _

// kernel: double_conv.4
$region0: #{double_conv.4}
  #allocation0 [shape = 'u32[]', space=smem, size = 0x4, offset = 0x4, fixed_abs, tag = 'smem constant byte address 0x4 - core index']
  #allocation1 [shape = 'u32[144,128]{1,0:T(1,128)}', space=vmem, size = 0x12000, scoped, tag = 'internal scratch']
  #allocation2 [shape = 'f32[18,32,128]{2,1,0:T(8,128)}', space=vmem, size = 0x48000, scoped, tag = 'scratch operand']
  %s0 = inlined_call_operand.vmem [shape: f32[2,16,16,128], index: 0, kind: input, shape index: {}]
  %s1 = inlined_call_operand.vmem [shape: f32[1,128], index: 1, kind: input, shape index: {}]
  %s2 = inlined_call_operand.vmem [shape: f32[1,128], index: 2, kind: input, shape index: {}]
  %s3 = inlined_call_operand.vmem [shape: f32[3,3,128,128], index: 3, kind: input, shape index: {}]
  %s4 = inlined_call_operand.vmem [shape: f32[1,128], index: 4, kind: input, shape index: {}]
  %s5 = inlined_call_operand.vmem [shape: f32[2,16,16,128], index: 5, kind: output, shape index: {0}]
  %s6 = inlined_call_operand.vmem [shape: f32[2,2,128], index: 6, kind: output, shape index: {1}]
  %7 = xla_tuple %s5, %s6
  %s8 = sld [smem:[#allocation0]]
  $region61: #{double_conv.4} parent=0
    _
  %s10 = ssub.s32 1, %s8
  %s11 = scalar_select 0, %s10, %s8
  loop: start=0, step=1, limit=4
  $region2: #{double_conv.4} parent=0 // loop_pre_header
    _
  $region3: #{double_conv.4} parent=0 // loop_header
    %s13 = sphi 0, %s17
    %p14 = scmp.ge.s32.totalorder %s13, 4
    %s23 = sphi 0, %s25
    %s26 = sphi 0, %s23
    %s27 = sphi 0, %s26
    %s43 = sphi 0, %s27
    %s47 = sphi 0, %s47
    %s49 = sphi 0, %s47
    %s50 = sphi 0, %s49
    %s64 = sphi 0, %s50
    %s68 = sphi 0, %s68
    %s70 = sphi 0, %s68
    %s71 = sphi 0, %s70
    %s85 = sphi 0, %s71
    %s89 = sphi 0, %s89
    %s91 = sphi 0, %s89
    %s92 = sphi 0, %s91
    %s106 = sphi 0, %s92
    %s110 = sphi 0, %s110
    %s112 = sphi 0, %s110
    %s113 = sphi 0, %s112
    %s127 = sphi 0, %s113
    %s133 = sphi 0, %s135
    %s136 = sphi 0, %s133
    %s137 = sphi 0, %s136
    %s153 = sphi 0, %s137
    %s159 = sphi 0, %s161
    %s162 = sphi 0, %s159
    %s163 = sphi 0, %s162
    %s179 = sphi 0, %s163
  $region4: #{double_conv.4} parent=0 // loop_header_branch
    %16 = sbr.rel (%p14) target = $region8
  $region5: #{double_conv.4} parent=0 // loop_body
    %s18 = ssub.s32 %s13, 1
    %s19 = ssub.s32 %s13, 2
    %s20 = sadd.s32 %s13, 1
    %s21 = ssub.s32 %s13, %s20
    %p22 = scmp.eq.s32.totalorder %s21, 0
    %s24 = sadd.s32 %s23, 1
    %s25 = scalar_select %p22, %s23, %s24
    %p28 = pneg %p22
    %p29 = scmp.eq.s32.totalorder %s13, 1
    %p30 = por %p28, %p29
    %p31 = scmp.ne.s32.totalorder %s23, %s26
    %p32 = scmp.eq.s32.totalorder %s13, 0
    %p33 = por %p31, %p32
    %p34 = scmp.ne.s32.totalorder %s23, %s26
    %p35 = scmp.eq.s32.totalorder %s18, 1
    %p36 = por %p34, %p35
    %p37 = scmp.ne.s32.totalorder %s26, %s27
    %p38 = scmp.eq.s32.totalorder %s18, 0
    %p39 = por %p37, %p38
    %p40 = scmp.ne.s32.totalorder %s26, %s27
    %p41 = scmp.eq.s32.totalorder %s19, 1
    %p42 = por %p40, %p41
    %p44 = scmp.ne.s32.totalorder %s27, %s43
    %p45 = scmp.eq.s32.totalorder %s19, 0
    %p46 = por %p44, %p45
    %s48 = sadd.s32 %s47, 1
    %p51 = scmp.eq.s32.totalorder %s13, 1
    %p52 = scmp.ne.s32.totalorder %s47, %s49
    %p53 = scmp.eq.s32.totalorder %s13, 0
    %p54 = por %p52, %p53
    %p55 = scmp.ne.s32.totalorder %s47, %s49
    %p56 = scmp.eq.s32.totalorder %s18, 1
    %p57 = por %p55, %p56
    %p58 = scmp.ne.s32.totalorder %s49, %s50
    %p59 = scmp.eq.s32.totalorder %s18, 0
    %p60 = por %p58, %p59
    %p61 = scmp.ne.s32.totalorder %s49, %s50
    %p62 = scmp.eq.s32.totalorder %s19, 1
    %p63 = por %p61, %p62
    %p65 = scmp.ne.s32.totalorder %s50, %s64
    %p66 = scmp.eq.s32.totalorder %s19, 0
    %p67 = por %p65, %p66
    %s69 = sadd.s32 %s68, 1
    %p72 = scmp.eq.s32.totalorder %s13, 1
    %p73 = scmp.ne.s32.totalorder %s68, %s70
    %p74 = scmp.eq.s32.totalorder %s13, 0
    %p75 = por %p73, %p74
    %p76 = scmp.ne.s32.totalorder %s68, %s70
    %p77 = scmp.eq.s32.totalorder %s18, 1
    %p78 = por %p76, %p77
    %p79 = scmp.ne.s32.totalorder %s70, %s71
    %p80 = scmp.eq.s32.totalorder %s18, 0
    %p81 = por %p79, %p80
    %p82 = scmp.ne.s32.totalorder %s70, %s71
    %p83 = scmp.eq.s32.totalorder %s19, 1
    %p84 = por %p82, %p83
    %p86 = scmp.ne.s32.totalorder %s71, %s85
    %p87 = scmp.eq.s32.totalorder %s19, 0
    %p88 = por %p86, %p87
    %s90 = sadd.s32 %s89, 1
    %p93 = scmp.eq.s32.totalorder %s13, 1
    %p94 = scmp.ne.s32.totalorder %s89, %s91
    %p95 = scmp.eq.s32.totalorder %s13, 0
    %p96 = por %p94, %p95
    %p97 = scmp.ne.s32.totalorder %s89, %s91
    %p98 = scmp.eq.s32.totalorder %s18, 1
    %p99 = por %p97, %p98
    %p100 = scmp.ne.s32.totalorder %s91, %s92
    %p101 = scmp.eq.s32.totalorder %s18, 0
    %p102 = por %p100, %p101
    %p103 = scmp.ne.s32.totalorder %s91, %s92
    %p104 = scmp.eq.s32.totalorder %s19, 1
    %p105 = por %p103, %p104
    %p107 = scmp.ne.s32.totalorder %s92, %s106
    %p108 = scmp.eq.s32.totalorder %s19, 0
    %p109 = por %p107, %p108
    %s111 = sadd.s32 %s110, 1
    %p114 = scmp.eq.s32.totalorder %s13, 1
    %p115 = scmp.ne.s32.totalorder %s110, %s112
    %p116 = scmp.eq.s32.totalorder %s13, 0
    %p117 = por %p115, %p116
    %p118 = scmp.ne.s32.totalorder %s110, %s112
    %p119 = scmp.eq.s32.totalorder %s18, 1
    %p120 = por %p118, %p119
    %p121 = scmp.ne.s32.totalorder %s112, %s113
    %p122 = scmp.eq.s32.totalorder %s18, 0
    %p123 = por %p121, %p122
    %p124 = scmp.ne.s32.totalorder %s112, %s113
    %p125 = scmp.eq.s32.totalorder %s19, 1
    %p126 = por %p124, %p125
    %p128 = scmp.ne.s32.totalorder %s113, %s127
    %p129 = scmp.eq.s32.totalorder %s19, 0
    %p130 = por %p128, %p129
    %s131 = ssub.s32 %s13, %s20
    %p132 = scmp.eq.s32.totalorder %s131, 0
    %s134 = sadd.s32 %s133, 1
    %s135 = scalar_select %p132, %s133, %s134
    %p138 = pneg %p132
    %p139 = scmp.eq.s32.totalorder %s13, 1
    %p140 = por %p138, %p139
    %p141 = scmp.ne.s32.totalorder %s133, %s136
    %p142 = scmp.eq.s32.totalorder %s13, 0
    %p143 = por %p141, %p142
    %p144 = scmp.ne.s32.totalorder %s133, %s136
    %p145 = scmp.eq.s32.totalorder %s18, 1
    %p146 = por %p144, %p145
    %p147 = scmp.ne.s32.totalorder %s136, %s137
    %p148 = scmp.eq.s32.totalorder %s18, 0
    %p149 = por %p147, %p148
    %p150 = scmp.ne.s32.totalorder %s136, %s137
    %p151 = scmp.eq.s32.totalorder %s19, 1
    %p152 = por %p150, %p151
    %p154 = scmp.ne.s32.totalorder %s137, %s153
    %p155 = scmp.eq.s32.totalorder %s19, 0
    %p156 = por %p154, %p155
    %s157 = ssub.s32 %s13, %s20
    %p158 = scmp.eq.s32.totalorder %s157, 0
    %s160 = sadd.s32 %s159, 1
    %s161 = scalar_select %p158, %s159, %s160
    %p164 = pneg %p158
    %p165 = scmp.eq.s32.totalorder %s13, 1
    %p166 = por %p164, %p165
    %p167 = scmp.ne.s32.totalorder %s159, %s162
    %p168 = scmp.eq.s32.totalorder %s13, 0
    %p169 = por %p167, %p168
    %p170 = scmp.ne.s32.totalorder %s159, %s162
    %p171 = scmp.eq.s32.totalorder %s18, 1
    %p172 = por %p170, %p171
    %p173 = scmp.ne.s32.totalorder %s162, %s163
    %p174 = scmp.eq.s32.totalorder %s18, 0
    %p175 = por %p173, %p174
    %p176 = scmp.ne.s32.totalorder %s162, %s163
    %p177 = scmp.eq.s32.totalorder %s19, 1
    %p178 = por %p176, %p177
    %p180 = scmp.ne.s32.totalorder %s163, %s179
    %p181 = scmp.eq.s32.totalorder %s19, 0
    %p182 = por %p180, %p181
    %p183 = scmp.le.s32.totalorder 1, %s13
    %p184 = scmp.lt.s32.totalorder %s13, 3
    %p185 = pnand %p183, %p184
    %p186 = pneg %p185
    // Predicated region
    $region9: #{double_conv.4} parent=5 // pred_check
      _
    $region10: #{double_conv.4} parent=5 // pred_check_branch
      %188 = sbr.rel (%p185) target = $region12
    $region11: #{double_conv.4} parent=5 // pred_region
      %s189 = ssub.s32 %s13, 1
      // Predicated region
      $region13: #{double_conv.4} parent=11 // pred_check
        %p190 = pneg %p60
      $region14: #{double_conv.4} parent=11 // pred_check_branch
        %192 = sbr.rel (%p190) target = $region16
      $region15: #{double_conv.4} parent=11 // pred_region
        _
      $region16: #{double_conv.4} parent=11 // pred_fallthru
        _
      // Predicated region
      $region17: #{double_conv.4} parent=11 // pred_check
        %p193 = pneg %p81
      $region18: #{double_conv.4} parent=11 // pred_check_branch
        %195 = sbr.rel (%p193) target = $region20
      $region19: #{double_conv.4} parent=11 // pred_region
        _
      $region20: #{double_conv.4} parent=11 // pred_fallthru
        _
      // Predicated region
      $region21: #{double_conv.4} parent=11 // pred_check
        %p196 = pneg %p102
      $region22: #{double_conv.4} parent=11 // pred_check_branch
        %198 = sbr.rel (%p196) target = $region24
      $region23: #{double_conv.4} parent=11 // pred_region
        _
      $region24: #{double_conv.4} parent=11 // pred_fallthru
        _
      // Predicated region
      $region25: #{double_conv.4} parent=11 // pred_check
        %p199 = pneg %p123
      $region26: #{double_conv.4} parent=11 // pred_check_branch
        %201 = sbr.rel (%p199) target = $region28
      $region27: #{double_conv.4} parent=11 // pred_region
        _
      $region28: #{double_conv.4} parent=11 // pred_fallthru
        _
    $region12: #{double_conv.4} parent=5 // pred_fallthru
      _
    %p202 = scmp.lt.s32.totalorder %s13, 2
    // Predicated region
    $region29: #{double_conv.4} parent=5 // pred_check
      %p203 = pneg %p202
    $region30: #{double_conv.4} parent=5 // pred_check_branch
      %205 = sbr.rel (%p203) target = $region32
    $region31: #{double_conv.4} parent=5 // pred_region
      // Predicated region
      $region33: #{double_conv.4} parent=31 // pred_check
        %p206 = pneg %p33
      $region34: #{double_conv.4} parent=31 // pred_check_branch
        %208 = sbr.rel (%p206) target = $region36
      $region35: #{double_conv.4} parent=31 // pred_region
        %p209 = scmp.lt.s32.totalorder %s13, 1
        %s210 = scalar_select %p209, %s13, 1
        %s211 = smul.addr %s210, 32
        %s212 = smul.addr %s211, 8
        %s213 = scalar_lea.vmem %s0, %s212
      $region36: #{double_conv.4} parent=31 // pred_fallthru
        _
    $region32: #{double_conv.4} parent=5 // pred_fallthru
      _
    %p214 = scmp.le.s32.totalorder 1, %s13
    %p215 = scmp.lt.s32.totalorder %s13, 3
    %p216 = pnand %p214, %p215
    %p217 = pneg %p216
    // Predicated region
    $region37: #{double_conv.4} parent=5 // pred_check
      _
    $region38: #{double_conv.4} parent=5 // pred_check_branch
      %219 = sbr.rel (%p216) target = $region40
    $region39: #{double_conv.4} parent=5 // pred_region
      %s220 = ssub.s32 %s13, 1
      %p221 = scmp.lt.s32.totalorder %s18, 1
      %s222 = scalar_select %p221, %s18, 1
      %s223 = smul.addr %s222, 32
      %s224 = smul.addr %s223, 8
      %s225 = scalar_lea.vmem %s0, %s224
      %p226 = pneg %p39
      %p227 = pneg %p36
      %p228 = pneg %p60
      %p229 = pneg %p57
      %p230 = pneg %p81
      %p231 = pneg %p78
      %p232 = pneg %p102
      %p233 = pneg %p99
      %p234 = pneg %p123
      %p235 = pneg %p120
      %p236 = pneg %p149
      %p237 = pneg %p146
      %p238 = scmp.lt.s32.totalorder %s18, 1
      %s239 = scalar_select %p238, %s18, 1
      %s240 = smul.addr %s239, 32
      %s241 = smul.addr %s240, 8
      %s242 = scalar_lea.vmem %s5, %s241
      %p243 = pneg %p175
      %p244 = pneg %p172
      %p245 = scmp.lt.s32.totalorder %s18, 1
      %s246 = scalar_select %p245, %s18, 1
      %s247 = smul.addr %s246, 2
      %s248 = scalar_lea.vmem %s6, %s247
      %p249 = scmp.lt.s32.totalorder %s18, 1
      %s250 = scalar_select %p249, %s18, 1
      %s251 = smul.addr %s250, 32
      %s252 = smul.addr %s251, 8
      %s253 = scalar_lea.vmem %s0, %s252
      %p254 = scmp.lt.s32.totalorder %s18, 1
      %s255 = scalar_select %p254, %s18, 1
      %s256 = smul.addr %s255, 32
      %s257 = smul.addr %s256, 8
      %s258 = scalar_lea.vmem %s5, %s257
      %p259 = scmp.lt.s32.totalorder %s18, 1
      %s260 = scalar_select %p259, %s18, 1
      %s261 = smul.addr %s260, 2
      %s262 = scalar_lea.vmem %s6, %s261
      %263 = vst [vmem:[#allocation2 + $0x7] sm:$0xff] 0.0
      %264 = vst [vmem:[#allocation2 + $0xf] sm:$0xff] 0.0
      %265 = vst [vmem:[#allocation2 + $0x17] sm:$0x3] 0.0
      %s266 = scalar_lea.vmem [#allocation2], 544
      %267 = vst [vmem:[%s266 + $0x7] sm:$0xff] 0.0
      %268 = vst [vmem:[%s266 + $0xf] sm:$0xff] 0.0
      %269 = vst [vmem:[%s266 + $0x17] sm:$0x3] 0.0
      %270 = vst [vmem:[#allocation2 + $0x7] sm:$0x1] 0.0
      %271 = vst [vmem:[#allocation2 + $0x27] sm:$0x1] 0.0
      %272 = vst [vmem:[#allocation2 + $0x47] sm:$0x1] 0.0
      %273 = vst [vmem:[#allocation2 + $0x67] sm:$0x1] 0.0
      %274 = vst [vmem:[#allocation2 + $0x87] sm:$0x1] 0.0
      %275 = vst [vmem:[#allocation2 + $0xa7] sm:$0x1] 0.0
      %276 = vst [vmem:[#allocation2 + $0xc7] sm:$0x1] 0.0
      %277 = vst [vmem:[#allocation2 + $0xe7] sm:$0x1] 0.0
      %278 = vst [vmem:[#allocation2 + $0x107] sm:$0x1] 0.0
      %279 = vst [vmem:[#allocation2 + $0x127] sm:$0x1] 0.0
      %280 = vst [vmem:[#allocation2 + $0x147] sm:$0x1] 0.0
      %281 = vst [vmem:[#allocation2 + $0x167] sm:$0x1] 0.0
      %282 = vst [vmem:[#allocation2 + $0x187] sm:$0x1] 0.0
      %283 = vst [vmem:[#allocation2 + $0x1a7] sm:$0x1] 0.0
      %284 = vst [vmem:[#allocation2 + $0x1c7] sm:$0x1] 0.0
      %285 = vst [vmem:[#allocation2 + $0x1e7] sm:$0x1] 0.0
      %286 = vst [vmem:[#allocation2 + $0x207] sm:$0x1] 0.0
      %287 = vst [vmem:[#allocation2 + $0x227] sm:$0x1] 0.0
      %288 = vst [vmem:[#allocation2 + $0x18] sm:$0x1] 0.0
      %289 = vst [vmem:[#allocation2 + $0x38] sm:$0x1] 0.0
      %290 = vst [vmem:[#allocation2 + $0x58] sm:$0x1] 0.0
      %291 = vst [vmem:[#allocation2 + $0x78] sm:$0x1] 0.0
      %292 = vst [vmem:[#allocation2 + $0x98] sm:$0x1] 0.0
      %293 = vst [vmem:[#allocation2 + $0xb8] sm:$0x1] 0.0
      %294 = vst [vmem:[#allocation2 + $0xd8] sm:$0x1] 0.0
      %295 = vst [vmem:[#allocation2 + $0xf8] sm:$0x1] 0.0
      %296 = vst [vmem:[#allocation2 + $0x118] sm:$0x1] 0.0
      %297 = vst [vmem:[#allocation2 + $0x138] sm:$0x1] 0.0
      %298 = vst [vmem:[#allocation2 + $0x158] sm:$0x1] 0.0
      %299 = vst [vmem:[#allocation2 + $0x178] sm:$0x1] 0.0
      %300 = vst [vmem:[#allocation2 + $0x198] sm:$0x1] 0.0
      %301 = vst [vmem:[#allocation2 + $0x1b8] sm:$0x1] 0.0
      %302 = vst [vmem:[#allocation2 + $0x1d8] sm:$0x1] 0.0
      %303 = vst [vmem:[#allocation2 + $0x1f8] sm:$0x1] 0.0
      %304 = vst [vmem:[#allocation2 + $0x218] sm:$0x1] 0.0
      %305 = vst [vmem:[#allocation2 + $0x238] sm:$0x1] 0.0
      %v306 = vld [vmem:[%s253] sm:$0xff]
      %v307 = vld [vmem:[%s253 + $0x8] sm:$0xff]
      %v308 = vld [vmem:[%s253 + $0x10] sm:$0xff]
      %v309 = vld [vmem:[%s253 + $0x18] sm:$0xff]
      %v310 = vld [vmem:[%s253 + $0x20] sm:$0xff]
      %v311 = vld [vmem:[%s253 + $0x28] sm:$0xff]
      %v312 = vld [vmem:[%s253 + $0x30] sm:$0xff]
      %v313 = vld [vmem:[%s253 + $0x38] sm:$0xff]
      %v314 = vld [vmem:[%s253 + $0x40] sm:$0xff]
      %v315 = vld [vmem:[%s253 + $0x48] sm:$0xff]
      %v316 = vld [vmem:[%s253 + $0x50] sm:$0xff]
      %v317 = vld [vmem:[%s253 + $0x58] sm:$0xff]
      %v318 = vld [vmem:[%s253 + $0x60] sm:$0xff]
      %v319 = vld [vmem:[%s253 + $0x68] sm:$0xff]
      %v320 = vld [vmem:[%s253 + $0x70] sm:$0xff]
      %v321 = vld [vmem:[%s253 + $0x78] sm:$0xff]
      %v322 = vld [vmem:[%s253 + $0x80] sm:$0xff]
      %v323 = vld [vmem:[%s253 + $0x88] sm:$0xff]
      %v324 = vld [vmem:[%s253 + $0x90] sm:$0xff]
      %v325 = vld [vmem:[%s253 + $0x98] sm:$0xff]
      %v326 = vld [vmem:[%s253 + $0xa0] sm:$0xff]
      %v327 = vld [vmem:[%s253 + $0xa8] sm:$0xff]
      %v328 = vld [vmem:[%s253 + $0xb0] sm:$0xff]
      %v329 = vld [vmem:[%s253 + $0xb8] sm:$0xff]
      %v330 = vld [vmem:[%s253 + $0xc0] sm:$0xff]
      %v331 = vld [vmem:[%s253 + $0xc8] sm:$0xff]
      %v332 = vld [vmem:[%s253 + $0xd0] sm:$0xff]
      %v333 = vld [vmem:[%s253 + $0xd8] sm:$0xff]
      %v334 = vld [vmem:[%s253 + $0xe0] sm:$0xff]
      %v335 = vld [vmem:[%s253 + $0xe8] sm:$0xff]
      %v336 = vld [vmem:[%s253 + $0xf0] sm:$0xff]
      %v337 = vld [vmem:[%s253 + $0xf8] sm:$0xff]
      %v338 = vld [vmem:[%s1] sm:$0x1]
      %v340 = vlaneseq
      %v341 = vshrl.u32 %v340, 7
      %v342 = vsub.s32 0, %v341
      %v343 = vrot.slane %v338, %v342
      %v345 = vmul.f32 %v306, %v343
      %v346 = vmul.f32 %v307, %v343
      %v347 = vmul.f32 %v308, %v343
      %v348 = vmul.f32 %v309, %v343
      %v349 = vmul.f32 %v310, %v343
      %v350 = vmul.f32 %v311, %v343
      %v351 = vmul.f32 %v312, %v343
      %v352 = vmul.f32 %v313, %v343
      %v353 = vmul.f32 %v314, %v343
      %v354 = vmul.f32 %v315, %v343
      %v355 = vmul.f32 %v316, %v343
      %v356 = vmul.f32 %v317, %v343
      %v357 = vmul.f32 %v318, %v343
      %v358 = vmul.f32 %v319, %v343
      %v359 = vmul.f32 %v320, %v343
      %v360 = vmul.f32 %v321, %v343
      %v361 = vmul.f32 %v322, %v343
      %v362 = vmul.f32 %v323, %v343
      %v363 = vmul.f32 %v324, %v343
      %v364 = vmul.f32 %v325, %v343
      %v365 = vmul.f32 %v326, %v343
      %v366 = vmul.f32 %v327, %v343
      %v367 = vmul.f32 %v328, %v343
      %v368 = vmul.f32 %v329, %v343
      %v369 = vmul.f32 %v330, %v343
      %v370 = vmul.f32 %v331, %v343
      %v371 = vmul.f32 %v332, %v343
      %v372 = vmul.f32 %v333, %v343
      %v373 = vmul.f32 %v334, %v343
      %v374 = vmul.f32 %v335, %v343
      %v375 = vmul.f32 %v336, %v343
      %v376 = vmul.f32 %v337, %v343
      %v377 = vld [vmem:[%s2] sm:$0x1]
      %v379 = vlaneseq
      %v380 = vshrl.u32 %v379, 7
      %v381 = vsub.s32 0, %v380
      %v382 = vrot.slane %v377, %v381
      %v384 = vadd.f32 %v345, %v382
      %v385 = vadd.f32 %v346, %v382
      %v386 = vadd.f32 %v347, %v382
      %v387 = vadd.f32 %v348, %v382
      %v388 = vadd.f32 %v349, %v382
      %v389 = vadd.f32 %v350, %v382
      %v390 = vadd.f32 %v351, %v382
      %v391 = vadd.f32 %v352, %v382
      %v392 = vadd.f32 %v353, %v382
      %v393 = vadd.f32 %v354, %v382
      %v394 = vadd.f32 %v355, %v382
      %v395 = vadd.f32 %v356, %v382
      %v396 = vadd.f32 %v357, %v382
      %v397 = vadd.f32 %v358, %v382
      %v398 = vadd.f32 %v359, %v382
      %v399 = vadd.f32 %v360, %v382
      %v400 = vadd.f32 %v361, %v382
      %v401 = vadd.f32 %v362, %v382
      %v402 = vadd.f32 %v363, %v382
      %v403 = vadd.f32 %v364, %v382
      %v404 = vadd.f32 %v365, %v382
      %v405 = vadd.f32 %v366, %v382
      %v406 = vadd.f32 %v367, %v382
      %v407 = vadd.f32 %v368, %v382
      %v408 = vadd.f32 %v369, %v382
      %v409 = vadd.f32 %v370, %v382
      %v410 = vadd.f32 %v371, %v382
      %v411 = vadd.f32 %v372, %v382
      %v412 = vadd.f32 %v373, %v382
      %v413 = vadd.f32 %v374, %v382
      %v414 = vadd.f32 %v375, %v382
      %v415 = vadd.f32 %v376, %v382
      %v416 = vmax.f32 %v384, 0.0
      %v417 = vmax.f32 %v385, 0.0
      %v418 = vmax.f32 %v386, 0.0
      %v419 = vmax.f32 %v387, 0.0
      %v420 = vmax.f32 %v388, 0.0
      %v421 = vmax.f32 %v389, 0.0
      %v422 = vmax.f32 %v390, 0.0
      %v423 = vmax.f32 %v391, 0.0
      %v424 = vmax.f32 %v392, 0.0
      %v425 = vmax.f32 %v393, 0.0
      %v426 = vmax.f32 %v394, 0.0
      %v427 = vmax.f32 %v395, 0.0
      %v428 = vmax.f32 %v396, 0.0
      %v429 = vmax.f32 %v397, 0.0
      %v430 = vmax.f32 %v398, 0.0
      %v431 = vmax.f32 %v399, 0.0
      %v432 = vmax.f32 %v400, 0.0
      %v433 = vmax.f32 %v401, 0.0
      %v434 = vmax.f32 %v402, 0.0
      %v435 = vmax.f32 %v403, 0.0
      %v436 = vmax.f32 %v404, 0.0
      %v437 = vmax.f32 %v405, 0.0
      %v438 = vmax.f32 %v406, 0.0
      %v439 = vmax.f32 %v407, 0.0
      %v440 = vmax.f32 %v408, 0.0
      %v441 = vmax.f32 %v409, 0.0
      %v442 = vmax.f32 %v410, 0.0
      %v443 = vmax.f32 %v411, 0.0
      %v444 = vmax.f32 %v412, 0.0
      %v445 = vmax.f32 %v413, 0.0
      %v446 = vmax.f32 %v414, 0.0
      %v447 = vmax.f32 %v415, 0.0
      %s448 = scalar_lea.vmem [#allocation2], 32
      %449 = vst [vmem:[%s448 + $0x8] sm:$0xff] %v416
      %450 = vst [vmem:[%s448 + $0x10] sm:$0xff] %v417
      %451 = vst [vmem:[%s448 + $0x28] sm:$0xff] %v418
      %452 = vst [vmem:[%s448 + $0x30] sm:$0xff] %v419
      %453 = vst [vmem:[%s448 + $0x48] sm:$0xff] %v420
      %454 = vst [vmem:[%s448 + $0x50] sm:$0xff] %v421
      %455 = vst [vmem:[%s448 + $0x68] sm:$0xff] %v422
      %456 = vst [vmem:[%s448 + $0x70] sm:$0xff] %v423
      %457 = vst [vmem:[%s448 + $0x88] sm:$0xff] %v424
      %458 = vst [vmem:[%s448 + $0x90] sm:$0xff] %v425
      %459 = vst [vmem:[%s448 + $0xa8] sm:$0xff] %v426
      %460 = vst [vmem:[%s448 + $0xb0] sm:$0xff] %v427
      %461 = vst [vmem:[%s448 + $0xc8] sm:$0xff] %v428
      %462 = vst [vmem:[%s448 + $0xd0] sm:$0xff] %v429
      %463 = vst [vmem:[%s448 + $0xe8] sm:$0xff] %v430
      %464 = vst [vmem:[%s448 + $0xf0] sm:$0xff] %v431
      %465 = vst [vmem:[%s448 + $0x108] sm:$0xff] %v432
      %466 = vst [vmem:[%s448 + $0x110] sm:$0xff] %v433
      %467 = vst [vmem:[%s448 + $0x128] sm:$0xff] %v434
      %468 = vst [vmem:[%s448 + $0x130] sm:$0xff] %v435
      %469 = vst [vmem:[%s448 + $0x148] sm:$0xff] %v436
      %470 = vst [vmem:[%s448 + $0x150] sm:$0xff] %v437
      %471 = vst [vmem:[%s448 + $0x168] sm:$0xff] %v438
      %472 = vst [vmem:[%s448 + $0x170] sm:$0xff] %v439
      %473 = vst [vmem:[%s448 + $0x188] sm:$0xff] %v440
      %474 = vst [vmem:[%s448 + $0x190] sm:$0xff] %v441
      %475 = vst [vmem:[%s448 + $0x1a8] sm:$0xff] %v442
      %476 = vst [vmem:[%s448 + $0x1b0] sm:$0xff] %v443
      %477 = vst [vmem:[%s448 + $0x1c8] sm:$0xff] %v444
      %478 = vst [vmem:[%s448 + $0x1d0] sm:$0xff] %v445
      %479 = vst [vmem:[%s448 + $0x1e8] sm:$0xff] %v446
      %480 = vst [vmem:[%s448 + $0x1f0] sm:$0xff] %v447
      %v481 = vld [vmem:[#allocation2 + $0x7] sm:$0xff]
      %v482 = vld [vmem:[#allocation2 + $0xf] sm:$0xff]
      %v483 = vld [vmem:[#allocation2 + $0x27] sm:$0xff]
      %v484 = vld [vmem:[#allocation2 + $0x2f] sm:$0xff]
      %v485 = vld [vmem:[#allocation2 + $0x47] sm:$0xff]
      %v486 = vld [vmem:[#allocation2 + $0x4f] sm:$0xff]
      %v487 = vld [vmem:[#allocation2 + $0x67] sm:$0xff]
      %v488 = vld [vmem:[#allocation2 + $0x6f] sm:$0xff]
      %v489 = vld [vmem:[#allocation2 + $0x87] sm:$0xff]
      %v490 = vld [vmem:[#allocation2 + $0x8f] sm:$0xff]
      %v491 = vld [vmem:[#allocation2 + $0xa7] sm:$0xff]
      %v492 = vld [vmem:[#allocation2 + $0xaf] sm:$0xff]
      %v493 = vld [vmem:[#allocation2 + $0xc7] sm:$0xff]
      %v494 = vld [vmem:[#allocation2 + $0xcf] sm:$0xff]
      %v495 = vld [vmem:[#allocation2 + $0xe7] sm:$0xff]
      %v496 = vld [vmem:[#allocation2 + $0xef] sm:$0xff]
      %v497 = vld [vmem:[#allocation2 + $0x107] sm:$0xff]
      %v498 = vld [vmem:[#allocation2 + $0x10f] sm:$0xff]
      %v499 = vld [vmem:[#allocation2 + $0x127] sm:$0xff]
      %v500 = vld [vmem:[#allocation2 + $0x12f] sm:$0xff]
      %v501 = vld [vmem:[#allocation2 + $0x147] sm:$0xff]
      %v502 = vld [vmem:[#allocation2 + $0x14f] sm:$0xff]
      %v503 = vld [vmem:[#allocation2 + $0x167] sm:$0xff]
      %v504 = vld [vmem:[#allocation2 + $0x16f] sm:$0xff]
      %v505 = vld [vmem:[#allocation2 + $0x187] sm:$0xff]
      %v506 = vld [vmem:[#allocation2 + $0x18f] sm:$0xff]
      %v507 = vld [vmem:[#allocation2 + $0x1a7] sm:$0xff]
      %v508 = vld [vmem:[#allocation2 + $0x1af] sm:$0xff]
      %v509 = vld [vmem:[#allocation2 + $0x1c7] sm:$0xff]
      %v510 = vld [vmem:[#allocation2 + $0x1cf] sm:$0xff]
      %v511 = vld [vmem:[#allocation2 + $0x1e7] sm:$0xff]
      %v512 = vld [vmem:[#allocation2 + $0x1ef] sm:$0xff]
      %v513 = vld [vmem:[%s3] sm:$0xff]
      %v514 = vld [vmem:[%s3 + $0x8] sm:$0xff]
      %v515 = vld [vmem:[%s3 + $0x10] sm:$0xff]
      %v516 = vld [vmem:[%s3 + $0x18] sm:$0xff]
      %v517 = vld [vmem:[%s3 + $0x20] sm:$0xff]
      %v518 = vld [vmem:[%s3 + $0x28] sm:$0xff]
      %v519 = vld [vmem:[%s3 + $0x30] sm:$0xff]
      %v520 = vld [vmem:[%s3 + $0x38] sm:$0xff]
      %v521 = vld [vmem:[%s3 + $0x40] sm:$0xff]
      %v522 = vld [vmem:[%s3 + $0x48] sm:$0xff]
      %v523 = vld [vmem:[%s3 + $0x50] sm:$0xff]
      %v524 = vld [vmem:[%s3 + $0x58] sm:$0xff]
      %v525 = vld [vmem:[%s3 + $0x60] sm:$0xff]
      %v526 = vld [vmem:[%s3 + $0x68] sm:$0xff]
      %v527 = vld [vmem:[%s3 + $0x70] sm:$0xff]
      %v528 = vld [vmem:[%s3 + $0x78] sm:$0xff]
      %v529 = vld [vmem:[#allocation2 + $0x8] sm:$0xff]
      %v530 = vld [vmem:[#allocation2 + $0x10] sm:$0xff]
      %v531 = vld [vmem:[#allocation2 + $0x28] sm:$0xff]
      %v532 = vld [vmem:[#allocation2 + $0x30] sm:$0xff]
      %v533 = vld [vmem:[#allocation2 + $0x48] sm:$0xff]
      %v534 = vld [vmem:[#allocation2 + $0x50] sm:$0xff]
      %v535 = vld [vmem:[#allocation2 + $0x68] sm:$0xff]
      %v536 = vld [vmem:[#allocation2 + $0x70] sm:$0xff]
      %v537 = vld [vmem:[#allocation2 + $0x88] sm:$0xff]
      %v538 = vld [vmem:[#allocation2 + $0x90] sm:$0xff]
      %v539 = vld [vmem:[#allocation2 + $0xa8] sm:$0xff]
      %v540 = vld [vmem:[#allocation2 + $0xb0] sm:$0xff]
      %v541 = vld [vmem:[#allocation2 + $0xc8] sm:$0xff]
      %v542 = vld [vmem:[#allocation2 + $0xd0] sm:$0xff]
      %v543 = vld [vmem:[#allocation2 + $0xe8] sm:$0xff]
      %v544 = vld [vmem:[#allocation2 + $0xf0] sm:$0xff]
      %v545 = vld [vmem:[#allocation2 + $0x108] sm:$0xff]
      %v546 = vld [vmem:[#allocation2 + $0x110] sm:$0xff]
      %v547 = vld [vmem:[#allocation2 + $0x128] sm:$0xff]
      %v548 = vld [vmem:[#allocation2 + $0x130] sm:$0xff]
      %v549 = vld [vmem:[#allocation2 + $0x148] sm:$0xff]
      %v550 = vld [vmem:[#allocation2 + $0x150] sm:$0xff]
      %v551 = vld [vmem:[#allocation2 + $0x168] sm:$0xff]
      %v552 = vld [vmem:[#allocation2 + $0x170] sm:$0xff]
      %v553 = vld [vmem:[#allocation2 + $0x188] sm:$0xff]
      %v554 = vld [vmem:[#allocation2 + $0x190] sm:$0xff]
      %v555 = vld [vmem:[#allocation2 + $0x1a8] sm:$0xff]
      %v556 = vld [vmem:[#allocation2 + $0x1b0] sm:$0xff]
      %v557 = vld [vmem:[#allocation2 + $0x1c8] sm:$0xff]
      %v558 = vld [vmem:[#allocation2 + $0x1d0] sm:$0xff]
      %v559 = vld [vmem:[#allocation2 + $0x1e8] sm:$0xff]
      %v560 = vld [vmem:[#allocation2 + $0x1f0] sm:$0xff]
      %s561 = scalar_lea.vmem %s3, 128
      %v562 = vld [vmem:[%s561] sm:$0xff]
      %v563 = vld [vmem:[%s561 + $0x8] sm:$0xff]
      %v564 = vld [vmem:[%s561 + $0x10] sm:$0xff]
      %v565 = vld [vmem:[%s561 + $0x18] sm:$0xff]
      %v566 = vld [vmem:[%s561 + $0x20] sm:$0xff]
      %v567 = vld [vmem:[%s561 + $0x28] sm:$0xff]
      %v568 = vld [vmem:[%s561 + $0x30] sm:$0xff]
      %v569 = vld [vmem:[%s561 + $0x38] sm:$0xff]
      %v570 = vld [vmem:[%s561 + $0x40] sm:$0xff]
      %v571 = vld [vmem:[%s561 + $0x48] sm:$0xff]
      %v572 = vld [vmem:[%s561 + $0x50] sm:$0xff]
      %v573 = vld [vmem:[%s561 + $0x58] sm:$0xff]
      %v574 = vld [vmem:[%s561 + $0x60] sm:$0xff]
      %v575 = vld [vmem:[%s561 + $0x68] sm:$0xff]
      %v576 = vld [vmem:[%s561 + $0x70] sm:$0xff]
      %v577 = vld [vmem:[%s561 + $0x78] sm:$0xff]
      %578 = vmatprep.subr.mxu0 0.0
      %579 = vmatpush1.msra.mxu0 %v577
      %580 = vmatprep.subr.mxu0 0.0
      %581 = vmatpush1.msra.mxu0 %v576
      %582 = vmatprep.subr.mxu0 0.0
      %583 = vmatpush1.msra.mxu0 %v575
      %584 = vmatprep.subr.mxu0 0.0
      %585 = vmatpush1.msra.mxu0 %v574
      %586 = vmatprep.subr.mxu0 0.0
      %587 = vmatpush1.msra.mxu0 %v573
      %588 = vmatprep.subr.mxu0 0.0
      %589 = vmatpush1.msra.mxu0 %v572
      %590 = vmatprep.subr.mxu0 0.0
      %591 = vmatpush1.msra.mxu0 %v571
      %592 = vmatprep.subr.mxu0 0.0
      %593 = vmatpush1.msra.mxu0 %v570
      %594 = vmatprep.subr.mxu0 0.0
      %595 = vmatpush1.msra.mxu0 %v569
      %596 = vmatprep.subr.mxu0 0.0
      %597 = vmatpush1.msra.mxu0 %v568
      %598 = vmatprep.subr.mxu0 0.0
      %599 = vmatpush1.msra.mxu0 %v567
      %600 = vmatprep.subr.mxu0 0.0
      %601 = vmatpush1.msra.mxu0 %v566
      %602 = vmatprep.subr.mxu0 0.0
      %603 = vmatpush1.msra.mxu0 %v565
      %604 = vmatprep.subr.mxu0 0.0
      %605 = vmatpush1.msra.mxu0 %v564
      %606 = vmatprep.subr.mxu0 0.0
      %607 = vmatpush1.msra.mxu0 %v563
      %608 = vmatprep.subr.mxu0 0.0
      %609 = vmatpush1.msra.mxu0 %v562
      %610 = vmatprep.subr.mxu0 0.0
      %611 = vmatpush2.msra.mxu0 0.0
      %612 = vmatprep.subr.mxu0 0.0
      %613 = vmatpush2.msra.mxu0 0.0
      %614 = vmatprep.subr.mxu0 0.0
      %615 = vmatpush2.msra.mxu0 0.0
      %616 = vmatprep.subr.mxu0 0.0
      %617 = vmatpush2.msra.mxu0 0.0
      %618 = vmatprep.subr.mxu0 0.0
      %619 = vmatpush2.msra.mxu0 0.0
      %620 = vmatprep.subr.mxu0 0.0
      %621 = vmatpush2.msra.mxu0 0.0
      %622 = vmatprep.subr.mxu0 0.0
      %623 = vmatpush2.msra.mxu0 0.0
      %624 = vmatprep.subr.mxu0 0.0
      %625 = vmatpush2.msra.mxu0 0.0
      %626 = vmatprep.subr.mxu0 0.0
      %627 = vmatpush2.msra.mxu0 0.0
      %628 = vmatprep.subr.mxu0 0.0
      %629 = vmatpush2.msra.mxu0 0.0
      %630 = vmatprep.subr.mxu0 0.0
      %631 = vmatpush2.msra.mxu0 0.0
      %632 = vmatprep.subr.mxu0 0.0
      %633 = vmatpush2.msra.mxu0 0.0
      %634 = vmatprep.subr.mxu0 0.0
      %635 = vmatpush2.msra.mxu0 0.0
      %636 = vmatprep.subr.mxu0 0.0
      %637 = vmatpush2.msra.mxu0 0.0
      %638 = vmatprep.subr.mxu0 0.0
      %639 = vmatpush2.msra.mxu0 0.0
      %640 = vmatprep.subr.mxu0 0.0
      %641 = vmatpush2.msra.mxu0 0.0
      %642 = vmatprep.mubr.f32.mxu0 0.0
      %643 = vmatmul.mubr.f32.gmra.mxu0 %v529
      %v644 = vpop.f32.mrf.mxu0
      %v645 = vadd.f32 0.0, %v644
      %v646 = vpop.f32.mrf.mxu0
      %647 = vmatprep.mubr.f32.mxu0 0.0
      %648 = vmatmul.mubr.f32.gmra.mxu0 %v530
      %v649 = vpop.f32.mrf.mxu0
      %v650 = vadd.f32 0.0, %v649
      %v651 = vpop.f32.mrf.mxu0
      %652 = vmatprep.mubr.f32.mxu0 0.0
      %653 = vmatmul.mubr.f32.gmra.mxu0 %v531
      %v654 = vpop.f32.mrf.mxu0
      %v655 = vadd.f32 0.0, %v654
      %v656 = vpop.f32.mrf.mxu0
      %657 = vmatprep.mubr.f32.mxu0 0.0
      %658 = vmatmul.mubr.f32.gmra.mxu0 %v532
      %v659 = vpop.f32.mrf.mxu0
      %v660 = vadd.f32 0.0, %v659
      %v661 = vpop.f32.mrf.mxu0
      %662 = vmatprep.mubr.f32.mxu0 0.0
      %663 = vmatmul.mubr.f32.gmra.mxu0 %v533
      %v664 = vpop.f32.mrf.mxu0
      %v665 = vadd.f32 0.0, %v664
      %v666 = vpop.f32.mrf.mxu0
      %667 = vmatprep.mubr.f32.mxu0 0.0
      %668 = vmatmul.mubr.f32.gmra.mxu0 %v534
      %v669 = vpop.f32.mrf.mxu0
      %v670 = vadd.f32 0.0, %v669
      %v671 = vpop.f32.mrf.mxu0
      %672 = vmatprep.mubr.f32.mxu0 0.0
      %673 = vmatmul.mubr.f32.gmra.mxu0 %v535
      %v674 = vpop.f32.mrf.mxu0
      %v675 = vadd.f32 0.0, %v674
      %v676 = vpop.f32.mrf.mxu0
      %677 = vmatprep.mubr.f32.mxu0 0.0
      %678 = vmatmul.mubr.f32.gmra.mxu0 %v536
      %v679 = vpop.f32.mrf.mxu0
      %v680 = vadd.f32 0.0, %v679
      %v681 = vpop.f32.mrf.mxu0
      %682 = vmatprep.mubr.f32.mxu0 0.0
      %683 = vmatmul.mubr.f32.gmra.mxu0 %v537
      %v684 = vpop.f32.mrf.mxu0
      %v685 = vadd.f32 0.0, %v684
      %v686 = vpop.f32.mrf.mxu0
      %687 = vmatprep.mubr.f32.mxu0 0.0
      %688 = vmatmul.mubr.f32.gmra.mxu0 %v538
      %v689 = vpop.f32.mrf.mxu0
      %v690 = vadd.f32 0.0, %v689
      %v691 = vpop.f32.mrf.mxu0
      %692 = vmatprep.mubr.f32.mxu0 0.0
      %693 = vmatmul.mubr.f32.gmra.mxu0 %v539
      %v694 = vpop.f32.mrf.mxu0
      %v695 = vadd.f32 0.0, %v694
      %v696 = vpop.f32.mrf.mxu0
      %697 = vmatprep.mubr.f32.mxu0 0.0
      %698 = vmatmul.mubr.f32.gmra.mxu0 %v540
      %v699 = vpop.f32.mrf.mxu0
      %v700 = vadd.f32 0.0, %v699
      %v701 = vpop.f32.mrf.mxu0
      %702 = vmatprep.mubr.f32.mxu0 0.0
      %703 = vmatmul.mubr.f32.gmra.mxu0 %v541
      %v704 = vpop.f32.mrf.mxu0
      %v705 = vadd.f32 0.0, %v704
      %v706 = vpop.f32.mrf.mxu0
      %707 = vmatprep.mubr.f32.mxu0 0.0
      %708 = vmatmul.mubr.f32.gmra.mxu0 %v542
      %v709 = vpop.f32.mrf.mxu0
      %v710 = vadd.f32 0.0, %v709
      %v711 = vpop.f32.mrf.mxu0
      %712 = vmatprep.mubr.f32.mxu0 0.0
      %713 = vmatmul.mubr.f32.gmra.mxu0 %v543
      %v714 = vpop.f32.mrf.mxu0
      %v715 = vadd.f32 0.0, %v714
      %v716 = vpop.f32.mrf.mxu0
      %717 = vmatprep.mubr.f32.mxu0 0.0
      %718 = vmatmul.mubr.f32.gmra.mxu0 %v544
      %v719 = vpop.f32.mrf.mxu0
      %v720 = vadd.f32 0.0, %v719
      %v721 = vpop.f32.mrf.mxu0
      %722 = vmatprep.mubr.f32.mxu0 0.0
      %723 = vmatmul.mubr.f32.gmra.mxu0 %v545
      %v724 = vpop.f32.mrf.mxu0
      %v725 = vadd.f32 0.0, %v724
      %v726 = vpop.f32.mrf.mxu0
      %727 = vmatprep.mubr.f32.mxu0 0.0
      %728 = vmatmul.mubr.f32.gmra.mxu0 %v546
      %v729 = vpop.f32.mrf.mxu0
      %v730 = vadd.f32 0.0, %v729
      %v731 = vpop.f32.mrf.mxu0
      %732 = vmatprep.mubr.f32.mxu0 0.0
      %733 = vmatmul.mubr.f32.gmra.mxu0 %v547
      %v734 = vpop.f32.mrf.mxu0
      %v735 = vadd.f32 0.0, %v734
      %v736 = vpop.f32.mrf.mxu0
      %737 = vmatprep.mubr.f32.mxu0 0.0
      %738 = vmatmul.mubr.f32.gmra.mxu0 %v548
      %v739 = vpop.f32.mrf.mxu0
      %v740 = vadd.f32 0.0, %v739
      %v741 = vpop.f32.mrf.mxu0
      %742 = vmatprep.mubr.f32.mxu0 0.0
      %743 = vmatmul.mubr.f32.gmra.mxu0 %v549
      %v744 = vpop.f32.mrf.mxu0
      %v745 = vadd.f32 0.0, %v744
      %v746 = vpop.f32.mrf.mxu0
      %747 = vmatprep.mubr.f32.mxu0 0.0
      %748 = vmatmul.mubr.f32.gmra.mxu0 %v550
      %v749 = vpop.f32.mrf.mxu0
      %v750 = vadd.f32 0.0, %v749
      %v751 = vpop.f32.mrf.mxu0
      %752 = vmatprep.mubr.f32.mxu0 0.0
      %753 = vmatmul.mubr.f32.gmra.mxu0 %v551
      %v754 = vpop.f32.mrf.mxu0
      %v755 = vadd.f32 0.0, %v754
      %v756 = vpop.f32.mrf.mxu0
      %757 = vmatprep.mubr.f32.mxu0 0.0
      %758 = vmatmul.mubr.f32.gmra.mxu0 %v552
      %v759 = vpop.f32.mrf.mxu0
      %v760 = vadd.f32 0.0, %v759
      %v761 = vpop.f32.mrf.mxu0
      %762 = vmatprep.mubr.f32.mxu0 0.0
      %763 = vmatmul.mubr.f32.gmra.mxu0 %v553
      %v764 = vpop.f32.mrf.mxu0
      %v765 = vadd.f32 0.0, %v764
      %v766 = vpop.f32.mrf.mxu0
      %767 = vmatprep.mubr.f32.mxu0 0.0
      %768 = vmatmul.mubr.f32.gmra.mxu0 %v554
      %v769 = vpop.f32.mrf.mxu0
      %v770 = vadd.f32 0.0, %v769
      %v771 = vpop.f32.mrf.mxu0
      %772 = vmatprep.mubr.f32.mxu0 0.0
      %773 = vmatmul.mubr.f32.gmra.mxu0 %v555
      %v774 = vpop.f32.mrf.mxu0
      %v775 = vadd.f32 0.0, %v774
      %v776 = vpop.f32.mrf.mxu0
      %777 = vmatprep.mubr.f32.mxu0 0.0
      %778 = vmatmul.mubr.f32.gmra.mxu0 %v556
      %v779 = vpop.f32.mrf.mxu0
      %v780 = vadd.f32 0.0, %v779
      %v781 = vpop.f32.mrf.mxu0
      %782 = vmatprep.mubr.f32.mxu0 0.0
      %783 = vmatmul.mubr.f32.gmra.mxu0 %v557
      %v784 = vpop.f32.mrf.mxu0
      %v785 = vadd.f32 0.0, %v784
      %v786 = vpop.f32.mrf.mxu0
      %787 = vmatprep.mubr.f32.mxu0 0.0
      %788 = vmatmul.mubr.f32.gmra.mxu0 %v558
      %v789 = vpop.f32.mrf.mxu0
      %v790 = vadd.f32 0.0, %v789
      %v791 = vpop.f32.mrf.mxu0
      %792 = vmatprep.mubr.f32.mxu0 0.0
      %793 = vmatmul.mubr.f32.gmra.mxu0 %v559
      %v794 = vpop.f32.mrf.mxu0
      %v795 = vadd.f32 0.0, %v794
      %v796 = vpop.f32.mrf.mxu0
      %797 = vmatprep.mubr.f32.mxu0 0.0
      %798 = vmatmul.mubr.f32.gmra.mxu0 %v560
      %v799 = vpop.f32.mrf.mxu0
      %v800 = vadd.f32 0.0, %v799
      %v801 = vpop.f32.mrf.mxu0
      %802 = vdwg.mxu0
      %803 = vmatprep.subr.mxu0 0.0
      %804 = vmatpush1.msra.mxu0 %v528
      %805 = vmatprep.subr.mxu0 0.0
      %806 = vmatpush1.msra.mxu0 %v527
      %807 = vmatprep.subr.mxu0 0.0
      %808 = vmatpush1.msra.mxu0 %v526
      %809 = vmatprep.subr.mxu0 0.0
      %810 = vmatpush1.msra.mxu0 %v525
      %811 = vmatprep.subr.mxu0 0.0
      %812 = vmatpush1.msra.mxu0 %v524
      %813 = vmatprep.subr.mxu0 0.0
      %814 = vmatpush1.msra.mxu0 %v523
      %815 = vmatprep.subr.mxu0 0.0
      %816 = vmatpush1.msra.mxu0 %v522
      %817 = vmatprep.subr.mxu0 0.0
      %818 = vmatpush1.msra.mxu0 %v521
      %819 = vmatprep.subr.mxu0 0.0
      %820 = vmatpush1.msra.mxu0 %v520
      %821 = vmatprep.subr.mxu0 0.0
      %822 = vmatpush1.msra.mxu0 %v519
      %823 = vmatprep.subr.mxu0 0.0
      %824 = vmatpush1.msra.mxu0 %v518
      %825 = vmatprep.subr.mxu0 0.0
      %826 = vmatpush1.msra.mxu0 %v517
      %827 = vmatprep.subr.mxu0 0.0
      %828 = vmatpush1.msra.mxu0 %v516
      %829 = vmatprep.subr.mxu0 0.0
      %830 = vmatpush1.msra.mxu0 %v515
      %831 = vmatprep.subr.mxu0 0.0
      %832 = vmatpush1.msra.mxu0 %v514
      %833 = vmatprep.subr.mxu0 0.0
      %834 = vmatpush1.msra.mxu0 %v513
      %835 = vmatprep.subr.mxu0 0.0
      %836 = vmatpush2.msra.mxu0 0.0
      %837 = vmatprep.subr.mxu0 0.0
      %838 = vmatpush2.msra.mxu0 0.0
      %839 = vmatprep.subr.mxu0 0.0
      %840 = vmatpush2.msra.mxu0 0.0
      %841 = vmatprep.subr.mxu0 0.0
      %842 = vmatpush2.msra.mxu0 0.0
      %843 = vmatprep.subr.mxu0 0.0
      %844 = vmatpush2.msra.mxu0 0.0
      %845 = vmatprep.subr.mxu0 0.0
      %846 = vmatpush2.msra.mxu0 0.0
      %847 = vmatprep.subr.mxu0 0.0
      %848 = vmatpush2.msra.mxu0 0.0
      %849 = vmatprep.subr.mxu0 0.0
      %850 = vmatpush2.msra.mxu0 0.0
      %851 = vmatprep.subr.mxu0 0.0
      %852 = vmatpush2.msra.mxu0 0.0
      %853 = vmatprep.subr.mxu0 0.0
      %854 = vmatpush2.msra.mxu0 0.0
      %855 = vmatprep.subr.mxu0 0.0
      %856 = vmatpush2.msra.mxu0 0.0
      %857 = vmatprep.subr.mxu0 0.0
      %858 = vmatpush2.msra.mxu0 0.0
      %859 = vmatprep.subr.mxu0 0.0
      %860 = vmatpush2.msra.mxu0 0.0
      %861 = vmatprep.subr.mxu0 0.0
      %862 = vmatpush2.msra.mxu0 0.0
      %863 = vmatprep.subr.mxu0 0.0
      %864 = vmatpush2.msra.mxu0 0.0
      %865 = vmatprep.subr.mxu0 0.0
      %866 = vmatpush2.msra.mxu0 0.0
      %867 = vmatprep.mubr.f32.mxu0 0.0
      %868 = vmatmul.mubr.f32.gmra.mxu0 %v481
      %v869 = vpop.f32.mrf.mxu0
      %v870 = vadd.f32 %v645, %v869
      %v871 = vpop.f32.mrf.mxu0
      %872 = vmatprep.mubr.f32.mxu0 0.0
      %873 = vmatmul.mubr.f32.gmra.mxu0 %v482
      %v874 = vpop.f32.mrf.mxu0
      %v875 = vadd.f32 %v650, %v874
      %v876 = vpop.f32.mrf.mxu0
      %877 = vmatprep.mubr.f32.mxu0 0.0
      %878 = vmatmul.mubr.f32.gmra.mxu0 %v483
      %v879 = vpop.f32.mrf.mxu0
      %v880 = vadd.f32 %v655, %v879
      %v881 = vpop.f32.mrf.mxu0
      %882 = vmatprep.mubr.f32.mxu0 0.0
      %883 = vmatmul.mubr.f32.gmra.mxu0 %v484
      %v884 = vpop.f32.mrf.mxu0
      %v885 = vadd.f32 %v660, %v884
      %v886 = vpop.f32.mrf.mxu0
      %887 = vmatprep.mubr.f32.mxu0 0.0
      %888 = vmatmul.mubr.f32.gmra.mxu0 %v485
      %v889 = vpop.f32.mrf.mxu0
      %v890 = vadd.f32 %v665, %v889
      %v891 = vpop.f32.mrf.mxu0
      %892 = vmatprep.mubr.f32.mxu0 0.0
      %893 = vmatmul.mubr.f32.gmra.mxu0 %v486
      %v894 = vpop.f32.mrf.mxu0
      %v895 = vadd.f32 %v670, %v894
      %v896 = vpop.f32.mrf.mxu0
      %897 = vmatprep.mubr.f32.mxu0 0.0
      %898 = vmatmul.mubr.f32.gmra.mxu0 %v487
      %v899 = vpop.f32.mrf.mxu0
      %v900 = vadd.f32 %v675, %v899
      %v901 = vpop.f32.mrf.mxu0
      %902 = vmatprep.mubr.f32.mxu0 0.0
      %903 = vmatmul.mubr.f32.gmra.mxu0 %v488
      %v904 = vpop.f32.mrf.mxu0
      %v905 = vadd.f32 %v680, %v904
      %v906 = vpop.f32.mrf.mxu0
      %907 = vmatprep.mubr.f32.mxu0 0.0
      %908 = vmatmul.mubr.f32.gmra.mxu0 %v489
      %v909 = vpop.f32.mrf.mxu0
      %v910 = vadd.f32 %v685, %v909
      %v911 = vpop.f32.mrf.mxu0
      %912 = vmatprep.mubr.f32.mxu0 0.0
      %913 = vmatmul.mubr.f32.gmra.mxu0 %v490
      %v914 = vpop.f32.mrf.mxu0
      %v915 = vadd.f32 %v690, %v914
      %v916 = vpop.f32.mrf.mxu0
      %917 = vmatprep.mubr.f32.mxu0 0.0
      %918 = vmatmul.mubr.f32.gmra.mxu0 %v491
      %v919 = vpop.f32.mrf.mxu0
      %v920 = vadd.f32 %v695, %v919
      %v921 = vpop.f32.mrf.mxu0
      %922 = vmatprep.mubr.f32.mxu0 0.0
      %923 = vmatmul.mubr.f32.gmra.mxu0 %v492
      %v924 = vpop.f32.mrf.mxu0
      %v925 = vadd.f32 %v700, %v924
      %v926 = vpop.f32.mrf.mxu0
      %927 = vmatprep.mubr.f32.mxu0 0.0
      %928 = vmatmul.mubr.f32.gmra.mxu0 %v493
      %v929 = vpop.f32.mrf.mxu0
      %v930 = vadd.f32 %v705, %v929
      %v931 = vpop.f32.mrf.mxu0
      %932 = vmatprep.mubr.f32.mxu0 0.0
      %933 = vmatmul.mubr.f32.gmra.mxu0 %v494
      %v934 = vpop.f32.mrf.mxu0
      %v935 = vadd.f32 %v710, %v934
      %v936 = vpop.f32.mrf.mxu0
      %937 = vmatprep.mubr.f32.mxu0 0.0
      %938 = vmatmul.mubr.f32.gmra.mxu0 %v495
      %v939 = vpop.f32.mrf.mxu0
      %v940 = vadd.f32 %v715, %v939
      %v941 = vpop.f32.mrf.mxu0
      %942 = vmatprep.mubr.f32.mxu0 0.0
      %943 = vmatmul.mubr.f32.gmra.mxu0 %v496
      %v944 = vpop.f32.mrf.mxu0
      %v945 = vadd.f32 %v720, %v944
      %v946 = vpop.f32.mrf.mxu0
      %947 = vmatprep.mubr.f32.mxu0 0.0
      %948 = vmatmul.mubr.f32.gmra.mxu0 %v497
      %v949 = vpop.f32.mrf.mxu0
      %v950 = vadd.f32 %v725, %v949
      %v951 = vpop.f32.mrf.mxu0
      %952 = vmatprep.mubr.f32.mxu0 0.0
      %953 = vmatmul.mubr.f32.gmra.mxu0 %v498
      %v954 = vpop.f32.mrf.mxu0
      %v955 = vadd.f32 %v730, %v954
      %v956 = vpop.f32.mrf.mxu0
      %957 = vmatprep.mubr.f32.mxu0 0.0
      %958 = vmatmul.mubr.f32.gmra.mxu0 %v499
      %v959 = vpop.f32.mrf.mxu0
      %v960 = vadd.f32 %v735, %v959
      %v961 = vpop.f32.mrf.mxu0
      %962 = vmatprep.mubr.f32.mxu0 0.0
      %963 = vmatmul.mubr.f32.gmra.mxu0 %v500
      %v964 = vpop.f32.mrf.mxu0
      %v965 = vadd.f32 %v740, %v964
      %v966 = vpop.f32.mrf.mxu0
      %967 = vmatprep.mubr.f32.mxu0 0.0
      %968 = vmatmul.mubr.f32.gmra.mxu0 %v501
      %v969 = vpop.f32.mrf.mxu0
      %v970 = vadd.f32 %v745, %v969
      %v971 = vpop.f32.mrf.mxu0
      %972 = vmatprep.mubr.f32.mxu0 0.0
      %973 = vmatmul.mubr.f32.gmra.mxu0 %v502
      %v974 = vpop.f32.mrf.mxu0
      %v975 = vadd.f32 %v750, %v974
      %v976 = vpop.f32.mrf.mxu0
      %977 = vmatprep.mubr.f32.mxu0 0.0
      %978 = vmatmul.mubr.f32.gmra.mxu0 %v503
      %v979 = vpop.f32.mrf.mxu0
      %v980 = vadd.f32 %v755, %v979
      %v981 = vpop.f32.mrf.mxu0
      %982 = vmatprep.mubr.f32.mxu0 0.0
      %983 = vmatmul.mubr.f32.gmra.mxu0 %v504
      %v984 = vpop.f32.mrf.mxu0
      %v985 = vadd.f32 %v760, %v984
      %v986 = vpop.f32.mrf.mxu0
      %987 = vmatprep.mubr.f32.mxu0 0.0
      %988 = vmatmul.mubr.f32.gmra.mxu0 %v505
      %v989 = vpop.f32.mrf.mxu0
      %v990 = vadd.f32 %v765, %v989
      %v991 = vpop.f32.mrf.mxu0
      %992 = vmatprep.mubr.f32.mxu0 0.0
      %993 = vmatmul.mubr.f32.gmra.mxu0 %v506
      %v994 = vpop.f32.mrf.mxu0
      %v995 = vadd.f32 %v770, %v994
      %v996 = vpop.f32.mrf.mxu0
      %997 = vmatprep.mubr.f32.mxu0 0.0
      %998 = vmatmul.mubr.f32.gmra.mxu0 %v507
      %v999 = vpop.f32.mrf.mxu0
      %v1000 = vadd.f32 %v775, %v999
      %v1001 = vpop.f32.mrf.mxu0
      %1002 = vmatprep.mubr.f32.mxu0 0.0
      %1003 = vmatmul.mubr.f32.gmra.mxu0 %v508
      %v1004 = vpop.f32.mrf.mxu0
      %v1005 = vadd.f32 %v780, %v1004
      %v1006 = vpop.f32.mrf.mxu0
      %1007 = vmatprep.mubr.f32.mxu0 0.0
      %1008 = vmatmul.mubr.f32.gmra.mxu0 %v509
      %v1009 = vpop.f32.mrf.mxu0
      %v1010 = vadd.f32 %v785, %v1009
      %v1011 = vpop.f32.mrf.mxu0
      %1012 = vmatprep.mubr.f32.mxu0 0.0
      %1013 = vmatmul.mubr.f32.gmra.mxu0 %v510
      %v1014 = vpop.f32.mrf.mxu0
      %v1015 = vadd.f32 %v790, %v1014
      %v1016 = vpop.f32.mrf.mxu0
      %1017 = vmatprep.mubr.f32.mxu0 0.0
      %1018 = vmatmul.mubr.f32.gmra.mxu0 %v511
      %v1019 = vpop.f32.mrf.mxu0
      %v1020 = vadd.f32 %v795, %v1019
      %v1021 = vpop.f32.mrf.mxu0
      %1022 = vmatprep.mubr.f32.mxu0 0.0
      %1023 = vmatmul.mubr.f32.gmra.mxu0 %v512
      %v1024 = vpop.f32.mrf.mxu0
      %v1025 = vadd.f32 %v800, %v1024
      %v1026 = vpop.f32.mrf.mxu0
      %1027 = vdwg.mxu0
      %v1028 = vld [vmem:[#allocation2 + $0x9] sm:$0xff]
      %v1029 = vld [vmem:[#allocation2 + $0x11] sm:$0xff]
      %v1030 = vld [vmem:[#allocation2 + $0x29] sm:$0xff]
      %v1031 = vld [vmem:[#allocation2 + $0x31] sm:$0xff]
      %v1032 = vld [vmem:[#allocation2 + $0x49] sm:$0xff]
      %v1033 = vld [vmem:[#allocation2 + $0x51] sm:$0xff]
      %v1034 = vld [vmem:[#allocation2 + $0x69] sm:$0xff]
      %v1035 = vld [vmem:[#allocation2 + $0x71] sm:$0xff]
      %v1036 = vld [vmem:[#allocation2 + $0x89] sm:$0xff]
      %v1037 = vld [vmem:[#allocation2 + $0x91] sm:$0xff]
      %v1038 = vld [vmem:[#allocation2 + $0xa9] sm:$0xff]
      %v1039 = vld [vmem:[#allocation2 + $0xb1] sm:$0xff]
      %v1040 = vld [vmem:[#allocation2 + $0xc9] sm:$0xff]
      %v1041 = vld [vmem:[#allocation2 + $0xd1] sm:$0xff]
      %v1042 = vld [vmem:[#allocation2 + $0xe9] sm:$0xff]
      %v1043 = vld [vmem:[#allocation2 + $0xf1] sm:$0xff]
      %v1044 = vld [vmem:[#allocation2 + $0x109] sm:$0xff]
      %v1045 = vld [vmem:[#allocation2 + $0x111] sm:$0xff]
      %v1046 = vld [vmem:[#allocation2 + $0x129] sm:$0xff]
      %v1047 = vld [vmem:[#allocation2 + $0x131] sm:$0xff]
      %v1048 = vld [vmem:[#allocation2 + $0x149] sm:$0xff]
      %v1049 = vld [vmem:[#allocation2 + $0x151] sm:$0xff]
      %v1050 = vld [vmem:[#allocation2 + $0x169] sm:$0xff]
      %v1051 = vld [vmem:[#allocation2 + $0x171] sm:$0xff]
      %v1052 = vld [vmem:[#allocation2 + $0x189] sm:$0xff]
      %v1053 = vld [vmem:[#allocation2 + $0x191] sm:$0xff]
      %v1054 = vld [vmem:[#allocation2 + $0x1a9] sm:$0xff]
      %v1055 = vld [vmem:[#allocation2 + $0x1b1] sm:$0xff]
      %v1056 = vld [vmem:[#allocation2 + $0x1c9] sm:$0xff]
      %v1057 = vld [vmem:[#allocation2 + $0x1d1] sm:$0xff]
      %v1058 = vld [vmem:[#allocation2 + $0x1e9] sm:$0xff]
      %v1059 = vld [vmem:[#allocation2 + $0x1f1] sm:$0xff]
      %s1060 = scalar_lea.vmem %s3, 256
      %v1061 = vld [vmem:[%s1060] sm:$0xff]
      %v1062 = vld [vmem:[%s1060 + $0x8] sm:$0xff]
      %v1063 = vld [vmem:[%s1060 + $0x10] sm:$0xff]
      %v1064 = vld [vmem:[%s1060 + $0x18] sm:$0xff]
      %v1065 = vld [vmem:[%s1060 + $0x20] sm:$0xff]
      %v1066 = vld [vmem:[%s1060 + $0x28] sm:$0xff]
      %v1067 = vld [vmem:[%s1060 + $0x30] sm:$0xff]
      %v1068 = vld [vmem:[%s1060 + $0x38] sm:$0xff]
      %v1069 = vld [vmem:[%s1060 + $0x40] sm:$0xff]
      %v1070 = vld [vmem:[%s1060 + $0x48] sm:$0xff]
      %v1071 = vld [vmem:[%s1060 + $0x50] sm:$0xff]
      %v1072 = vld [vmem:[%s1060 + $0x58] sm:$0xff]
      %v1073 = vld [vmem:[%s1060 + $0x60] sm:$0xff]
      %v1074 = vld [vmem:[%s1060 + $0x68] sm:$0xff]
      %v1075 = vld [vmem:[%s1060 + $0x70] sm:$0xff]
      %v1076 = vld [vmem:[%s1060 + $0x78] sm:$0xff]
      %1077 = vmatprep.subr.mxu0 0.0
      %1078 = vmatpush1.msra.mxu0 %v1076
      %1079 = vmatprep.subr.mxu0 0.0
      %1080 = vmatpush1.msra.mxu0 %v1075
      %1081 = vmatprep.subr.mxu0 0.0
      %1082 = vmatpush1.msra.mxu0 %v1074
      %1083 = vmatprep.subr.mxu0 0.0
      %1084 = vmatpush1.msra.mxu0 %v1073
      %1085 = vmatprep.subr.mxu0 0.0
      %1086 = vmatpush1.msra.mxu0 %v1072
      %1087 = vmatprep.subr.mxu0 0.0
      %1088 = vmatpush1.msra.mxu0 %v1071
      %1089 = vmatprep.subr.mxu0 0.0
      %1090 = vmatpush1.msra.mxu0 %v1070
      %1091 = vmatprep.subr.mxu0 0.0
      %1092 = vmatpush1.msra.mxu0 %v1069
      %1093 = vmatprep.subr.mxu0 0.0
      %1094 = vmatpush1.msra.mxu0 %v1068
      %1095 = vmatprep.subr.mxu0 0.0
      %1096 = vmatpush1.msra.mxu0 %v1067
      %1097 = vmatprep.subr.mxu0 0.0
      %1098 = vmatpush1.msra.mxu0 %v1066
      %1099 = vmatprep.subr.mxu0 0.0
      %1100 = vmatpush1.msra.mxu0 %v1065
      %1101 = vmatprep.subr.mxu0 0.0
      %1102 = vmatpush1.msra.mxu0 %v1064
      %1103 = vmatprep.subr.mxu0 0.0
      %1104 = vmatpush1.msra.mxu0 %v1063
      %1105 = vmatprep.subr.mxu0 0.0
      %1106 = vmatpush1.msra.mxu0 %v1062
      %1107 = vmatprep.subr.mxu0 0.0
      %1108 = vmatpush1.msra.mxu0 %v1061
      %1109 = vmatprep.subr.mxu0 0.0
      %1110 = vmatpush2.msra.mxu0 0.0
      %1111 = vmatprep.subr.mxu0 0.0
      %1112 = vmatpush2.msra.mxu0 0.0
      %1113 = vmatprep.subr.mxu0 0.0
      %1114 = vmatpush2.msra.mxu0 0.0
      %1115 = vmatprep.subr.mxu0 0.0
      %1116 = vmatpush2.msra.mxu0 0.0
      %1117 = vmatprep.subr.mxu0 0.0
      %1118 = vmatpush2.msra.mxu0 0.0
      %1119 = vmatprep.subr.mxu0 0.0
      %1120 = vmatpush2.msra.mxu0 0.0
      %1121 = vmatprep.subr.mxu0 0.0
      %1122 = vmatpush2.msra.mxu0 0.0
      %1123 = vmatprep.subr.mxu0 0.0
      %1124 = vmatpush2.msra.mxu0 0.0
      %1125 = vmatprep.subr.mxu0 0.0
      %1126 = vmatpush2.msra.mxu0 0.0
      %1127 = vmatprep.subr.mxu0 0.0
      %1128 = vmatpush2.msra.mxu0 0.0
      %1129 = vmatprep.subr.mxu0 0.0
      %1130 = vmatpush2.msra.mxu0 0.0
      %1131 = vmatprep.subr.mxu0 0.0
      %1132 = vmatpush2.msra.mxu0 0.0
      %1133 = vmatprep.subr.mxu0 0.0
      %1134 = vmatpush2.msra.mxu0 0.0
      %1135 = vmatprep.subr.mxu0 0.0
      %1136 = vmatpush2.msra.mxu0 0.0
      %1137 = vmatprep.subr.mxu0 0.0
      %1138 = vmatpush2.msra.mxu0 0.0
      %1139 = vmatprep.subr.mxu0 0.0
      %1140 = vmatpush2.msra.mxu0 0.0
      %1141 = vmatprep.mubr.f32.mxu0 0.0
      %1142 = vmatmul.mubr.f32.gmra.mxu0 %v1028
      %v1143 = vpop.f32.mrf.mxu0
      %v1144 = vadd.f32 0.0, %v1143
      %v1145 = vpop.f32.mrf.mxu0
      %1146 = vmatprep.mubr.f32.mxu0 0.0
      %1147 = vmatmul.mubr.f32.gmra.mxu0 %v1029
      %v1148 = vpop.f32.mrf.mxu0
      %v1149 = vadd.f32 0.0, %v1148
      %v1150 = vpop.f32.mrf.mxu0
      %1151 = vmatprep.mubr.f32.mxu0 0.0
      %1152 = vmatmul.mubr.f32.gmra.mxu0 %v1030
      %v1153 = vpop.f32.mrf.mxu0
      %v1154 = vadd.f32 0.0, %v1153
      %v1155 = vpop.f32.mrf.mxu0
      %1156 = vmatprep.mubr.f32.mxu0 0.0
      %1157 = vmatmul.mubr.f32.gmra.mxu0 %v1031
      %v1158 = vpop.f32.mrf.mxu0
      %v1159 = vadd.f32 0.0, %v1158
      %v1160 = vpop.f32.mrf.mxu0
      %1161 = vmatprep.mubr.f32.mxu0 0.0
      %1162 = vmatmul.mubr.f32.gmra.mxu0 %v1032
      %v1163 = vpop.f32.mrf.mxu0
      %v1164 = vadd.f32 0.0, %v1163
      %v1165 = vpop.f32.mrf.mxu0
      %1166 = vmatprep.mubr.f32.mxu0 0.0
      %1167 = vmatmul.mubr.f32.gmra.mxu0 %v1033
      %v1168 = vpop.f32.mrf.mxu0
      %v1169 = vadd.f32 0.0, %v1168
      %v1170 = vpop.f32.mrf.mxu0
      %1171 = vmatprep.mubr.f32.mxu0 0.0
      %1172 = vmatmul.mubr.f32.gmra.mxu0 %v1034
      %v1173 = vpop.f32.mrf.mxu0
      %v1174 = vadd.f32 0.0, %v1173
      %v1175 = vpop.f32.mrf.mxu0
      %1176 = vmatprep.mubr.f32.mxu0 0.0
      %1177 = vmatmul.mubr.f32.gmra.mxu0 %v1035
      %v1178 = vpop.f32.mrf.mxu0
      %v1179 = vadd.f32 0.0, %v1178
      %v1180 = vpop.f32.mrf.mxu0
      %1181 = vmatprep.mubr.f32.mxu0 0.0
      %1182 = vmatmul.mubr.f32.gmra.mxu0 %v1036
      %v1183 = vpop.f32.mrf.mxu0
      %v1184 = vadd.f32 0.0, %v1183
      %v1185 = vpop.f32.mrf.mxu0
      %1186 = vmatprep.mubr.f32.mxu0 0.0
      %1187 = vmatmul.mubr.f32.gmra.mxu0 %v1037
      %v1188 = vpop.f32.mrf.mxu0
      %v1189 = vadd.f32 0.0, %v1188
      %v1190 = vpop.f32.mrf.mxu0
      %1191 = vmatprep.mubr.f32.mxu0 0.0
      %1192 = vmatmul.mubr.f32.gmra.mxu0 %v1038
      %v1193 = vpop.f32.mrf.mxu0
      %v1194 = vadd.f32 0.0, %v1193
      %v1195 = vpop.f32.mrf.mxu0
      %1196 = vmatprep.mubr.f32.mxu0 0.0
      %1197 = vmatmul.mubr.f32.gmra.mxu0 %v1039
      %v1198 = vpop.f32.mrf.mxu0
      %v1199 = vadd.f32 0.0, %v1198
      %v1200 = vpop.f32.mrf.mxu0
      %1201 = vmatprep.mubr.f32.mxu0 0.0
      %1202 = vmatmul.mubr.f32.gmra.mxu0 %v1040
      %v1203 = vpop.f32.mrf.mxu0
      %v1204 = vadd.f32 0.0, %v1203
      %v1205 = vpop.f32.mrf.mxu0
      %1206 = vmatprep.mubr.f32.mxu0 0.0
      %1207 = vmatmul.mubr.f32.gmra.mxu0 %v1041
      %v1208 = vpop.f32.mrf.mxu0
      %v1209 = vadd.f32 0.0, %v1208
      %v1210 = vpop.f32.mrf.mxu0
      %1211 = vmatprep.mubr.f32.mxu0 0.0
      %1212 = vmatmul.mubr.f32.gmra.mxu0 %v1042
      %v1213 = vpop.f32.mrf.mxu0
      %v1214 = vadd.f32 0.0, %v1213
      %v1215 = vpop.f32.mrf.mxu0
      %1216 = vmatprep.mubr.f32.mxu0 0.0
      %1217 = vmatmul.mubr.f32.gmra.mxu0 %v1043
      %v1218 = vpop.f32.mrf.mxu0
      %v1219 = vadd.f32 0.0, %v1218
      %v1220 = vpop.f32.mrf.mxu0
      %1221 = vmatprep.mubr.f32.mxu0 0.0
      %1222 = vmatmul.mubr.f32.gmra.mxu0 %v1044
      %v1223 = vpop.f32.mrf.mxu0
      %v1224 = vadd.f32 0.0, %v1223
      %v1225 = vpop.f32.mrf.mxu0
      %1226 = vmatprep.mubr.f32.mxu0 0.0
      %1227 = vmatmul.mubr.f32.gmra.mxu0 %v1045
      %v1228 = vpop.f32.mrf.mxu0
      %v1229 = vadd.f32 0.0, %v1228
      %v1230 = vpop.f32.mrf.mxu0
      %1231 = vmatprep.mubr.f32.mxu0 0.0
      %1232 = vmatmul.mubr.f32.gmra.mxu0 %v1046
      %v1233 = vpop.f32.mrf.mxu0
      %v1234 = vadd.f32 0.0, %v1233
      %v1235 = vpop.f32.mrf.mxu0
      %1236 = vmatprep.mubr.f32.mxu0 0.0
      %1237 = vmatmul.mubr.f32.gmra.mxu0 %v1047
      %v1238 = vpop.f32.mrf.mxu0
      %v1239 = vadd.f32 0.0, %v1238
      %v1240 = vpop.f32.mrf.mxu0
      %1241 = vmatprep.mubr.f32.mxu0 0.0
      %1242 = vmatmul.mubr.f32.gmra.mxu0 %v1048
      %v1243 = vpop.f32.mrf.mxu0
      %v1244 = vadd.f32 0.0, %v1243
      %v1245 = vpop.f32.mrf.mxu0
      %1246 = vmatprep.mubr.f32.mxu0 0.0
      %1247 = vmatmul.mubr.f32.gmra.mxu0 %v1049
      %v1248 = vpop.f32.mrf.mxu0
      %v1249 = vadd.f32 0.0, %v1248
      %v1250 = vpop.f32.mrf.mxu0
      %1251 = vmatprep.mubr.f32.mxu0 0.0
      %1252 = vmatmul.mubr.f32.gmra.mxu0 %v1050
      %v1253 = vpop.f32.mrf.mxu0
      %v1254 = vadd.f32 0.0, %v1253
      %v1255 = vpop.f32.mrf.mxu0
      %1256 = vmatprep.mubr.f32.mxu0 0.0
      %1257 = vmatmul.mubr.f32.gmra.mxu0 %v1051
      %v1258 = vpop.f32.mrf.mxu0
      %v1259 = vadd.f32 0.0, %v1258
      %v1260 = vpop.f32.mrf.mxu0
      %1261 = vmatprep.mubr.f32.mxu0 0.0
      %1262 = vmatmul.mubr.f32.gmra.mxu0 %v1052
      %v1263 = vpop.f32.mrf.mxu0
      %v1264 = vadd.f32 0.0, %v1263
      %v1265 = vpop.f32.mrf.mxu0
      %1266 = vmatprep.mubr.f32.mxu0 0.0
      %1267 = vmatmul.mubr.f32.gmra.mxu0 %v1053
      %v1268 = vpop.f32.mrf.mxu0
      %v1269 = vadd.f32 0.0, %v1268
      %v1270 = vpop.f32.mrf.mxu0
      %1271 = vmatprep.mubr.f32.mxu0 0.0
      %1272 = vmatmul.mubr.f32.gmra.mxu0 %v1054
      %v1273 = vpop.f32.mrf.mxu0
      %v1274 = vadd.f32 0.0, %v1273
      %v1275 = vpop.f32.mrf.mxu0
      %1276 = vmatprep.mubr.f32.mxu0 0.0
      %1277 = vmatmul.mubr.f32.gmra.mxu0 %v1055
      %v1278 = vpop.f32.mrf.mxu0
      %v1279 = vadd.f32 0.0, %v1278
      %v1280 = vpop.f32.mrf.mxu0
      %1281 = vmatprep.mubr.f32.mxu0 0.0
      %1282 = vmatmul.mubr.f32.gmra.mxu0 %v1056
      %v1283 = vpop.f32.mrf.mxu0
      %v1284 = vadd.f32 0.0, %v1283
      %v1285 = vpop.f32.mrf.mxu0
      %1286 = vmatprep.mubr.f32.mxu0 0.0
      %1287 = vmatmul.mubr.f32.gmra.mxu0 %v1057
      %v1288 = vpop.f32.mrf.mxu0
      %v1289 = vadd.f32 0.0, %v1288
      %v1290 = vpop.f32.mrf.mxu0
      %1291 = vmatprep.mubr.f32.mxu0 0.0
      %1292 = vmatmul.mubr.f32.gmra.mxu0 %v1058
      %v1293 = vpop.f32.mrf.mxu0
      %v1294 = vadd.f32 0.0, %v1293
      %v1295 = vpop.f32.mrf.mxu0
      %1296 = vmatprep.mubr.f32.mxu0 0.0
      %1297 = vmatmul.mubr.f32.gmra.mxu0 %v1059
      %v1298 = vpop.f32.mrf.mxu0
      %v1299 = vadd.f32 0.0, %v1298
      %v1300 = vpop.f32.mrf.mxu0
      %1301 = vdwg.mxu0
      %v1302 = vadd.f32 %v870, %v1144
      %v1303 = vadd.f32 %v875, %v1149
      %v1304 = vadd.f32 %v880, %v1154
      %v1305 = vadd.f32 %v885, %v1159
      %v1306 = vadd.f32 %v890, %v1164
      %v1307 = vadd.f32 %v895, %v1169
      %v1308 = vadd.f32 %v900, %v1174
      %v1309 = vadd.f32 %v905, %v1179
      %v1310 = vadd.f32 %v910, %v1184
      %v1311 = vadd.f32 %v915, %v1189
      %v1312 = vadd.f32 %v920, %v1194
      %v1313 = vadd.f32 %v925, %v1199
      %v1314 = vadd.f32 %v930, %v1204
      %v1315 = vadd.f32 %v935, %v1209
      %v1316 = vadd.f32 %v940, %v1214
      %v1317 = vadd.f32 %v945, %v1219
      %v1318 = vadd.f32 %v950, %v1224
      %v1319 = vadd.f32 %v955, %v1229
      %v1320 = vadd.f32 %v960, %v1234
      %v1321 = vadd.f32 %v965, %v1239
      %v1322 = vadd.f32 %v970, %v1244
      %v1323 = vadd.f32 %v975, %v1249
      %v1324 = vadd.f32 %v980, %v1254
      %v1325 = vadd.f32 %v985, %v1259
      %v1326 = vadd.f32 %v990, %v1264
      %v1327 = vadd.f32 %v995, %v1269
      %v1328 = vadd.f32 %v1000, %v1274
      %v1329 = vadd.f32 %v1005, %v1279
      %v1330 = vadd.f32 %v1010, %v1284
      %v1331 = vadd.f32 %v1015, %v1289
      %v1332 = vadd.f32 %v1020, %v1294
      %v1333 = vadd.f32 %v1025, %v1299
      %v1334 = vld [vmem:[%s448 + $0x7] sm:$0xff]
      %v1335 = vld [vmem:[%s448 + $0xf] sm:$0xff]
      %v1336 = vld [vmem:[%s448 + $0x27] sm:$0xff]
      %v1337 = vld [vmem:[%s448 + $0x2f] sm:$0xff]
      %v1338 = vld [vmem:[%s448 + $0x47] sm:$0xff]
      %v1339 = vld [vmem:[%s448 + $0x4f] sm:$0xff]
      %v1340 = vld [vmem:[%s448 + $0x67] sm:$0xff]
      %v1341 = vld [vmem:[%s448 + $0x6f] sm:$0xff]
      %v1342 = vld [vmem:[%s448 + $0x87] sm:$0xff]
      %v1343 = vld [vmem:[%s448 + $0x8f] sm:$0xff]
      %v1344 = vld [vmem:[%s448 + $0xa7] sm:$0xff]
      %v1345 = vld [vmem:[%s448 + $0xaf] sm:$0xff]
      %v1346 = vld [vmem:[%s448 + $0xc7] sm:$0xff]
      %v1347 = vld [vmem:[%s448 + $0xcf] sm:$0xff]
      %v1348 = vld [vmem:[%s448 + $0xe7] sm:$0xff]
      %v1349 = vld [vmem:[%s448 + $0xef] sm:$0xff]
      %v1350 = vld [vmem:[%s448 + $0x107] sm:$0xff]
      %v1351 = vld [vmem:[%s448 + $0x10f] sm:$0xff]
      %v1352 = vld [vmem:[%s448 + $0x127] sm:$0xff]
      %v1353 = vld [vmem:[%s448 + $0x12f] sm:$0xff]
      %v1354 = vld [vmem:[%s448 + $0x147] sm:$0xff]
      %v1355 = vld [vmem:[%s448 + $0x14f] sm:$0xff]
      %v1356 = vld [vmem:[%s448 + $0x167] sm:$0xff]
      %v1357 = vld [vmem:[%s448 + $0x16f] sm:$0xff]
      %v1358 = vld [vmem:[%s448 + $0x187] sm:$0xff]
      %v1359 = vld [vmem:[%s448 + $0x18f] sm:$0xff]
      %v1360 = vld [vmem:[%s448 + $0x1a7] sm:$0xff]
      %v1361 = vld [vmem:[%s448 + $0x1af] sm:$0xff]
      %v1362 = vld [vmem:[%s448 + $0x1c7] sm:$0xff]
      %v1363 = vld [vmem:[%s448 + $0x1cf] sm:$0xff]
      %v1364 = vld [vmem:[%s448 + $0x1e7] sm:$0xff]
      %v1365 = vld [vmem:[%s448 + $0x1ef] sm:$0xff]
      %s1366 = scalar_lea.vmem %s3, 384
      %v1367 = vld [vmem:[%s1366] sm:$0xff]
      %v1368 = vld [vmem:[%s1366 + $0x8] sm:$0xff]
      %v1369 = vld [vmem:[%s1366 + $0x10] sm:$0xff]
      %v1370 = vld [vmem:[%s1366 + $0x18] sm:$0xff]
      %v1371 = vld [vmem:[%s1366 + $0x20] sm:$0xff]
      %v1372 = vld [vmem:[%s1366 + $0x28] sm:$0xff]
      %v1373 = vld [vmem:[%s1366 + $0x30] sm:$0xff]
      %v1374 = vld [vmem:[%s1366 + $0x38] sm:$0xff]
      %v1375 = vld [vmem:[%s1366 + $0x40] sm:$0xff]
      %v1376 = vld [vmem:[%s1366 + $0x48] sm:$0xff]
      %v1377 = vld [vmem:[%s1366 + $0x50] sm:$0xff]
      %v1378 = vld [vmem:[%s1366 + $0x58] sm:$0xff]
      %v1379 = vld [vmem:[%s1366 + $0x60] sm:$0xff]
      %v1380 = vld [vmem:[%s1366 + $0x68] sm:$0xff]
      %v1381 = vld [vmem:[%s1366 + $0x70] sm:$0xff]
      %v1382 = vld [vmem:[%s1366 + $0x78] sm:$0xff]
      %1383 = vmatprep.subr.mxu0 0.0
      %1384 = vmatpush1.msra.mxu0 %v1382
      %1385 = vmatprep.subr.mxu0 0.0
      %1386 = vmatpush1.msra.mxu0 %v1381
      %1387 = vmatprep.subr.mxu0 0.0
      %1388 = vmatpush1.msra.mxu0 %v1380
      %1389 = vmatprep.subr.mxu0 0.0
      %1390 = vmatpush1.msra.mxu0 %v1379
      %1391 = vmatprep.subr.mxu0 0.0
      %1392 = vmatpush1.msra.mxu0 %v1378
      %1393 = vmatprep.subr.mxu0 0.0
      %1394 = vmatpush1.msra.mxu0 %v1377
      %1395 = vmatprep.subr.mxu0 0.0
      %1396 = vmatpush1.msra.mxu0 %v1376
      %1397 = vmatprep.subr.mxu0 0.0
      %1398 = vmatpush1.msra.mxu0 %v1375
      %1399 = vmatprep.subr.mxu0 0.0
      %1400 = vmatpush1.msra.mxu0 %v1374
      %1401 = vmatprep.subr.mxu0 0.0
      %1402 = vmatpush1.msra.mxu0 %v1373
      %1403 = vmatprep.subr.mxu0 0.0
      %1404 = vmatpush1.msra.mxu0 %v1372
      %1405 = vmatprep.subr.mxu0 0.0
      %1406 = vmatpush1.msra.mxu0 %v1371
      %1407 = vmatprep.subr.mxu0 0.0
      %1408 = vmatpush1.msra.mxu0 %v1370
      %1409 = vmatprep.subr.mxu0 0.0
      %1410 = vmatpush1.msra.mxu0 %v1369
      %1411 = vmatprep.subr.mxu0 0.0
      %1412 = vmatpush1.msra.mxu0 %v1368
      %1413 = vmatprep.subr.mxu0 0.0
      %1414 = vmatpush1.msra.mxu0 %v1367
      %1415 = vmatprep.subr.mxu0 0.0
      %1416 = vmatpush2.msra.mxu0 0.0
      %1417 = vmatprep.subr.mxu0 0.0
      %1418 = vmatpush2.msra.mxu0 0.0
      %1419 = vmatprep.subr.mxu0 0.0
      %1420 = vmatpush2.msra.mxu0 0.0
      %1421 = vmatprep.subr.mxu0 0.0
      %1422 = vmatpush2.msra.mxu0 0.0
      %1423 = vmatprep.subr.mxu0 0.0
      %1424 = vmatpush2.msra.mxu0 0.0
      %1425 = vmatprep.subr.mxu0 0.0
      %1426 = vmatpush2.msra.mxu0 0.0
      %1427 = vmatprep.subr.mxu0 0.0
      %1428 = vmatpush2.msra.mxu0 0.0
      %1429 = vmatprep.subr.mxu0 0.0
      %1430 = vmatpush2.msra.mxu0 0.0
      %1431 = vmatprep.subr.mxu0 0.0
      %1432 = vmatpush2.msra.mxu0 0.0
      %1433 = vmatprep.subr.mxu0 0.0
      %1434 = vmatpush2.msra.mxu0 0.0
      %1435 = vmatprep.subr.mxu0 0.0
      %1436 = vmatpush2.msra.mxu0 0.0
      %1437 = vmatprep.subr.mxu0 0.0
      %1438 = vmatpush2.msra.mxu0 0.0
      %1439 = vmatprep.subr.mxu0 0.0
      %1440 = vmatpush2.msra.mxu0 0.0
      %1441 = vmatprep.subr.mxu0 0.0
      %1442 = vmatpush2.msra.mxu0 0.0
      %1443 = vmatprep.subr.mxu0 0.0
      %1444 = vmatpush2.msra.mxu0 0.0
      %1445 = vmatprep.subr.mxu0 0.0
      %1446 = vmatpush2.msra.mxu0 0.0
      %1447 = vmatprep.mubr.f32.mxu0 0.0
      %1448 = vmatmul.mubr.f32.gmra.mxu0 %v1334
      %v1449 = vpop.f32.mrf.mxu0
      %v1450 = vadd.f32 0.0, %v1449
      %v1451 = vpop.f32.mrf.mxu0
      %1452 = vmatprep.mubr.f32.mxu0 0.0
      %1453 = vmatmul.mubr.f32.gmra.mxu0 %v1335
      %v1454 = vpop.f32.mrf.mxu0
      %v1455 = vadd.f32 0.0, %v1454
      %v1456 = vpop.f32.mrf.mxu0
      %1457 = vmatprep.mubr.f32.mxu0 0.0
      %1458 = vmatmul.mubr.f32.gmra.mxu0 %v1336
      %v1459 = vpop.f32.mrf.mxu0
      %v1460 = vadd.f32 0.0, %v1459
      %v1461 = vpop.f32.mrf.mxu0
      %1462 = vmatprep.mubr.f32.mxu0 0.0
      %1463 = vmatmul.mubr.f32.gmra.mxu0 %v1337
      %v1464 = vpop.f32.mrf.mxu0
      %v1465 = vadd.f32 0.0, %v1464
      %v1466 = vpop.f32.mrf.mxu0
      %1467 = vmatprep.mubr.f32.mxu0 0.0
      %1468 = vmatmul.mubr.f32.gmra.mxu0 %v1338
      %v1469 = vpop.f32.mrf.mxu0
      %v1470 = vadd.f32 0.0, %v1469
      %v1471 = vpop.f32.mrf.mxu0
      %1472 = vmatprep.mubr.f32.mxu0 0.0
      %1473 = vmatmul.mubr.f32.gmra.mxu0 %v1339
      %v1474 = vpop.f32.mrf.mxu0
      %v1475 = vadd.f32 0.0, %v1474
      %v1476 = vpop.f32.mrf.mxu0
      %1477 = vmatprep.mubr.f32.mxu0 0.0
      %1478 = vmatmul.mubr.f32.gmra.mxu0 %v1340
      %v1479 = vpop.f32.mrf.mxu0
      %v1480 = vadd.f32 0.0, %v1479
      %v1481 = vpop.f32.mrf.mxu0
      %1482 = vmatprep.mubr.f32.mxu0 0.0
      %1483 = vmatmul.mubr.f32.gmra.mxu0 %v1341
      %v1484 = vpop.f32.mrf.mxu0
      %v1485 = vadd.f32 0.0, %v1484
      %v1486 = vpop.f32.mrf.mxu0
      %1487 = vmatprep.mubr.f32.mxu0 0.0
      %1488 = vmatmul.mubr.f32.gmra.mxu0 %v1342
      %v1489 = vpop.f32.mrf.mxu0
      %v1490 = vadd.f32 0.0, %v1489
      %v1491 = vpop.f32.mrf.mxu0
      %1492 = vmatprep.mubr.f32.mxu0 0.0
      %1493 = vmatmul.mubr.f32.gmra.mxu0 %v1343
      %v1494 = vpop.f32.mrf.mxu0
      %v1495 = vadd.f32 0.0, %v1494
      %v1496 = vpop.f32.mrf.mxu0
      %1497 = vmatprep.mubr.f32.mxu0 0.0
      %1498 = vmatmul.mubr.f32.gmra.mxu0 %v1344
      %v1499 = vpop.f32.mrf.mxu0
      %v1500 = vadd.f32 0.0, %v1499
      %v1501 = vpop.f32.mrf.mxu0
      %1502 = vmatprep.mubr.f32.mxu0 0.0
      %1503 = vmatmul.mubr.f32.gmra.mxu0 %v1345
      %v1504 = vpop.f32.mrf.mxu0
      %v1505 = vadd.f32 0.0, %v1504
      %v1506 = vpop.f32.mrf.mxu0
      %1507 = vmatprep.mubr.f32.mxu0 0.0
      %1508 = vmatmul.mubr.f32.gmra.mxu0 %v1346
      %v1509 = vpop.f32.mrf.mxu0
      %v1510 = vadd.f32 0.0, %v1509
      %v1511 = vpop.f32.mrf.mxu0
      %1512 = vmatprep.mubr.f32.mxu0 0.0
      %1513 = vmatmul.mubr.f32.gmra.mxu0 %v1347
      %v1514 = vpop.f32.mrf.mxu0
      %v1515 = vadd.f32 0.0, %v1514
      %v1516 = vpop.f32.mrf.mxu0
      %1517 = vmatprep.mubr.f32.mxu0 0.0
      %1518 = vmatmul.mubr.f32.gmra.mxu0 %v1348
      %v1519 = vpop.f32.mrf.mxu0
      %v1520 = vadd.f32 0.0, %v1519
      %v1521 = vpop.f32.mrf.mxu0
      %1522 = vmatprep.mubr.f32.mxu0 0.0
      %1523 = vmatmul.mubr.f32.gmra.mxu0 %v1349
      %v1524 = vpop.f32.mrf.mxu0
      %v1525 = vadd.f32 0.0, %v1524
      %v1526 = vpop.f32.mrf.mxu0
      %1527 = vmatprep.mubr.f32.mxu0 0.0
      %1528 = vmatmul.mubr.f32.gmra.mxu0 %v1350
      %v1529 = vpop.f32.mrf.mxu0
      %v1530 = vadd.f32 0.0, %v1529
      %v1531 = vpop.f32.mrf.mxu0
      %1532 = vmatprep.mubr.f32.mxu0 0.0
      %1533 = vmatmul.mubr.f32.gmra.mxu0 %v1351
      %v1534 = vpop.f32.mrf.mxu0
      %v1535 = vadd.f32 0.0, %v1534
      %v1536 = vpop.f32.mrf.mxu0
      %1537 = vmatprep.mubr.f32.mxu0 0.0
      %1538 = vmatmul.mubr.f32.gmra.mxu0 %v1352
      %v1539 = vpop.f32.mrf.mxu0
      %v1540 = vadd.f32 0.0, %v1539
      %v1541 = vpop.f32.mrf.mxu0
      %1542 = vmatprep.mubr.f32.mxu0 0.0
      %1543 = vmatmul.mubr.f32.gmra.mxu0 %v1353
      %v1544 = vpop.f32.mrf.mxu0
      %v1545 = vadd.f32 0.0, %v1544
      %v1546 = vpop.f32.mrf.mxu0
      %1547 = vmatprep.mubr.f32.mxu0 0.0
      %1548 = vmatmul.mubr.f32.gmra.mxu0 %v1354
      %v1549 = vpop.f32.mrf.mxu0
      %v1550 = vadd.f32 0.0, %v1549
      %v1551 = vpop.f32.mrf.mxu0
      %1552 = vmatprep.mubr.f32.mxu0 0.0
      %1553 = vmatmul.mubr.f32.gmra.mxu0 %v1355
      %v1554 = vpop.f32.mrf.mxu0
      %v1555 = vadd.f32 0.0, %v1554
      %v1556 = vpop.f32.mrf.mxu0
      %1557 = vmatprep.mubr.f32.mxu0 0.0
      %1558 = vmatmul.mubr.f32.gmra.mxu0 %v1356
      %v1559 = vpop.f32.mrf.mxu0
      %v1560 = vadd.f32 0.0, %v1559
      %v1561 = vpop.f32.mrf.mxu0
      %1562 = vmatprep.mubr.f32.mxu0 0.0
      %1563 = vmatmul.mubr.f32.gmra.mxu0 %v1357
      %v1564 = vpop.f32.mrf.mxu0
      %v1565 = vadd.f32 0.0, %v1564
      %v1566 = vpop.f32.mrf.mxu0
      %1567 = vmatprep.mubr.f32.mxu0 0.0
      %1568 = vmatmul.mubr.f32.gmra.mxu0 %v1358
      %v1569 = vpop.f32.mrf.mxu0
      %v1570 = vadd.f32 0.0, %v1569
      %v1571 = vpop.f32.mrf.mxu0
      %1572 = vmatprep.mubr.f32.mxu0 0.0
      %1573 = vmatmul.mubr.f32.gmra.mxu0 %v1359
      %v1574 = vpop.f32.mrf.mxu0
      %v1575 = vadd.f32 0.0, %v1574
      %v1576 = vpop.f32.mrf.mxu0
      %1577 = vmatprep.mubr.f32.mxu0 0.0
      %1578 = vmatmul.mubr.f32.gmra.mxu0 %v1360
      %v1579 = vpop.f32.mrf.mxu0
      %v1580 = vadd.f32 0.0, %v1579
      %v1581 = vpop.f32.mrf.mxu0
      %1582 = vmatprep.mubr.f32.mxu0 0.0
      %1583 = vmatmul.mubr.f32.gmra.mxu0 %v1361
      %v1584 = vpop.f32.mrf.mxu0
      %v1585 = vadd.f32 0.0, %v1584
      %v1586 = vpop.f32.mrf.mxu0
      %1587 = vmatprep.mubr.f32.mxu0 0.0
      %1588 = vmatmul.mubr.f32.gmra.mxu0 %v1362
      %v1589 = vpop.f32.mrf.mxu0
      %v1590 = vadd.f32 0.0, %v1589
      %v1591 = vpop.f32.mrf.mxu0
      %1592 = vmatprep.mubr.f32.mxu0 0.0
      %1593 = vmatmul.mubr.f32.gmra.mxu0 %v1363
      %v1594 = vpop.f32.mrf.mxu0
      %v1595 = vadd.f32 0.0, %v1594
      %v1596 = vpop.f32.mrf.mxu0
      %1597 = vmatprep.mubr.f32.mxu0 0.0
      %1598 = vmatmul.mubr.f32.gmra.mxu0 %v1364
      %v1599 = vpop.f32.mrf.mxu0
      %v1600 = vadd.f32 0.0, %v1599
      %v1601 = vpop.f32.mrf.mxu0
      %1602 = vmatprep.mubr.f32.mxu0 0.0
      %1603 = vmatmul.mubr.f32.gmra.mxu0 %v1365
      %v1604 = vpop.f32.mrf.mxu0
      %v1605 = vadd.f32 0.0, %v1604
      %v1606 = vpop.f32.mrf.mxu0
      %1607 = vdwg.mxu0
      %v1608 = vadd.f32 %v1302, %v1450
      %v1609 = vadd.f32 %v1303, %v1455
      %v1610 = vadd.f32 %v1304, %v1460
      %v1611 = vadd.f32 %v1305, %v1465
      %v1612 = vadd.f32 %v1306, %v1470
      %v1613 = vadd.f32 %v1307, %v1475
      %v1614 = vadd.f32 %v1308, %v1480
      %v1615 = vadd.f32 %v1309, %v1485
      %v1616 = vadd.f32 %v1310, %v1490
      %v1617 = vadd.f32 %v1311, %v1495
      %v1618 = vadd.f32 %v1312, %v1500
      %v1619 = vadd.f32 %v1313, %v1505
      %v1620 = vadd.f32 %v1314, %v1510
      %v1621 = vadd.f32 %v1315, %v1515
      %v1622 = vadd.f32 %v1316, %v1520
      %v1623 = vadd.f32 %v1317, %v1525
      %v1624 = vadd.f32 %v1318, %v1530
      %v1625 = vadd.f32 %v1319, %v1535
      %v1626 = vadd.f32 %v1320, %v1540
      %v1627 = vadd.f32 %v1321, %v1545
      %v1628 = vadd.f32 %v1322, %v1550
      %v1629 = vadd.f32 %v1323, %v1555
      %v1630 = vadd.f32 %v1324, %v1560
      %v1631 = vadd.f32 %v1325, %v1565
      %v1632 = vadd.f32 %v1326, %v1570
      %v1633 = vadd.f32 %v1327, %v1575
      %v1634 = vadd.f32 %v1328, %v1580
      %v1635 = vadd.f32 %v1329, %v1585
      %v1636 = vadd.f32 %v1330, %v1590
      %v1637 = vadd.f32 %v1331, %v1595
      %v1638 = vadd.f32 %v1332, %v1600
      %v1639 = vadd.f32 %v1333, %v1605
      %v1640 = vld [vmem:[%s448 + $0x8] sm:$0xff]
      %v1641 = vld [vmem:[%s448 + $0x10] sm:$0xff]
      %v1642 = vld [vmem:[%s448 + $0x28] sm:$0xff]
      %v1643 = vld [vmem:[%s448 + $0x30] sm:$0xff]
      %v1644 = vld [vmem:[%s448 + $0x48] sm:$0xff]
      %v1645 = vld [vmem:[%s448 + $0x50] sm:$0xff]
      %v1646 = vld [vmem:[%s448 + $0x68] sm:$0xff]
      %v1647 = vld [vmem:[%s448 + $0x70] sm:$0xff]
      %v1648 = vld [vmem:[%s448 + $0x88] sm:$0xff]
      %v1649 = vld [vmem:[%s448 + $0x90] sm:$0xff]
      %v1650 = vld [vmem:[%s448 + $0xa8] sm:$0xff]
      %v1651 = vld [vmem:[%s448 + $0xb0] sm:$0xff]
      %v1652 = vld [vmem:[%s448 + $0xc8] sm:$0xff]
      %v1653 = vld [vmem:[%s448 + $0xd0] sm:$0xff]
      %v1654 = vld [vmem:[%s448 + $0xe8] sm:$0xff]
      %v1655 = vld [vmem:[%s448 + $0xf0] sm:$0xff]
      %v1656 = vld [vmem:[%s448 + $0x108] sm:$0xff]
      %v1657 = vld [vmem:[%s448 + $0x110] sm:$0xff]
      %v1658 = vld [vmem:[%s448 + $0x128] sm:$0xff]
      %v1659 = vld [vmem:[%s448 + $0x130] sm:$0xff]
      %v1660 = vld [vmem:[%s448 + $0x148] sm:$0xff]
      %v1661 = vld [vmem:[%s448 + $0x150] sm:$0xff]
      %v1662 = vld [vmem:[%s448 + $0x168] sm:$0xff]
      %v1663 = vld [vmem:[%s448 + $0x170] sm:$0xff]
      %v1664 = vld [vmem:[%s448 + $0x188] sm:$0xff]
      %v1665 = vld [vmem:[%s448 + $0x190] sm:$0xff]
      %v1666 = vld [vmem:[%s448 + $0x1a8] sm:$0xff]
      %v1667 = vld [vmem:[%s448 + $0x1b0] sm:$0xff]
      %v1668 = vld [vmem:[%s448 + $0x1c8] sm:$0xff]
      %v1669 = vld [vmem:[%s448 + $0x1d0] sm:$0xff]
      %v1670 = vld [vmem:[%s448 + $0x1e8] sm:$0xff]
      %v1671 = vld [vmem:[%s448 + $0x1f0] sm:$0xff]
      %s1672 = scalar_lea.vmem %s3, 512
      %v1673 = vld [vmem:[%s1672] sm:$0xff]
      %v1674 = vld [vmem:[%s1672 + $0x8] sm:$0xff]
      %v1675 = vld [vmem:[%s1672 + $0x10] sm:$0xff]
      %v1676 = vld [vmem:[%s1672 + $0x18] sm:$0xff]
      %v1677 = vld [vmem:[%s1672 + $0x20] sm:$0xff]
      %v1678 = vld [vmem:[%s1672 + $0x28] sm:$0xff]
      %v1679 = vld [vmem:[%s1672 + $0x30] sm:$0xff]
      %v1680 = vld [vmem:[%s1672 + $0x38] sm:$0xff]
      %v1681 = vld [vmem:[%s1672 + $0x40] sm:$0xff]
      %v1682 = vld [vmem:[%s1672 + $0x48] sm:$0xff]
      %v1683 = vld [vmem:[%s1672 + $0x50] sm:$0xff]
      %v1684 = vld [vmem:[%s1672 + $0x58] sm:$0xff]
      %v1685 = vld [vmem:[%s1672 + $0x60] sm:$0xff]
      %v1686 = vld [vmem:[%s1672 + $0x68] sm:$0xff]
      %v1687 = vld [vmem:[%s1672 + $0x70] sm:$0xff]
      %v1688 = vld [vmem:[%s1672 + $0x78] sm:$0xff]
      %1689 = vmatprep.subr.mxu0 0.0
      %1690 = vmatpush1.msra.mxu0 %v1688
      %1691 = vmatprep.subr.mxu0 0.0
      %1692 = vmatpush1.msra.mxu0 %v1687
      %1693 = vmatprep.subr.mxu0 0.0
      %1694 = vmatpush1.msra.mxu0 %v1686
      %1695 = vmatprep.subr.mxu0 0.0
      %1696 = vmatpush1.msra.mxu0 %v1685
      %1697 = vmatprep.subr.mxu0 0.0
      %1698 = vmatpush1.msra.mxu0 %v1684
      %1699 = vmatprep.subr.mxu0 0.0
      %1700 = vmatpush1.msra.mxu0 %v1683
      %1701 = vmatprep.subr.mxu0 0.0
      %1702 = vmatpush1.msra.mxu0 %v1682
      %1703 = vmatprep.subr.mxu0 0.0
      %1704 = vmatpush1.msra.mxu0 %v1681
      %1705 = vmatprep.subr.mxu0 0.0
      %1706 = vmatpush1.msra.mxu0 %v1680
      %1707 = vmatprep.subr.mxu0 0.0
      %1708 = vmatpush1.msra.mxu0 %v1679
      %1709 = vmatprep.subr.mxu0 0.0
      %1710 = vmatpush1.msra.mxu0 %v1678
      %1711 = vmatprep.subr.mxu0 0.0
      %1712 = vmatpush1.msra.mxu0 %v1677
      %1713 = vmatprep.subr.mxu0 0.0
      %1714 = vmatpush1.msra.mxu0 %v1676
      %1715 = vmatprep.subr.mxu0 0.0
      %1716 = vmatpush1.msra.mxu0 %v1675
      %1717 = vmatprep.subr.mxu0 0.0
      %1718 = vmatpush1.msra.mxu0 %v1674
      %1719 = vmatprep.subr.mxu0 0.0
      %1720 = vmatpush1.msra.mxu0 %v1673
      %1721 = vmatprep.subr.mxu0 0.0
      %1722 = vmatpush2.msra.mxu0 0.0
      %1723 = vmatprep.subr.mxu0 0.0
      %1724 = vmatpush2.msra.mxu0 0.0
      %1725 = vmatprep.subr.mxu0 0.0
      %1726 = vmatpush2.msra.mxu0 0.0
      %1727 = vmatprep.subr.mxu0 0.0
      %1728 = vmatpush2.msra.mxu0 0.0
      %1729 = vmatprep.subr.mxu0 0.0
      %1730 = vmatpush2.msra.mxu0 0.0
      %1731 = vmatprep.subr.mxu0 0.0
      %1732 = vmatpush2.msra.mxu0 0.0
      %1733 = vmatprep.subr.mxu0 0.0
      %1734 = vmatpush2.msra.mxu0 0.0
      %1735 = vmatprep.subr.mxu0 0.0
      %1736 = vmatpush2.msra.mxu0 0.0
      %1737 = vmatprep.subr.mxu0 0.0
      %1738 = vmatpush2.msra.mxu0 0.0
      %1739 = vmatprep.subr.mxu0 0.0
      %1740 = vmatpush2.msra.mxu0 0.0
      %1741 = vmatprep.subr.mxu0 0.0
      %1742 = vmatpush2.msra.mxu0 0.0
      %1743 = vmatprep.subr.mxu0 0.0
      %1744 = vmatpush2.msra.mxu0 0.0
      %1745 = vmatprep.subr.mxu0 0.0
      %1746 = vmatpush2.msra.mxu0 0.0
      %1747 = vmatprep.subr.mxu0 0.0
      %1748 = vmatpush2.msra.mxu0 0.0
      %1749 = vmatprep.subr.mxu0 0.0
      %1750 = vmatpush2.msra.mxu0 0.0
      %1751 = vmatprep.subr.mxu0 0.0
      %1752 = vmatpush2.msra.mxu0 0.0
      %1753 = vmatprep.mubr.f32.mxu0 0.0
      %1754 = vmatmul.mubr.f32.gmra.mxu0 %v1640
      %v1755 = vpop.f32.mrf.mxu0
      %v1756 = vadd.f32 0.0, %v1755
      %v1757 = vpop.f32.mrf.mxu0
      %1758 = vmatprep.mubr.f32.mxu0 0.0
      %1759 = vmatmul.mubr.f32.gmra.mxu0 %v1641
      %v1760 = vpop.f32.mrf.mxu0
      %v1761 = vadd.f32 0.0, %v1760
      %v1762 = vpop.f32.mrf.mxu0
      %1763 = vmatprep.mubr.f32.mxu0 0.0
      %1764 = vmatmul.mubr.f32.gmra.mxu0 %v1642
      %v1765 = vpop.f32.mrf.mxu0
      %v1766 = vadd.f32 0.0, %v1765
      %v1767 = vpop.f32.mrf.mxu0
      %1768 = vmatprep.mubr.f32.mxu0 0.0
      %1769 = vmatmul.mubr.f32.gmra.mxu0 %v1643
      %v1770 = vpop.f32.mrf.mxu0
      %v1771 = vadd.f32 0.0, %v1770
      %v1772 = vpop.f32.mrf.mxu0
      %1773 = vmatprep.mubr.f32.mxu0 0.0
      %1774 = vmatmul.mubr.f32.gmra.mxu0 %v1644
      %v1775 = vpop.f32.mrf.mxu0
      %v1776 = vadd.f32 0.0, %v1775
      %v1777 = vpop.f32.mrf.mxu0
      %1778 = vmatprep.mubr.f32.mxu0 0.0
      %1779 = vmatmul.mubr.f32.gmra.mxu0 %v1645
      %v1780 = vpop.f32.mrf.mxu0
      %v1781 = vadd.f32 0.0, %v1780
      %v1782 = vpop.f32.mrf.mxu0
      %1783 = vmatprep.mubr.f32.mxu0 0.0
      %1784 = vmatmul.mubr.f32.gmra.mxu0 %v1646
      %v1785 = vpop.f32.mrf.mxu0
      %v1786 = vadd.f32 0.0, %v1785
      %v1787 = vpop.f32.mrf.mxu0
      %1788 = vmatprep.mubr.f32.mxu0 0.0
      %1789 = vmatmul.mubr.f32.gmra.mxu0 %v1647
      %v1790 = vpop.f32.mrf.mxu0
      %v1791 = vadd.f32 0.0, %v1790
      %v1792 = vpop.f32.mrf.mxu0
      %1793 = vmatprep.mubr.f32.mxu0 0.0
      %1794 = vmatmul.mubr.f32.gmra.mxu0 %v1648
      %v1795 = vpop.f32.mrf.mxu0
      %v1796 = vadd.f32 0.0, %v1795
      %v1797 = vpop.f32.mrf.mxu0
      %1798 = vmatprep.mubr.f32.mxu0 0.0
      %1799 = vmatmul.mubr.f32.gmra.mxu0 %v1649
      %v1800 = vpop.f32.mrf.mxu0
      %v1801 = vadd.f32 0.0, %v1800
      %v1802 = vpop.f32.mrf.mxu0
      %1803 = vmatprep.mubr.f32.mxu0 0.0
      %1804 = vmatmul.mubr.f32.gmra.mxu0 %v1650
      %v1805 = vpop.f32.mrf.mxu0
      %v1806 = vadd.f32 0.0, %v1805
      %v1807 = vpop.f32.mrf.mxu0
      %1808 = vmatprep.mubr.f32.mxu0 0.0
      %1809 = vmatmul.mubr.f32.gmra.mxu0 %v1651
      %v1810 = vpop.f32.mrf.mxu0
      %v1811 = vadd.f32 0.0, %v1810
      %v1812 = vpop.f32.mrf.mxu0
      %1813 = vmatprep.mubr.f32.mxu0 0.0
      %1814 = vmatmul.mubr.f32.gmra.mxu0 %v1652
      %v1815 = vpop.f32.mrf.mxu0
      %v1816 = vadd.f32 0.0, %v1815
      %v1817 = vpop.f32.mrf.mxu0
      %1818 = vmatprep.mubr.f32.mxu0 0.0
      %1819 = vmatmul.mubr.f32.gmra.mxu0 %v1653
      %v1820 = vpop.f32.mrf.mxu0
      %v1821 = vadd.f32 0.0, %v1820
      %v1822 = vpop.f32.mrf.mxu0
      %1823 = vmatprep.mubr.f32.mxu0 0.0
      %1824 = vmatmul.mubr.f32.gmra.mxu0 %v1654
      %v1825 = vpop.f32.mrf.mxu0
      %v1826 = vadd.f32 0.0, %v1825
      %v1827 = vpop.f32.mrf.mxu0
      %1828 = vmatprep.mubr.f32.mxu0 0.0
      %1829 = vmatmul.mubr.f32.gmra.mxu0 %v1655
      %v1830 = vpop.f32.mrf.mxu0
      %v1831 = vadd.f32 0.0, %v1830
      %v1832 = vpop.f32.mrf.mxu0
      %1833 = vmatprep.mubr.f32.mxu0 0.0
      %1834 = vmatmul.mubr.f32.gmra.mxu0 %v1656
      %v1835 = vpop.f32.mrf.mxu0
      %v1836 = vadd.f32 0.0, %v1835
      %v1837 = vpop.f32.mrf.mxu0
      %1838 = vmatprep.mubr.f32.mxu0 0.0
      %1839 = vmatmul.mubr.f32.gmra.mxu0 %v1657
      %v1840 = vpop.f32.mrf.mxu0
      %v1841 = vadd.f32 0.0, %v1840
      %v1842 = vpop.f32.mrf.mxu0
      %1843 = vmatprep.mubr.f32.mxu0 0.0
      %1844 = vmatmul.mubr.f32.gmra.mxu0 %v1658
      %v1845 = vpop.f32.mrf.mxu0
      %v1846 = vadd.f32 0.0, %v1845
      %v1847 = vpop.f32.mrf.mxu0
      %1848 = vmatprep.mubr.f32.mxu0 0.0
      %1849 = vmatmul.mubr.f32.gmra.mxu0 %v1659
      %v1850 = vpop.f32.mrf.mxu0
      %v1851 = vadd.f32 0.0, %v1850
      %v1852 = vpop.f32.mrf.mxu0
      %1853 = vmatprep.mubr.f32.mxu0 0.0
      %1854 = vmatmul.mubr.f32.gmra.mxu0 %v1660
      %v1855 = vpop.f32.mrf.mxu0
      %v1856 = vadd.f32 0.0, %v1855
      %v1857 = vpop.f32.mrf.mxu0
      %1858 = vmatprep.mubr.f32.mxu0 0.0
      %1859 = vmatmul.mubr.f32.gmra.mxu0 %v1661
      %v1860 = vpop.f32.mrf.mxu0
      %v1861 = vadd.f32 0.0, %v1860
      %v1862 = vpop.f32.mrf.mxu0
      %1863 = vmatprep.mubr.f32.mxu0 0.0
      %1864 = vmatmul.mubr.f32.gmra.mxu0 %v1662
      %v1865 = vpop.f32.mrf.mxu0
      %v1866 = vadd.f32 0.0, %v1865
      %v1867 = vpop.f32.mrf.mxu0
      %1868 = vmatprep.mubr.f32.mxu0 0.0
      %1869 = vmatmul.mubr.f32.gmra.mxu0 %v1663
      %v1870 = vpop.f32.mrf.mxu0
      %v1871 = vadd.f32 0.0, %v1870
      %v1872 = vpop.f32.mrf.mxu0
      %1873 = vmatprep.mubr.f32.mxu0 0.0
      %1874 = vmatmul.mubr.f32.gmra.mxu0 %v1664
      %v1875 = vpop.f32.mrf.mxu0
      %v1876 = vadd.f32 0.0, %v1875
      %v1877 = vpop.f32.mrf.mxu0
      %1878 = vmatprep.mubr.f32.mxu0 0.0
      %1879 = vmatmul.mubr.f32.gmra.mxu0 %v1665
      %v1880 = vpop.f32.mrf.mxu0
      %v1881 = vadd.f32 0.0, %v1880
      %v1882 = vpop.f32.mrf.mxu0
      %1883 = vmatprep.mubr.f32.mxu0 0.0
      %1884 = vmatmul.mubr.f32.gmra.mxu0 %v1666
      %v1885 = vpop.f32.mrf.mxu0
      %v1886 = vadd.f32 0.0, %v1885
      %v1887 = vpop.f32.mrf.mxu0
      %1888 = vmatprep.mubr.f32.mxu0 0.0
      %1889 = vmatmul.mubr.f32.gmra.mxu0 %v1667
      %v1890 = vpop.f32.mrf.mxu0
      %v1891 = vadd.f32 0.0, %v1890
      %v1892 = vpop.f32.mrf.mxu0
      %1893 = vmatprep.mubr.f32.mxu0 0.0
      %1894 = vmatmul.mubr.f32.gmra.mxu0 %v1668
      %v1895 = vpop.f32.mrf.mxu0
      %v1896 = vadd.f32 0.0, %v1895
      %v1897 = vpop.f32.mrf.mxu0
      %1898 = vmatprep.mubr.f32.mxu0 0.0
      %1899 = vmatmul.mubr.f32.gmra.mxu0 %v1669
      %v1900 = vpop.f32.mrf.mxu0
      %v1901 = vadd.f32 0.0, %v1900
      %v1902 = vpop.f32.mrf.mxu0
      %1903 = vmatprep.mubr.f32.mxu0 0.0
      %1904 = vmatmul.mubr.f32.gmra.mxu0 %v1670
      %v1905 = vpop.f32.mrf.mxu0
      %v1906 = vadd.f32 0.0, %v1905
      %v1907 = vpop.f32.mrf.mxu0
      %1908 = vmatprep.mubr.f32.mxu0 0.0
      %1909 = vmatmul.mubr.f32.gmra.mxu0 %v1671
      %v1910 = vpop.f32.mrf.mxu0
      %v1911 = vadd.f32 0.0, %v1910
      %v1912 = vpop.f32.mrf.mxu0
      %1913 = vdwg.mxu0
      %v1914 = vadd.f32 %v1608, %v1756
      %v1915 = vadd.f32 %v1609, %v1761
      %v1916 = vadd.f32 %v1610, %v1766
      %v1917 = vadd.f32 %v1611, %v1771
      %v1918 = vadd.f32 %v1612, %v1776
      %v1919 = vadd.f32 %v1613, %v1781
      %v1920 = vadd.f32 %v1614, %v1786
      %v1921 = vadd.f32 %v1615, %v1791
      %v1922 = vadd.f32 %v1616, %v1796
      %v1923 = vadd.f32 %v1617, %v1801
      %v1924 = vadd.f32 %v1618, %v1806
      %v1925 = vadd.f32 %v1619, %v1811
      %v1926 = vadd.f32 %v1620, %v1816
      %v1927 = vadd.f32 %v1621, %v1821
      %v1928 = vadd.f32 %v1622, %v1826
      %v1929 = vadd.f32 %v1623, %v1831
      %v1930 = vadd.f32 %v1624, %v1836
      %v1931 = vadd.f32 %v1625, %v1841
      %v1932 = vadd.f32 %v1626, %v1846
      %v1933 = vadd.f32 %v1627, %v1851
      %v1934 = vadd.f32 %v1628, %v1856
      %v1935 = vadd.f32 %v1629, %v1861
      %v1936 = vadd.f32 %v1630, %v1866
      %v1937 = vadd.f32 %v1631, %v1871
      %v1938 = vadd.f32 %v1632, %v1876
      %v1939 = vadd.f32 %v1633, %v1881
      %v1940 = vadd.f32 %v1634, %v1886
      %v1941 = vadd.f32 %v1635, %v1891
      %v1942 = vadd.f32 %v1636, %v1896
      %v1943 = vadd.f32 %v1637, %v1901
      %v1944 = vadd.f32 %v1638, %v1906
      %v1945 = vadd.f32 %v1639, %v1911
      %v1946 = vld [vmem:[%s448 + $0x9] sm:$0xff]
      %v1947 = vld [vmem:[%s448 + $0x11] sm:$0xff]
      %v1948 = vld [vmem:[%s448 + $0x29] sm:$0xff]
      %v1949 = vld [vmem:[%s448 + $0x31] sm:$0xff]
      %v1950 = vld [vmem:[%s448 + $0x49] sm:$0xff]
      %v1951 = vld [vmem:[%s448 + $0x51] sm:$0xff]
      %v1952 = vld [vmem:[%s448 + $0x69] sm:$0xff]
      %v1953 = vld [vmem:[%s448 + $0x71] sm:$0xff]
      %v1954 = vld [vmem:[%s448 + $0x89] sm:$0xff]
      %v1955 = vld [vmem:[%s448 + $0x91] sm:$0xff]
      %v1956 = vld [vmem:[%s448 + $0xa9] sm:$0xff]
      %v1957 = vld [vmem:[%s448 + $0xb1] sm:$0xff]
      %v1958 = vld [vmem:[%s448 + $0xc9] sm:$0xff]
      %v1959 = vld [vmem:[%s448 + $0xd1] sm:$0xff]
      %v1960 = vld [vmem:[%s448 + $0xe9] sm:$0xff]
      %v1961 = vld [vmem:[%s448 + $0xf1] sm:$0xff]
      %v1962 = vld [vmem:[%s448 + $0x109] sm:$0xff]
      %v1963 = vld [vmem:[%s448 + $0x111] sm:$0xff]
      %v1964 = vld [vmem:[%s448 + $0x129] sm:$0xff]
      %v1965 = vld [vmem:[%s448 + $0x131] sm:$0xff]
      %v1966 = vld [vmem:[%s448 + $0x149] sm:$0xff]
      %v1967 = vld [vmem:[%s448 + $0x151] sm:$0xff]
      %v1968 = vld [vmem:[%s448 + $0x169] sm:$0xff]
      %v1969 = vld [vmem:[%s448 + $0x171] sm:$0xff]
      %v1970 = vld [vmem:[%s448 + $0x189] sm:$0xff]
      %v1971 = vld [vmem:[%s448 + $0x191] sm:$0xff]
      %v1972 = vld [vmem:[%s448 + $0x1a9] sm:$0xff]
      %v1973 = vld [vmem:[%s448 + $0x1b1] sm:$0xff]
      %v1974 = vld [vmem:[%s448 + $0x1c9] sm:$0xff]
      %v1975 = vld [vmem:[%s448 + $0x1d1] sm:$0xff]
      %v1976 = vld [vmem:[%s448 + $0x1e9] sm:$0xff]
      %v1977 = vld [vmem:[%s448 + $0x1f1] sm:$0xff]
      %s1978 = scalar_lea.vmem %s3, 640
      %v1979 = vld [vmem:[%s1978] sm:$0xff]
      %v1980 = vld [vmem:[%s1978 + $0x8] sm:$0xff]
      %v1981 = vld [vmem:[%s1978 + $0x10] sm:$0xff]
      %v1982 = vld [vmem:[%s1978 + $0x18] sm:$0xff]
      %v1983 = vld [vmem:[%s1978 + $0x20] sm:$0xff]
      %v1984 = vld [vmem:[%s1978 + $0x28] sm:$0xff]
      %v1985 = vld [vmem:[%s1978 + $0x30] sm:$0xff]
      %v1986 = vld [vmem:[%s1978 + $0x38] sm:$0xff]
      %v1987 = vld [vmem:[%s1978 + $0x40] sm:$0xff]
      %v1988 = vld [vmem:[%s1978 + $0x48] sm:$0xff]
      %v1989 = vld [vmem:[%s1978 + $0x50] sm:$0xff]
      %v1990 = vld [vmem:[%s1978 + $0x58] sm:$0xff]
      %v1991 = vld [vmem:[%s1978 + $0x60] sm:$0xff]
      %v1992 = vld [vmem:[%s1978 + $0x68] sm:$0xff]
      %v1993 = vld [vmem:[%s1978 + $0x70] sm:$0xff]
      %v1994 = vld [vmem:[%s1978 + $0x78] sm:$0xff]
      %1995 = vmatprep.subr.mxu0 0.0
      %1996 = vmatpush1.msra.mxu0 %v1994
      %1997 = vmatprep.subr.mxu0 0.0
      %1998 = vmatpush1.msra.mxu0 %v1993
      %1999 = vmatprep.subr.mxu0 0.0
      %2000 = vmatpush1.msra.mxu0 %v1992
      %2001 = vmatprep.subr.mxu0 0.0
      %2002 = vmatpush1.msra.mxu0 %v1991
      %2003 = vmatprep.subr.mxu0 0.0
      %2004 = vmatpush1.msra.mxu0 %v1990
      %2005 = vmatprep.subr.mxu0 0.0
      %2006 = vmatpush1.msra.mxu0 %v1989
      %2007 = vmatprep.subr.mxu0 0.0
      %2008 = vmatpush1.msra.mxu0 %v1988
      %2009 = vmatprep.subr.mxu0 0.0
      %2010 = vmatpush1.msra.mxu0 %v1987
      %2011 = vmatprep.subr.mxu0 0.0
      %2012 = vmatpush1.msra.mxu0 %v1986
      %2013 = vmatprep.subr.mxu0 0.0
      %2014 = vmatpush1.msra.mxu0 %v1985
      %2015 = vmatprep.subr.mxu0 0.0
      %2016 = vmatpush1.msra.mxu0 %v1984
      %2017 = vmatprep.subr.mxu0 0.0
      %2018 = vmatpush1.msra.mxu0 %v1983
      %2019 = vmatprep.subr.mxu0 0.0
      %2020 = vmatpush1.msra.mxu0 %v1982
      %2021 = vmatprep.subr.mxu0 0.0
      %2022 = vmatpush1.msra.mxu0 %v1981
      %2023 = vmatprep.subr.mxu0 0.0
      %2024 = vmatpush1.msra.mxu0 %v1980
      %2025 = vmatprep.subr.mxu0 0.0
      %2026 = vmatpush1.msra.mxu0 %v1979
      %2027 = vmatprep.subr.mxu0 0.0
      %2028 = vmatpush2.msra.mxu0 0.0
      %2029 = vmatprep.subr.mxu0 0.0
      %2030 = vmatpush2.msra.mxu0 0.0
      %2031 = vmatprep.subr.mxu0 0.0
      %2032 = vmatpush2.msra.mxu0 0.0
      %2033 = vmatprep.subr.mxu0 0.0
      %2034 = vmatpush2.msra.mxu0 0.0
      %2035 = vmatprep.subr.mxu0 0.0
      %2036 = vmatpush2.msra.mxu0 0.0
      %2037 = vmatprep.subr.mxu0 0.0
      %2038 = vmatpush2.msra.mxu0 0.0
      %2039 = vmatprep.subr.mxu0 0.0
      %2040 = vmatpush2.msra.mxu0 0.0
      %2041 = vmatprep.subr.mxu0 0.0
      %2042 = vmatpush2.msra.mxu0 0.0
      %2043 = vmatprep.subr.mxu0 0.0
      %2044 = vmatpush2.msra.mxu0 0.0
      %2045 = vmatprep.subr.mxu0 0.0
      %2046 = vmatpush2.msra.mxu0 0.0
      %2047 = vmatprep.subr.mxu0 0.0
      %2048 = vmatpush2.msra.mxu0 0.0
      %2049 = vmatprep.subr.mxu0 0.0
      %2050 = vmatpush2.msra.mxu0 0.0
      %2051 = vmatprep.subr.mxu0 0.0
      %2052 = vmatpush2.msra.mxu0 0.0
      %2053 = vmatprep.subr.mxu0 0.0
      %2054 = vmatpush2.msra.mxu0 0.0
      %2055 = vmatprep.subr.mxu0 0.0
      %2056 = vmatpush2.msra.mxu0 0.0
      %2057 = vmatprep.subr.mxu0 0.0
      %2058 = vmatpush2.msra.mxu0 0.0
      %2059 = vmatprep.mubr.f32.mxu0 0.0
      %2060 = vmatmul.mubr.f32.gmra.mxu0 %v1946
      %v2061 = vpop.f32.mrf.mxu0
      %v2062 = vadd.f32 0.0, %v2061
      %v2063 = vpop.f32.mrf.mxu0
      %2064 = vmatprep.mubr.f32.mxu0 0.0
      %2065 = vmatmul.mubr.f32.gmra.mxu0 %v1947
      %v2066 = vpop.f32.mrf.mxu0
      %v2067 = vadd.f32 0.0, %v2066
      %v2068 = vpop.f32.mrf.mxu0
      %2069 = vmatprep.mubr.f32.mxu0 0.0
      %2070 = vmatmul.mubr.f32.gmra.mxu0 %v1948
      %v2071 = vpop.f32.mrf.mxu0
      %v2072 = vadd.f32 0.0, %v2071
      %v2073 = vpop.f32.mrf.mxu0
      %2074 = vmatprep.mubr.f32.mxu0 0.0
      %2075 = vmatmul.mubr.f32.gmra.mxu0 %v1949
      %v2076 = vpop.f32.mrf.mxu0
      %v2077 = vadd.f32 0.0, %v2076
      %v2078 = vpop.f32.mrf.mxu0
      %2079 = vmatprep.mubr.f32.mxu0 0.0
      %2080 = vmatmul.mubr.f32.gmra.mxu0 %v1950
      %v2081 = vpop.f32.mrf.mxu0
      %v2082 = vadd.f32 0.0, %v2081
      %v2083 = vpop.f32.mrf.mxu0
      %2084 = vmatprep.mubr.f32.mxu0 0.0
      %2085 = vmatmul.mubr.f32.gmra.mxu0 %v1951
      %v2086 = vpop.f32.mrf.mxu0
      %v2087 = vadd.f32 0.0, %v2086
      %v2088 = vpop.f32.mrf.mxu0
      %2089 = vmatprep.mubr.f32.mxu0 0.0
      %2090 = vmatmul.mubr.f32.gmra.mxu0 %v1952
      %v2091 = vpop.f32.mrf.mxu0
      %v2092 = vadd.f32 0.0, %v2091
      %v2093 = vpop.f32.mrf.mxu0
      %2094 = vmatprep.mubr.f32.mxu0 0.0
      %2095 = vmatmul.mubr.f32.gmra.mxu0 %v1953
      %v2096 = vpop.f32.mrf.mxu0
      %v2097 = vadd.f32 0.0, %v2096
      %v2098 = vpop.f32.mrf.mxu0
      %2099 = vmatprep.mubr.f32.mxu0 0.0
      %2100 = vmatmul.mubr.f32.gmra.mxu0 %v1954
      %v2101 = vpop.f32.mrf.mxu0
      %v2102 = vadd.f32 0.0, %v2101
      %v2103 = vpop.f32.mrf.mxu0
      %2104 = vmatprep.mubr.f32.mxu0 0.0
      %2105 = vmatmul.mubr.f32.gmra.mxu0 %v1955
      %v2106 = vpop.f32.mrf.mxu0
      %v2107 = vadd.f32 0.0, %v2106
      %v2108 = vpop.f32.mrf.mxu0
      %2109 = vmatprep.mubr.f32.mxu0 0.0
      %2110 = vmatmul.mubr.f32.gmra.mxu0 %v1956
      %v2111 = vpop.f32.mrf.mxu0
      %v2112 = vadd.f32 0.0, %v2111
      %v2113 = vpop.f32.mrf.mxu0
      %2114 = vmatprep.mubr.f32.mxu0 0.0
      %2115 = vmatmul.mubr.f32.gmra.mxu0 %v1957
      %v2116 = vpop.f32.mrf.mxu0
      %v2117 = vadd.f32 0.0, %v2116
      %v2118 = vpop.f32.mrf.mxu0
      %2119 = vmatprep.mubr.f32.mxu0 0.0
      %2120 = vmatmul.mubr.f32.gmra.mxu0 %v1958
      %v2121 = vpop.f32.mrf.mxu0
      %v2122 = vadd.f32 0.0, %v2121
      %v2123 = vpop.f32.mrf.mxu0
      %2124 = vmatprep.mubr.f32.mxu0 0.0
      %2125 = vmatmul.mubr.f32.gmra.mxu0 %v1959
      %v2126 = vpop.f32.mrf.mxu0
      %v2127 = vadd.f32 0.0, %v2126
      %v2128 = vpop.f32.mrf.mxu0
      %2129 = vmatprep.mubr.f32.mxu0 0.0
      %2130 = vmatmul.mubr.f32.gmra.mxu0 %v1960
      %v2131 = vpop.f32.mrf.mxu0
      %v2132 = vadd.f32 0.0, %v2131
      %v2133 = vpop.f32.mrf.mxu0
      %2134 = vmatprep.mubr.f32.mxu0 0.0
      %2135 = vmatmul.mubr.f32.gmra.mxu0 %v1961
      %v2136 = vpop.f32.mrf.mxu0
      %v2137 = vadd.f32 0.0, %v2136
      %v2138 = vpop.f32.mrf.mxu0
      %2139 = vmatprep.mubr.f32.mxu0 0.0
      %2140 = vmatmul.mubr.f32.gmra.mxu0 %v1962
      %v2141 = vpop.f32.mrf.mxu0
      %v2142 = vadd.f32 0.0, %v2141
      %v2143 = vpop.f32.mrf.mxu0
      %2144 = vmatprep.mubr.f32.mxu0 0.0
      %2145 = vmatmul.mubr.f32.gmra.mxu0 %v1963
      %v2146 = vpop.f32.mrf.mxu0
      %v2147 = vadd.f32 0.0, %v2146
      %v2148 = vpop.f32.mrf.mxu0
      %2149 = vmatprep.mubr.f32.mxu0 0.0
      %2150 = vmatmul.mubr.f32.gmra.mxu0 %v1964
      %v2151 = vpop.f32.mrf.mxu0
      %v2152 = vadd.f32 0.0, %v2151
      %v2153 = vpop.f32.mrf.mxu0
      %2154 = vmatprep.mubr.f32.mxu0 0.0
      %2155 = vmatmul.mubr.f32.gmra.mxu0 %v1965
      %v2156 = vpop.f32.mrf.mxu0
      %v2157 = vadd.f32 0.0, %v2156
      %v2158 = vpop.f32.mrf.mxu0
      %2159 = vmatprep.mubr.f32.mxu0 0.0
      %2160 = vmatmul.mubr.f32.gmra.mxu0 %v1966
      %v2161 = vpop.f32.mrf.mxu0
      %v2162 = vadd.f32 0.0, %v2161
      %v2163 = vpop.f32.mrf.mxu0
      %2164 = vmatprep.mubr.f32.mxu0 0.0
      %2165 = vmatmul.mubr.f32.gmra.mxu0 %v1967
      %v2166 = vpop.f32.mrf.mxu0
      %v2167 = vadd.f32 0.0, %v2166
      %v2168 = vpop.f32.mrf.mxu0
      %2169 = vmatprep.mubr.f32.mxu0 0.0
      %2170 = vmatmul.mubr.f32.gmra.mxu0 %v1968
      %v2171 = vpop.f32.mrf.mxu0
      %v2172 = vadd.f32 0.0, %v2171
      %v2173 = vpop.f32.mrf.mxu0
      %2174 = vmatprep.mubr.f32.mxu0 0.0
      %2175 = vmatmul.mubr.f32.gmra.mxu0 %v1969
      %v2176 = vpop.f32.mrf.mxu0
      %v2177 = vadd.f32 0.0, %v2176
      %v2178 = vpop.f32.mrf.mxu0
      %2179 = vmatprep.mubr.f32.mxu0 0.0
      %2180 = vmatmul.mubr.f32.gmra.mxu0 %v1970
      %v2181 = vpop.f32.mrf.mxu0
      %v2182 = vadd.f32 0.0, %v2181
      %v2183 = vpop.f32.mrf.mxu0
      %2184 = vmatprep.mubr.f32.mxu0 0.0
      %2185 = vmatmul.mubr.f32.gmra.mxu0 %v1971
      %v2186 = vpop.f32.mrf.mxu0
      %v2187 = vadd.f32 0.0, %v2186
      %v2188 = vpop.f32.mrf.mxu0
      %2189 = vmatprep.mubr.f32.mxu0 0.0
      %2190 = vmatmul.mubr.f32.gmra.mxu0 %v1972
      %v2191 = vpop.f32.mrf.mxu0
      %v2192 = vadd.f32 0.0, %v2191
      %v2193 = vpop.f32.mrf.mxu0
      %2194 = vmatprep.mubr.f32.mxu0 0.0
      %2195 = vmatmul.mubr.f32.gmra.mxu0 %v1973
      %v2196 = vpop.f32.mrf.mxu0
      %v2197 = vadd.f32 0.0, %v2196
      %v2198 = vpop.f32.mrf.mxu0
      %2199 = vmatprep.mubr.f32.mxu0 0.0
      %2200 = vmatmul.mubr.f32.gmra.mxu0 %v1974
      %v2201 = vpop.f32.mrf.mxu0
      %v2202 = vadd.f32 0.0, %v2201
      %v2203 = vpop.f32.mrf.mxu0
      %2204 = vmatprep.mubr.f32.mxu0 0.0
      %2205 = vmatmul.mubr.f32.gmra.mxu0 %v1975
      %v2206 = vpop.f32.mrf.mxu0
      %v2207 = vadd.f32 0.0, %v2206
      %v2208 = vpop.f32.mrf.mxu0
      %2209 = vmatprep.mubr.f32.mxu0 0.0
      %2210 = vmatmul.mubr.f32.gmra.mxu0 %v1976
      %v2211 = vpop.f32.mrf.mxu0
      %v2212 = vadd.f32 0.0, %v2211
      %v2213 = vpop.f32.mrf.mxu0
      %2214 = vmatprep.mubr.f32.mxu0 0.0
      %2215 = vmatmul.mubr.f32.gmra.mxu0 %v1977
      %v2216 = vpop.f32.mrf.mxu0
      %v2217 = vadd.f32 0.0, %v2216
      %v2218 = vpop.f32.mrf.mxu0
      %2219 = vdwg.mxu0
      %v2220 = vadd.f32 %v1914, %v2062
      %v2221 = vadd.f32 %v1915, %v2067
      %v2222 = vadd.f32 %v1916, %v2072
      %v2223 = vadd.f32 %v1917, %v2077
      %v2224 = vadd.f32 %v1918, %v2082
      %v2225 = vadd.f32 %v1919, %v2087
      %v2226 = vadd.f32 %v1920, %v2092
      %v2227 = vadd.f32 %v1921, %v2097
      %v2228 = vadd.f32 %v1922, %v2102
      %v2229 = vadd.f32 %v1923, %v2107
      %v2230 = vadd.f32 %v1924, %v2112
      %v2231 = vadd.f32 %v1925, %v2117
      %v2232 = vadd.f32 %v1926, %v2122
      %v2233 = vadd.f32 %v1927, %v2127
      %v2234 = vadd.f32 %v1928, %v2132
      %v2235 = vadd.f32 %v1929, %v2137
      %v2236 = vadd.f32 %v1930, %v2142
      %v2237 = vadd.f32 %v1931, %v2147
      %v2238 = vadd.f32 %v1932, %v2152
      %v2239 = vadd.f32 %v1933, %v2157
      %v2240 = vadd.f32 %v1934, %v2162
      %v2241 = vadd.f32 %v1935, %v2167
      %v2242 = vadd.f32 %v1936, %v2172
      %v2243 = vadd.f32 %v1937, %v2177
      %v2244 = vadd.f32 %v1938, %v2182
      %v2245 = vadd.f32 %v1939, %v2187
      %v2246 = vadd.f32 %v1940, %v2192
      %v2247 = vadd.f32 %v1941, %v2197
      %v2248 = vadd.f32 %v1942, %v2202
      %v2249 = vadd.f32 %v1943, %v2207
      %v2250 = vadd.f32 %v1944, %v2212
      %v2251 = vadd.f32 %v1945, %v2217
      %s2252 = scalar_lea.vmem [#allocation2], 64
      %v2253 = vld [vmem:[%s2252 + $0x7] sm:$0xff]
      %v2254 = vld [vmem:[%s2252 + $0xf] sm:$0xff]
      %v2255 = vld [vmem:[%s2252 + $0x27] sm:$0xff]
      %v2256 = vld [vmem:[%s2252 + $0x2f] sm:$0xff]
      %v2257 = vld [vmem:[%s2252 + $0x47] sm:$0xff]
      %v2258 = vld [vmem:[%s2252 + $0x4f] sm:$0xff]
      %v2259 = vld [vmem:[%s2252 + $0x67] sm:$0xff]
      %v2260 = vld [vmem:[%s2252 + $0x6f] sm:$0xff]
      %v2261 = vld [vmem:[%s2252 + $0x87] sm:$0xff]
      %v2262 = vld [vmem:[%s2252 + $0x8f] sm:$0xff]
      %v2263 = vld [vmem:[%s2252 + $0xa7] sm:$0xff]
      %v2264 = vld [vmem:[%s2252 + $0xaf] sm:$0xff]
      %v2265 = vld [vmem:[%s2252 + $0xc7] sm:$0xff]
      %v2266 = vld [vmem:[%s2252 + $0xcf] sm:$0xff]
      %v2267 = vld [vmem:[%s2252 + $0xe7] sm:$0xff]
      %v2268 = vld [vmem:[%s2252 + $0xef] sm:$0xff]
      %v2269 = vld [vmem:[%s2252 + $0x107] sm:$0xff]
      %v2270 = vld [vmem:[%s2252 + $0x10f] sm:$0xff]
      %v2271 = vld [vmem:[%s2252 + $0x127] sm:$0xff]
      %v2272 = vld [vmem:[%s2252 + $0x12f] sm:$0xff]
      %v2273 = vld [vmem:[%s2252 + $0x147] sm:$0xff]
      %v2274 = vld [vmem:[%s2252 + $0x14f] sm:$0xff]
      %v2275 = vld [vmem:[%s2252 + $0x167] sm:$0xff]
      %v2276 = vld [vmem:[%s2252 + $0x16f] sm:$0xff]
      %v2277 = vld [vmem:[%s2252 + $0x187] sm:$0xff]
      %v2278 = vld [vmem:[%s2252 + $0x18f] sm:$0xff]
      %v2279 = vld [vmem:[%s2252 + $0x1a7] sm:$0xff]
      %v2280 = vld [vmem:[%s2252 + $0x1af] sm:$0xff]
      %v2281 = vld [vmem:[%s2252 + $0x1c7] sm:$0xff]
      %v2282 = vld [vmem:[%s2252 + $0x1cf] sm:$0xff]
      %v2283 = vld [vmem:[%s2252 + $0x1e7] sm:$0xff]
      %v2284 = vld [vmem:[%s2252 + $0x1ef] sm:$0xff]
      %s2285 = scalar_lea.vmem %s3, 768
      %v2286 = vld [vmem:[%s2285] sm:$0xff]
      %v2287 = vld [vmem:[%s2285 + $0x8] sm:$0xff]
      %v2288 = vld [vmem:[%s2285 + $0x10] sm:$0xff]
      %v2289 = vld [vmem:[%s2285 + $0x18] sm:$0xff]
      %v2290 = vld [vmem:[%s2285 + $0x20] sm:$0xff]
      %v2291 = vld [vmem:[%s2285 + $0x28] sm:$0xff]
      %v2292 = vld [vmem:[%s2285 + $0x30] sm:$0xff]
      %v2293 = vld [vmem:[%s2285 + $0x38] sm:$0xff]
      %v2294 = vld [vmem:[%s2285 + $0x40] sm:$0xff]
      %v2295 = vld [vmem:[%s2285 + $0x48] sm:$0xff]
      %v2296 = vld [vmem:[%s2285 + $0x50] sm:$0xff]
      %v2297 = vld [vmem:[%s2285 + $0x58] sm:$0xff]
      %v2298 = vld [vmem:[%s2285 + $0x60] sm:$0xff]
      %v2299 = vld [vmem:[%s2285 + $0x68] sm:$0xff]
      %v2300 = vld [vmem:[%s2285 + $0x70] sm:$0xff]
      %v2301 = vld [vmem:[%s2285 + $0x78] sm:$0xff]
      %2302 = vmatprep.subr.mxu0 0.0
      %2303 = vmatpush1.msra.mxu0 %v2301
      %2304 = vmatprep.subr.mxu0 0.0
      %2305 = vmatpush1.msra.mxu0 %v2300
      %2306 = vmatprep.subr.mxu0 0.0
      %2307 = vmatpush1.msra.mxu0 %v2299
      %2308 = vmatprep.subr.mxu0 0.0
      %2309 = vmatpush1.msra.mxu0 %v2298
      %2310 = vmatprep.subr.mxu0 0.0
      %2311 = vmatpush1.msra.mxu0 %v2297
      %2312 = vmatprep.subr.mxu0 0.0
      %2313 = vmatpush1.msra.mxu0 %v2296
      %2314 = vmatprep.subr.mxu0 0.0
      %2315 = vmatpush1.msra.mxu0 %v2295
      %2316 = vmatprep.subr.mxu0 0.0
      %2317 = vmatpush1.msra.mxu0 %v2294
      %2318 = vmatprep.subr.mxu0 0.0
      %2319 = vmatpush1.msra.mxu0 %v2293
      %2320 = vmatprep.subr.mxu0 0.0
      %2321 = vmatpush1.msra.mxu0 %v2292
      %2322 = vmatprep.subr.mxu0 0.0
      %2323 = vmatpush1.msra.mxu0 %v2291
      %2324 = vmatprep.subr.mxu0 0.0
      %2325 = vmatpush1.msra.mxu0 %v2290
      %2326 = vmatprep.subr.mxu0 0.0
      %2327 = vmatpush1.msra.mxu0 %v2289
      %2328 = vmatprep.subr.mxu0 0.0
      %2329 = vmatpush1.msra.mxu0 %v2288
      %2330 = vmatprep.subr.mxu0 0.0
      %2331 = vmatpush1.msra.mxu0 %v2287
      %2332 = vmatprep.subr.mxu0 0.0
      %2333 = vmatpush1.msra.mxu0 %v2286
      %2334 = vmatprep.subr.mxu0 0.0
      %2335 = vmatpush2.msra.mxu0 0.0
      %2336 = vmatprep.subr.mxu0 0.0
      %2337 = vmatpush2.msra.mxu0 0.0
      %2338 = vmatprep.subr.mxu0 0.0
      %2339 = vmatpush2.msra.mxu0 0.0
      %2340 = vmatprep.subr.mxu0 0.0
      %2341 = vmatpush2.msra.mxu0 0.0
      %2342 = vmatprep.subr.mxu0 0.0
      %2343 = vmatpush2.msra.mxu0 0.0
      %2344 = vmatprep.subr.mxu0 0.0
      %2345 = vmatpush2.msra.mxu0 0.0
      %2346 = vmatprep.subr.mxu0 0.0
      %2347 = vmatpush2.msra.mxu0 0.0
      %2348 = vmatprep.subr.mxu0 0.0
      %2349 = vmatpush2.msra.mxu0 0.0
      %2350 = vmatprep.subr.mxu0 0.0
      %2351 = vmatpush2.msra.mxu0 0.0
      %2352 = vmatprep.subr.mxu0 0.0
      %2353 = vmatpush2.msra.mxu0 0.0
      %2354 = vmatprep.subr.mxu0 0.0
      %2355 = vmatpush2.msra.mxu0 0.0
      %2356 = vmatprep.subr.mxu0 0.0
      %2357 = vmatpush2.msra.mxu0 0.0
      %2358 = vmatprep.subr.mxu0 0.0
      %2359 = vmatpush2.msra.mxu0 0.0
      %2360 = vmatprep.subr.mxu0 0.0
      %2361 = vmatpush2.msra.mxu0 0.0
      %2362 = vmatprep.subr.mxu0 0.0
      %2363 = vmatpush2.msra.mxu0 0.0
      %2364 = vmatprep.subr.mxu0 0.0
      %2365 = vmatpush2.msra.mxu0 0.0
      %2366 = vmatprep.mubr.f32.mxu0 0.0
      %2367 = vmatmul.mubr.f32.gmra.mxu0 %v2253
      %v2368 = vpop.f32.mrf.mxu0
      %v2369 = vadd.f32 0.0, %v2368
      %v2370 = vpop.f32.mrf.mxu0
      %2371 = vmatprep.mubr.f32.mxu0 0.0
      %2372 = vmatmul.mubr.f32.gmra.mxu0 %v2254
      %v2373 = vpop.f32.mrf.mxu0
      %v2374 = vadd.f32 0.0, %v2373
      %v2375 = vpop.f32.mrf.mxu0
      %2376 = vmatprep.mubr.f32.mxu0 0.0
      %2377 = vmatmul.mubr.f32.gmra.mxu0 %v2255
      %v2378 = vpop.f32.mrf.mxu0
      %v2379 = vadd.f32 0.0, %v2378
      %v2380 = vpop.f32.mrf.mxu0
      %2381 = vmatprep.mubr.f32.mxu0 0.0
      %2382 = vmatmul.mubr.f32.gmra.mxu0 %v2256
      %v2383 = vpop.f32.mrf.mxu0
      %v2384 = vadd.f32 0.0, %v2383
      %v2385 = vpop.f32.mrf.mxu0
      %2386 = vmatprep.mubr.f32.mxu0 0.0
      %2387 = vmatmul.mubr.f32.gmra.mxu0 %v2257
      %v2388 = vpop.f32.mrf.mxu0
      %v2389 = vadd.f32 0.0, %v2388
      %v2390 = vpop.f32.mrf.mxu0
      %2391 = vmatprep.mubr.f32.mxu0 0.0
      %2392 = vmatmul.mubr.f32.gmra.mxu0 %v2258
      %v2393 = vpop.f32.mrf.mxu0
      %v2394 = vadd.f32 0.0, %v2393
      %v2395 = vpop.f32.mrf.mxu0
      %2396 = vmatprep.mubr.f32.mxu0 0.0
      %2397 = vmatmul.mubr.f32.gmra.mxu0 %v2259
      %v2398 = vpop.f32.mrf.mxu0
      %v2399 = vadd.f32 0.0, %v2398
      %v2400 = vpop.f32.mrf.mxu0
      %2401 = vmatprep.mubr.f32.mxu0 0.0
      %2402 = vmatmul.mubr.f32.gmra.mxu0 %v2260
      %v2403 = vpop.f32.mrf.mxu0
      %v2404 = vadd.f32 0.0, %v2403
      %v2405 = vpop.f32.mrf.mxu0
      %2406 = vmatprep.mubr.f32.mxu0 0.0
      %2407 = vmatmul.mubr.f32.gmra.mxu0 %v2261
      %v2408 = vpop.f32.mrf.mxu0
      %v2409 = vadd.f32 0.0, %v2408
      %v2410 = vpop.f32.mrf.mxu0
      %2411 = vmatprep.mubr.f32.mxu0 0.0
      %2412 = vmatmul.mubr.f32.gmra.mxu0 %v2262
      %v2413 = vpop.f32.mrf.mxu0
      %v2414 = vadd.f32 0.0, %v2413
      %v2415 = vpop.f32.mrf.mxu0
      %2416 = vmatprep.mubr.f32.mxu0 0.0
      %2417 = vmatmul.mubr.f32.gmra.mxu0 %v2263
      %v2418 = vpop.f32.mrf.mxu0
      %v2419 = vadd.f32 0.0, %v2418
      %v2420 = vpop.f32.mrf.mxu0
      %2421 = vmatprep.mubr.f32.mxu0 0.0
      %2422 = vmatmul.mubr.f32.gmra.mxu0 %v2264
      %v2423 = vpop.f32.mrf.mxu0
      %v2424 = vadd.f32 0.0, %v2423
      %v2425 = vpop.f32.mrf.mxu0
      %2426 = vmatprep.mubr.f32.mxu0 0.0
      %2427 = vmatmul.mubr.f32.gmra.mxu0 %v2265
      %v2428 = vpop.f32.mrf.mxu0
      %v2429 = vadd.f32 0.0, %v2428
      %v2430 = vpop.f32.mrf.mxu0
      %2431 = vmatprep.mubr.f32.mxu0 0.0
      %2432 = vmatmul.mubr.f32.gmra.mxu0 %v2266
      %v2433 = vpop.f32.mrf.mxu0
      %v2434 = vadd.f32 0.0, %v2433
      %v2435 = vpop.f32.mrf.mxu0
      %2436 = vmatprep.mubr.f32.mxu0 0.0
      %2437 = vmatmul.mubr.f32.gmra.mxu0 %v2267
      %v2438 = vpop.f32.mrf.mxu0
      %v2439 = vadd.f32 0.0, %v2438
      %v2440 = vpop.f32.mrf.mxu0
      %2441 = vmatprep.mubr.f32.mxu0 0.0
      %2442 = vmatmul.mubr.f32.gmra.mxu0 %v2268
      %v2443 = vpop.f32.mrf.mxu0
      %v2444 = vadd.f32 0.0, %v2443
      %v2445 = vpop.f32.mrf.mxu0
      %2446 = vmatprep.mubr.f32.mxu0 0.0
      %2447 = vmatmul.mubr.f32.gmra.mxu0 %v2269
      %v2448 = vpop.f32.mrf.mxu0
      %v2449 = vadd.f32 0.0, %v2448
      %v2450 = vpop.f32.mrf.mxu0
      %2451 = vmatprep.mubr.f32.mxu0 0.0
      %2452 = vmatmul.mubr.f32.gmra.mxu0 %v2270
      %v2453 = vpop.f32.mrf.mxu0
      %v2454 = vadd.f32 0.0, %v2453
      %v2455 = vpop.f32.mrf.mxu0
      %2456 = vmatprep.mubr.f32.mxu0 0.0
      %2457 = vmatmul.mubr.f32.gmra.mxu0 %v2271
      %v2458 = vpop.f32.mrf.mxu0
      %v2459 = vadd.f32 0.0, %v2458
      %v2460 = vpop.f32.mrf.mxu0
      %2461 = vmatprep.mubr.f32.mxu0 0.0
      %2462 = vmatmul.mubr.f32.gmra.mxu0 %v2272
      %v2463 = vpop.f32.mrf.mxu0
      %v2464 = vadd.f32 0.0, %v2463
      %v2465 = vpop.f32.mrf.mxu0
      %2466 = vmatprep.mubr.f32.mxu0 0.0
      %2467 = vmatmul.mubr.f32.gmra.mxu0 %v2273
      %v2468 = vpop.f32.mrf.mxu0
      %v2469 = vadd.f32 0.0, %v2468
      %v2470 = vpop.f32.mrf.mxu0
      %2471 = vmatprep.mubr.f32.mxu0 0.0
      %2472 = vmatmul.mubr.f32.gmra.mxu0 %v2274
      %v2473 = vpop.f32.mrf.mxu0
      %v2474 = vadd.f32 0.0, %v2473
      %v2475 = vpop.f32.mrf.mxu0
      %2476 = vmatprep.mubr.f32.mxu0 0.0
      %2477 = vmatmul.mubr.f32.gmra.mxu0 %v2275
      %v2478 = vpop.f32.mrf.mxu0
      %v2479 = vadd.f32 0.0, %v2478
      %v2480 = vpop.f32.mrf.mxu0
      %2481 = vmatprep.mubr.f32.mxu0 0.0
      %2482 = vmatmul.mubr.f32.gmra.mxu0 %v2276
      %v2483 = vpop.f32.mrf.mxu0
      %v2484 = vadd.f32 0.0, %v2483
      %v2485 = vpop.f32.mrf.mxu0
      %2486 = vmatprep.mubr.f32.mxu0 0.0
      %2487 = vmatmul.mubr.f32.gmra.mxu0 %v2277
      %v2488 = vpop.f32.mrf.mxu0
      %v2489 = vadd.f32 0.0, %v2488
      %v2490 = vpop.f32.mrf.mxu0
      %2491 = vmatprep.mubr.f32.mxu0 0.0
      %2492 = vmatmul.mubr.f32.gmra.mxu0 %v2278
      %v2493 = vpop.f32.mrf.mxu0
      %v2494 = vadd.f32 0.0, %v2493
      %v2495 = vpop.f32.mrf.mxu0
      %2496 = vmatprep.mubr.f32.mxu0 0.0
      %2497 = vmatmul.mubr.f32.gmra.mxu0 %v2279
      %v2498 = vpop.f32.mrf.mxu0
      %v2499 = vadd.f32 0.0, %v2498
      %v2500 = vpop.f32.mrf.mxu0
      %2501 = vmatprep.mubr.f32.mxu0 0.0
      %2502 = vmatmul.mubr.f32.gmra.mxu0 %v2280
      %v2503 = vpop.f32.mrf.mxu0
      %v2504 = vadd.f32 0.0, %v2503
      %v2505 = vpop.f32.mrf.mxu0
      %2506 = vmatprep.mubr.f32.mxu0 0.0
      %2507 = vmatmul.mubr.f32.gmra.mxu0 %v2281
      %v2508 = vpop.f32.mrf.mxu0
      %v2509 = vadd.f32 0.0, %v2508
      %v2510 = vpop.f32.mrf.mxu0
      %2511 = vmatprep.mubr.f32.mxu0 0.0
      %2512 = vmatmul.mubr.f32.gmra.mxu0 %v2282
      %v2513 = vpop.f32.mrf.mxu0
      %v2514 = vadd.f32 0.0, %v2513
      %v2515 = vpop.f32.mrf.mxu0
      %2516 = vmatprep.mubr.f32.mxu0 0.0
      %2517 = vmatmul.mubr.f32.gmra.mxu0 %v2283
      %v2518 = vpop.f32.mrf.mxu0
      %v2519 = vadd.f32 0.0, %v2518
      %v2520 = vpop.f32.mrf.mxu0
      %2521 = vmatprep.mubr.f32.mxu0 0.0
      %2522 = vmatmul.mubr.f32.gmra.mxu0 %v2284
      %v2523 = vpop.f32.mrf.mxu0
      %v2524 = vadd.f32 0.0, %v2523
      %v2525 = vpop.f32.mrf.mxu0
      %2526 = vdwg.mxu0
      %v2527 = vadd.f32 %v2220, %v2369
      %v2528 = vadd.f32 %v2221, %v2374
      %v2529 = vadd.f32 %v2222, %v2379
      %v2530 = vadd.f32 %v2223, %v2384
      %v2531 = vadd.f32 %v2224, %v2389
      %v2532 = vadd.f32 %v2225, %v2394
      %v2533 = vadd.f32 %v2226, %v2399
      %v2534 = vadd.f32 %v2227, %v2404
      %v2535 = vadd.f32 %v2228, %v2409
      %v2536 = vadd.f32 %v2229, %v2414
      %v2537 = vadd.f32 %v2230, %v2419
      %v2538 = vadd.f32 %v2231, %v2424
      %v2539 = vadd.f32 %v2232, %v2429
      %v2540 = vadd.f32 %v2233, %v2434
      %v2541 = vadd.f32 %v2234, %v2439
      %v2542 = vadd.f32 %v2235, %v2444
      %v2543 = vadd.f32 %v2236, %v2449
      %v2544 = vadd.f32 %v2237, %v2454
      %v2545 = vadd.f32 %v2238, %v2459
      %v2546 = vadd.f32 %v2239, %v2464
      %v2547 = vadd.f32 %v2240, %v2469
      %v2548 = vadd.f32 %v2241, %v2474
      %v2549 = vadd.f32 %v2242, %v2479
      %v2550 = vadd.f32 %v2243, %v2484
      %v2551 = vadd.f32 %v2244, %v2489
      %v2552 = vadd.f32 %v2245, %v2494
      %v2553 = vadd.f32 %v2246, %v2499
      %v2554 = vadd.f32 %v2247, %v2504
      %v2555 = vadd.f32 %v2248, %v2509
      %v2556 = vadd.f32 %v2249, %v2514
      %v2557 = vadd.f32 %v2250, %v2519
      %v2558 = vadd.f32 %v2251, %v2524
      %v2559 = vld [vmem:[%s2252 + $0x8] sm:$0xff]
      %v2560 = vld [vmem:[%s2252 + $0x10] sm:$0xff]
      %v2561 = vld [vmem:[%s2252 + $0x28] sm:$0xff]
      %v2562 = vld [vmem:[%s2252 + $0x30] sm:$0xff]
      %v2563 = vld [vmem:[%s2252 + $0x48] sm:$0xff]
      %v2564 = vld [vmem:[%s2252 + $0x50] sm:$0xff]
      %v2565 = vld [vmem:[%s2252 + $0x68] sm:$0xff]
      %v2566 = vld [vmem:[%s2252 + $0x70] sm:$0xff]
      %v2567 = vld [vmem:[%s2252 + $0x88] sm:$0xff]
      %v2568 = vld [vmem:[%s2252 + $0x90] sm:$0xff]
      %v2569 = vld [vmem:[%s2252 + $0xa8] sm:$0xff]
      %v2570 = vld [vmem:[%s2252 + $0xb0] sm:$0xff]
      %v2571 = vld [vmem:[%s2252 + $0xc8] sm:$0xff]
      %v2572 = vld [vmem:[%s2252 + $0xd0] sm:$0xff]
      %v2573 = vld [vmem:[%s2252 + $0xe8] sm:$0xff]
      %v2574 = vld [vmem:[%s2252 + $0xf0] sm:$0xff]
      %v2575 = vld [vmem:[%s2252 + $0x108] sm:$0xff]
      %v2576 = vld [vmem:[%s2252 + $0x110] sm:$0xff]
      %v2577 = vld [vmem:[%s2252 + $0x128] sm:$0xff]
      %v2578 = vld [vmem:[%s2252 + $0x130] sm:$0xff]
      %v2579 = vld [vmem:[%s2252 + $0x148] sm:$0xff]
      %v2580 = vld [vmem:[%s2252 + $0x150] sm:$0xff]
      %v2581 = vld [vmem:[%s2252 + $0x168] sm:$0xff]
      %v2582 = vld [vmem:[%s2252 + $0x170] sm:$0xff]
      %v2583 = vld [vmem:[%s2252 + $0x188] sm:$0xff]
      %v2584 = vld [vmem:[%s2252 + $0x190] sm:$0xff]
      %v2585 = vld [vmem:[%s2252 + $0x1a8] sm:$0xff]
      %v2586 = vld [vmem:[%s2252 + $0x1b0] sm:$0xff]
      %v2587 = vld [vmem:[%s2252 + $0x1c8] sm:$0xff]
      %v2588 = vld [vmem:[%s2252 + $0x1d0] sm:$0xff]
      %v2589 = vld [vmem:[%s2252 + $0x1e8] sm:$0xff]
      %v2590 = vld [vmem:[%s2252 + $0x1f0] sm:$0xff]
      %s2591 = scalar_lea.vmem %s3, 896
      %v2592 = vld [vmem:[%s2591] sm:$0xff]
      %v2593 = vld [vmem:[%s2591 + $0x8] sm:$0xff]
      %v2594 = vld [vmem:[%s2591 + $0x10] sm:$0xff]
      %v2595 = vld [vmem:[%s2591 + $0x18] sm:$0xff]
      %v2596 = vld [vmem:[%s2591 + $0x20] sm:$0xff]
      %v2597 = vld [vmem:[%s2591 + $0x28] sm:$0xff]
      %v2598 = vld [vmem:[%s2591 + $0x30] sm:$0xff]
      %v2599 = vld [vmem:[%s2591 + $0x38] sm:$0xff]
      %v2600 = vld [vmem:[%s2591 + $0x40] sm:$0xff]
      %v2601 = vld [vmem:[%s2591 + $0x48] sm:$0xff]
      %v2602 = vld [vmem:[%s2591 + $0x50] sm:$0xff]
      %v2603 = vld [vmem:[%s2591 + $0x58] sm:$0xff]
      %v2604 = vld [vmem:[%s2591 + $0x60] sm:$0xff]
      %v2605 = vld [vmem:[%s2591 + $0x68] sm:$0xff]
      %v2606 = vld [vmem:[%s2591 + $0x70] sm:$0xff]
      %v2607 = vld [vmem:[%s2591 + $0x78] sm:$0xff]
      %2608 = vmatprep.subr.mxu0 0.0
      %2609 = vmatpush1.msra.mxu0 %v2607
      %2610 = vmatprep.subr.mxu0 0.0
      %2611 = vmatpush1.msra.mxu0 %v2606
      %2612 = vmatprep.subr.mxu0 0.0
      %2613 = vmatpush1.msra.mxu0 %v2605
      %2614 = vmatprep.subr.mxu0 0.0
      %2615 = vmatpush1.msra.mxu0 %v2604
      %2616 = vmatprep.subr.mxu0 0.0
      %2617 = vmatpush1.msra.mxu0 %v2603
      %2618 = vmatprep.subr.mxu0 0.0
      %2619 = vmatpush1.msra.mxu0 %v2602
      %2620 = vmatprep.subr.mxu0 0.0
      %2621 = vmatpush1.msra.mxu0 %v2601
      %2622 = vmatprep.subr.mxu0 0.0
      %2623 = vmatpush1.msra.mxu0 %v2600
      %2624 = vmatprep.subr.mxu0 0.0
      %2625 = vmatpush1.msra.mxu0 %v2599
      %2626 = vmatprep.subr.mxu0 0.0
      %2627 = vmatpush1.msra.mxu0 %v2598
      %2628 = vmatprep.subr.mxu0 0.0
      %2629 = vmatpush1.msra.mxu0 %v2597
      %2630 = vmatprep.subr.mxu0 0.0
      %2631 = vmatpush1.msra.mxu0 %v2596
      %2632 = vmatprep.subr.mxu0 0.0
      %2633 = vmatpush1.msra.mxu0 %v2595
      %2634 = vmatprep.subr.mxu0 0.0
      %2635 = vmatpush1.msra.mxu0 %v2594
      %2636 = vmatprep.subr.mxu0 0.0
      %2637 = vmatpush1.msra.mxu0 %v2593
      %2638 = vmatprep.subr.mxu0 0.0
      %2639 = vmatpush1.msra.mxu0 %v2592
      %2640 = vmatprep.subr.mxu0 0.0
      %2641 = vmatpush2.msra.mxu0 0.0
      %2642 = vmatprep.subr.mxu0 0.0
      %2643 = vmatpush2.msra.mxu0 0.0
      %2644 = vmatprep.subr.mxu0 0.0
      %2645 = vmatpush2.msra.mxu0 0.0
      %2646 = vmatprep.subr.mxu0 0.0
      %2647 = vmatpush2.msra.mxu0 0.0
      %2648 = vmatprep.subr.mxu0 0.0
      %2649 = vmatpush2.msra.mxu0 0.0
      %2650 = vmatprep.subr.mxu0 0.0
      %2651 = vmatpush2.msra.mxu0 0.0
      %2652 = vmatprep.subr.mxu0 0.0
      %2653 = vmatpush2.msra.mxu0 0.0
      %2654 = vmatprep.subr.mxu0 0.0
      %2655 = vmatpush2.msra.mxu0 0.0
      %2656 = vmatprep.subr.mxu0 0.0
      %2657 = vmatpush2.msra.mxu0 0.0
      %2658 = vmatprep.subr.mxu0 0.0
      %2659 = vmatpush2.msra.mxu0 0.0
      %2660 = vmatprep.subr.mxu0 0.0
      %2661 = vmatpush2.msra.mxu0 0.0
      %2662 = vmatprep.subr.mxu0 0.0
      %2663 = vmatpush2.msra.mxu0 0.0
      %2664 = vmatprep.subr.mxu0 0.0
      %2665 = vmatpush2.msra.mxu0 0.0
      %2666 = vmatprep.subr.mxu0 0.0
      %2667 = vmatpush2.msra.mxu0 0.0
      %2668 = vmatprep.subr.mxu0 0.0
      %2669 = vmatpush2.msra.mxu0 0.0
      %2670 = vmatprep.subr.mxu0 0.0
      %2671 = vmatpush2.msra.mxu0 0.0
      %2672 = vmatprep.mubr.f32.mxu0 0.0
      %2673 = vmatmul.mubr.f32.gmra.mxu0 %v2559
      %v2674 = vpop.f32.mrf.mxu0
      %v2675 = vadd.f32 0.0, %v2674
      %v2676 = vpop.f32.mrf.mxu0
      %2677 = vmatprep.mubr.f32.mxu0 0.0
      %2678 = vmatmul.mubr.f32.gmra.mxu0 %v2560
      %v2679 = vpop.f32.mrf.mxu0
      %v2680 = vadd.f32 0.0, %v2679
      %v2681 = vpop.f32.mrf.mxu0
      %2682 = vmatprep.mubr.f32.mxu0 0.0
      %2683 = vmatmul.mubr.f32.gmra.mxu0 %v2561
      %v2684 = vpop.f32.mrf.mxu0
      %v2685 = vadd.f32 0.0, %v2684
      %v2686 = vpop.f32.mrf.mxu0
      %2687 = vmatprep.mubr.f32.mxu0 0.0
      %2688 = vmatmul.mubr.f32.gmra.mxu0 %v2562
      %v2689 = vpop.f32.mrf.mxu0
      %v2690 = vadd.f32 0.0, %v2689
      %v2691 = vpop.f32.mrf.mxu0
      %2692 = vmatprep.mubr.f32.mxu0 0.0
      %2693 = vmatmul.mubr.f32.gmra.mxu0 %v2563
      %v2694 = vpop.f32.mrf.mxu0
      %v2695 = vadd.f32 0.0, %v2694
      %v2696 = vpop.f32.mrf.mxu0
      %2697 = vmatprep.mubr.f32.mxu0 0.0
      %2698 = vmatmul.mubr.f32.gmra.mxu0 %v2564
      %v2699 = vpop.f32.mrf.mxu0
      %v2700 = vadd.f32 0.0, %v2699
      %v2701 = vpop.f32.mrf.mxu0
      %2702 = vmatprep.mubr.f32.mxu0 0.0
      %2703 = vmatmul.mubr.f32.gmra.mxu0 %v2565
      %v2704 = vpop.f32.mrf.mxu0
      %v2705 = vadd.f32 0.0, %v2704
      %v2706 = vpop.f32.mrf.mxu0
      %2707 = vmatprep.mubr.f32.mxu0 0.0
      %2708 = vmatmul.mubr.f32.gmra.mxu0 %v2566
      %v2709 = vpop.f32.mrf.mxu0
      %v2710 = vadd.f32 0.0, %v2709
      %v2711 = vpop.f32.mrf.mxu0
      %2712 = vmatprep.mubr.f32.mxu0 0.0
      %2713 = vmatmul.mubr.f32.gmra.mxu0 %v2567
      %v2714 = vpop.f32.mrf.mxu0
      %v2715 = vadd.f32 0.0, %v2714
      %v2716 = vpop.f32.mrf.mxu0
      %2717 = vmatprep.mubr.f32.mxu0 0.0
      %2718 = vmatmul.mubr.f32.gmra.mxu0 %v2568
      %v2719 = vpop.f32.mrf.mxu0
      %v2720 = vadd.f32 0.0, %v2719
      %v2721 = vpop.f32.mrf.mxu0
      %2722 = vmatprep.mubr.f32.mxu0 0.0
      %2723 = vmatmul.mubr.f32.gmra.mxu0 %v2569
      %v2724 = vpop.f32.mrf.mxu0
      %v2725 = vadd.f32 0.0, %v2724
      %v2726 = vpop.f32.mrf.mxu0
      %2727 = vmatprep.mubr.f32.mxu0 0.0
      %2728 = vmatmul.mubr.f32.gmra.mxu0 %v2570
      %v2729 = vpop.f32.mrf.mxu0
      %v2730 = vadd.f32 0.0, %v2729
      %v2731 = vpop.f32.mrf.mxu0
      %2732 = vmatprep.mubr.f32.mxu0 0.0
      %2733 = vmatmul.mubr.f32.gmra.mxu0 %v2571
      %v2734 = vpop.f32.mrf.mxu0
      %v2735 = vadd.f32 0.0, %v2734
      %v2736 = vpop.f32.mrf.mxu0
      %2737 = vmatprep.mubr.f32.mxu0 0.0
      %2738 = vmatmul.mubr.f32.gmra.mxu0 %v2572
      %v2739 = vpop.f32.mrf.mxu0
      %v2740 = vadd.f32 0.0, %v2739
      %v2741 = vpop.f32.mrf.mxu0
      %2742 = vmatprep.mubr.f32.mxu0 0.0
      %2743 = vmatmul.mubr.f32.gmra.mxu0 %v2573
      %v2744 = vpop.f32.mrf.mxu0
      %v2745 = vadd.f32 0.0, %v2744
      %v2746 = vpop.f32.mrf.mxu0
      %2747 = vmatprep.mubr.f32.mxu0 0.0
      %2748 = vmatmul.mubr.f32.gmra.mxu0 %v2574
      %v2749 = vpop.f32.mrf.mxu0
      %v2750 = vadd.f32 0.0, %v2749
      %v2751 = vpop.f32.mrf.mxu0
      %2752 = vmatprep.mubr.f32.mxu0 0.0
      %2753 = vmatmul.mubr.f32.gmra.mxu0 %v2575
      %v2754 = vpop.f32.mrf.mxu0
      %v2755 = vadd.f32 0.0, %v2754
      %v2756 = vpop.f32.mrf.mxu0
      %2757 = vmatprep.mubr.f32.mxu0 0.0
      %2758 = vmatmul.mubr.f32.gmra.mxu0 %v2576
      %v2759 = vpop.f32.mrf.mxu0
      %v2760 = vadd.f32 0.0, %v2759
      %v2761 = vpop.f32.mrf.mxu0
      %2762 = vmatprep.mubr.f32.mxu0 0.0
      %2763 = vmatmul.mubr.f32.gmra.mxu0 %v2577
      %v2764 = vpop.f32.mrf.mxu0
      %v2765 = vadd.f32 0.0, %v2764
      %v2766 = vpop.f32.mrf.mxu0
      %2767 = vmatprep.mubr.f32.mxu0 0.0
      %2768 = vmatmul.mubr.f32.gmra.mxu0 %v2578
      %v2769 = vpop.f32.mrf.mxu0
      %v2770 = vadd.f32 0.0, %v2769
      %v2771 = vpop.f32.mrf.mxu0
      %2772 = vmatprep.mubr.f32.mxu0 0.0
      %2773 = vmatmul.mubr.f32.gmra.mxu0 %v2579
      %v2774 = vpop.f32.mrf.mxu0
      %v2775 = vadd.f32 0.0, %v2774
      %v2776 = vpop.f32.mrf.mxu0
      %2777 = vmatprep.mubr.f32.mxu0 0.0
      %2778 = vmatmul.mubr.f32.gmra.mxu0 %v2580
      %v2779 = vpop.f32.mrf.mxu0
      %v2780 = vadd.f32 0.0, %v2779
      %v2781 = vpop.f32.mrf.mxu0
      %2782 = vmatprep.mubr.f32.mxu0 0.0
      %2783 = vmatmul.mubr.f32.gmra.mxu0 %v2581
      %v2784 = vpop.f32.mrf.mxu0
      %v2785 = vadd.f32 0.0, %v2784
      %v2786 = vpop.f32.mrf.mxu0
      %2787 = vmatprep.mubr.f32.mxu0 0.0
      %2788 = vmatmul.mubr.f32.gmra.mxu0 %v2582
      %v2789 = vpop.f32.mrf.mxu0
      %v2790 = vadd.f32 0.0, %v2789
      %v2791 = vpop.f32.mrf.mxu0
      %2792 = vmatprep.mubr.f32.mxu0 0.0
      %2793 = vmatmul.mubr.f32.gmra.mxu0 %v2583
      %v2794 = vpop.f32.mrf.mxu0
      %v2795 = vadd.f32 0.0, %v2794
      %v2796 = vpop.f32.mrf.mxu0
      %2797 = vmatprep.mubr.f32.mxu0 0.0
      %2798 = vmatmul.mubr.f32.gmra.mxu0 %v2584
      %v2799 = vpop.f32.mrf.mxu0
      %v2800 = vadd.f32 0.0, %v2799
      %v2801 = vpop.f32.mrf.mxu0
      %2802 = vmatprep.mubr.f32.mxu0 0.0
      %2803 = vmatmul.mubr.f32.gmra.mxu0 %v2585
      %v2804 = vpop.f32.mrf.mxu0
      %v2805 = vadd.f32 0.0, %v2804
      %v2806 = vpop.f32.mrf.mxu0
      %2807 = vmatprep.mubr.f32.mxu0 0.0
      %2808 = vmatmul.mubr.f32.gmra.mxu0 %v2586
      %v2809 = vpop.f32.mrf.mxu0
      %v2810 = vadd.f32 0.0, %v2809
      %v2811 = vpop.f32.mrf.mxu0
      %2812 = vmatprep.mubr.f32.mxu0 0.0
      %2813 = vmatmul.mubr.f32.gmra.mxu0 %v2587
      %v2814 = vpop.f32.mrf.mxu0
      %v2815 = vadd.f32 0.0, %v2814
      %v2816 = vpop.f32.mrf.mxu0
      %2817 = vmatprep.mubr.f32.mxu0 0.0
      %2818 = vmatmul.mubr.f32.gmra.mxu0 %v2588
      %v2819 = vpop.f32.mrf.mxu0
      %v2820 = vadd.f32 0.0, %v2819
      %v2821 = vpop.f32.mrf.mxu0
      %2822 = vmatprep.mubr.f32.mxu0 0.0
      %2823 = vmatmul.mubr.f32.gmra.mxu0 %v2589
      %v2824 = vpop.f32.mrf.mxu0
      %v2825 = vadd.f32 0.0, %v2824
      %v2826 = vpop.f32.mrf.mxu0
      %2827 = vmatprep.mubr.f32.mxu0 0.0
      %2828 = vmatmul.mubr.f32.gmra.mxu0 %v2590
      %v2829 = vpop.f32.mrf.mxu0
      %v2830 = vadd.f32 0.0, %v2829
      %v2831 = vpop.f32.mrf.mxu0
      %2832 = vdwg.mxu0
      %v2833 = vadd.f32 %v2527, %v2675
      %v2834 = vadd.f32 %v2528, %v2680
      %v2835 = vadd.f32 %v2529, %v2685
      %v2836 = vadd.f32 %v2530, %v2690
      %v2837 = vadd.f32 %v2531, %v2695
      %v2838 = vadd.f32 %v2532, %v2700
      %v2839 = vadd.f32 %v2533, %v2705
      %v2840 = vadd.f32 %v2534, %v2710
      %v2841 = vadd.f32 %v2535, %v2715
      %v2842 = vadd.f32 %v2536, %v2720
      %v2843 = vadd.f32 %v2537, %v2725
      %v2844 = vadd.f32 %v2538, %v2730
      %v2845 = vadd.f32 %v2539, %v2735
      %v2846 = vadd.f32 %v2540, %v2740
      %v2847 = vadd.f32 %v2541, %v2745
      %v2848 = vadd.f32 %v2542, %v2750
      %v2849 = vadd.f32 %v2543, %v2755
      %v2850 = vadd.f32 %v2544, %v2760
      %v2851 = vadd.f32 %v2545, %v2765
      %v2852 = vadd.f32 %v2546, %v2770
      %v2853 = vadd.f32 %v2547, %v2775
      %v2854 = vadd.f32 %v2548, %v2780
      %v2855 = vadd.f32 %v2549, %v2785
      %v2856 = vadd.f32 %v2550, %v2790
      %v2857 = vadd.f32 %v2551, %v2795
      %v2858 = vadd.f32 %v2552, %v2800
      %v2859 = vadd.f32 %v2553, %v2805
      %v2860 = vadd.f32 %v2554, %v2810
      %v2861 = vadd.f32 %v2555, %v2815
      %v2862 = vadd.f32 %v2556, %v2820
      %v2863 = vadd.f32 %v2557, %v2825
      %v2864 = vadd.f32 %v2558, %v2830
      %v2865 = vld [vmem:[%s2252 + $0x9] sm:$0xff]
      %v2866 = vld [vmem:[%s2252 + $0x11] sm:$0xff]
      %v2867 = vld [vmem:[%s2252 + $0x29] sm:$0xff]
      %v2868 = vld [vmem:[%s2252 + $0x31] sm:$0xff]
      %v2869 = vld [vmem:[%s2252 + $0x49] sm:$0xff]
      %v2870 = vld [vmem:[%s2252 + $0x51] sm:$0xff]
      %v2871 = vld [vmem:[%s2252 + $0x69] sm:$0xff]
      %v2872 = vld [vmem:[%s2252 + $0x71] sm:$0xff]
      %v2873 = vld [vmem:[%s2252 + $0x89] sm:$0xff]
      %v2874 = vld [vmem:[%s2252 + $0x91] sm:$0xff]
      %v2875 = vld [vmem:[%s2252 + $0xa9] sm:$0xff]
      %v2876 = vld [vmem:[%s2252 + $0xb1] sm:$0xff]
      %v2877 = vld [vmem:[%s2252 + $0xc9] sm:$0xff]
      %v2878 = vld [vmem:[%s2252 + $0xd1] sm:$0xff]
      %v2879 = vld [vmem:[%s2252 + $0xe9] sm:$0xff]
      %v2880 = vld [vmem:[%s2252 + $0xf1] sm:$0xff]
      %v2881 = vld [vmem:[%s2252 + $0x109] sm:$0xff]
      %v2882 = vld [vmem:[%s2252 + $0x111] sm:$0xff]
      %v2883 = vld [vmem:[%s2252 + $0x129] sm:$0xff]
      %v2884 = vld [vmem:[%s2252 + $0x131] sm:$0xff]
      %v2885 = vld [vmem:[%s2252 + $0x149] sm:$0xff]
      %v2886 = vld [vmem:[%s2252 + $0x151] sm:$0xff]
      %v2887 = vld [vmem:[%s2252 + $0x169] sm:$0xff]
      %v2888 = vld [vmem:[%s2252 + $0x171] sm:$0xff]
      %v2889 = vld [vmem:[%s2252 + $0x189] sm:$0xff]
      %v2890 = vld [vmem:[%s2252 + $0x191] sm:$0xff]
      %v2891 = vld [vmem:[%s2252 + $0x1a9] sm:$0xff]
      %v2892 = vld [vmem:[%s2252 + $0x1b1] sm:$0xff]
      %v2893 = vld [vmem:[%s2252 + $0x1c9] sm:$0xff]
      %v2894 = vld [vmem:[%s2252 + $0x1d1] sm:$0xff]
      %v2895 = vld [vmem:[%s2252 + $0x1e9] sm:$0xff]
      %v2896 = vld [vmem:[%s2252 + $0x1f1] sm:$0xff]
      %s2897 = scalar_lea.vmem %s3, 1024
      %v2898 = vld [vmem:[%s2897] sm:$0xff]
      %v2899 = vld [vmem:[%s2897 + $0x8] sm:$0xff]
      %v2900 = vld [vmem:[%s2897 + $0x10] sm:$0xff]
      %v2901 = vld [vmem:[%s2897 + $0x18] sm:$0xff]
      %v2902 = vld [vmem:[%s2897 + $0x20] sm:$0xff]
      %v2903 = vld [vmem:[%s2897 + $0x28] sm:$0xff]
      %v2904 = vld [vmem:[%s2897 + $0x30] sm:$0xff]
      %v2905 = vld [vmem:[%s2897 + $0x38] sm:$0xff]
      %v2906 = vld [vmem:[%s2897 + $0x40] sm:$0xff]
      %v2907 = vld [vmem:[%s2897 + $0x48] sm:$0xff]
      %v2908 = vld [vmem:[%s2897 + $0x50] sm:$0xff]
      %v2909 = vld [vmem:[%s2897 + $0x58] sm:$0xff]
      %v2910 = vld [vmem:[%s2897 + $0x60] sm:$0xff]
      %v2911 = vld [vmem:[%s2897 + $0x68] sm:$0xff]
      %v2912 = vld [vmem:[%s2897 + $0x70] sm:$0xff]
      %v2913 = vld [vmem:[%s2897 + $0x78] sm:$0xff]
      %2914 = vmatprep.subr.mxu0 0.0
      %2915 = vmatpush1.msra.mxu0 %v2913
      %2916 = vmatprep.subr.mxu0 0.0
      %2917 = vmatpush1.msra.mxu0 %v2912
      %2918 = vmatprep.subr.mxu0 0.0
      %2919 = vmatpush1.msra.mxu0 %v2911
      %2920 = vmatprep.subr.mxu0 0.0
      %2921 = vmatpush1.msra.mxu0 %v2910
      %2922 = vmatprep.subr.mxu0 0.0
      %2923 = vmatpush1.msra.mxu0 %v2909
      %2924 = vmatprep.subr.mxu0 0.0
      %2925 = vmatpush1.msra.mxu0 %v2908
      %2926 = vmatprep.subr.mxu0 0.0
      %2927 = vmatpush1.msra.mxu0 %v2907
      %2928 = vmatprep.subr.mxu0 0.0
      %2929 = vmatpush1.msra.mxu0 %v2906
      %2930 = vmatprep.subr.mxu0 0.0
      %2931 = vmatpush1.msra.mxu0 %v2905
      %2932 = vmatprep.subr.mxu0 0.0
      %2933 = vmatpush1.msra.mxu0 %v2904
      %2934 = vmatprep.subr.mxu0 0.0
      %2935 = vmatpush1.msra.mxu0 %v2903
      %2936 = vmatprep.subr.mxu0 0.0
      %2937 = vmatpush1.msra.mxu0 %v2902
      %2938 = vmatprep.subr.mxu0 0.0
      %2939 = vmatpush1.msra.mxu0 %v2901
      %2940 = vmatprep.subr.mxu0 0.0
      %2941 = vmatpush1.msra.mxu0 %v2900
      %2942 = vmatprep.subr.mxu0 0.0
      %2943 = vmatpush1.msra.mxu0 %v2899
      %2944 = vmatprep.subr.mxu0 0.0
      %2945 = vmatpush1.msra.mxu0 %v2898
      %2946 = vmatprep.subr.mxu0 0.0
      %2947 = vmatpush2.msra.mxu0 0.0
      %2948 = vmatprep.subr.mxu0 0.0
      %2949 = vmatpush2.msra.mxu0 0.0
      %2950 = vmatprep.subr.mxu0 0.0
      %2951 = vmatpush2.msra.mxu0 0.0
      %2952 = vmatprep.subr.mxu0 0.0
      %2953 = vmatpush2.msra.mxu0 0.0
      %2954 = vmatprep.subr.mxu0 0.0
      %2955 = vmatpush2.msra.mxu0 0.0
      %2956 = vmatprep.subr.mxu0 0.0
      %2957 = vmatpush2.msra.mxu0 0.0
      %2958 = vmatprep.subr.mxu0 0.0
      %2959 = vmatpush2.msra.mxu0 0.0
      %2960 = vmatprep.subr.mxu0 0.0
      %2961 = vmatpush2.msra.mxu0 0.0
      %2962 = vmatprep.subr.mxu0 0.0
      %2963 = vmatpush2.msra.mxu0 0.0
      %2964 = vmatprep.subr.mxu0 0.0
      %2965 = vmatpush2.msra.mxu0 0.0
      %2966 = vmatprep.subr.mxu0 0.0
      %2967 = vmatpush2.msra.mxu0 0.0
      %2968 = vmatprep.subr.mxu0 0.0
      %2969 = vmatpush2.msra.mxu0 0.0
      %2970 = vmatprep.subr.mxu0 0.0
      %2971 = vmatpush2.msra.mxu0 0.0
      %2972 = vmatprep.subr.mxu0 0.0
      %2973 = vmatpush2.msra.mxu0 0.0
      %2974 = vmatprep.subr.mxu0 0.0
      %2975 = vmatpush2.msra.mxu0 0.0
      %2976 = vmatprep.subr.mxu0 0.0
      %2977 = vmatpush2.msra.mxu0 0.0
      %2978 = vmatprep.mubr.f32.mxu0 0.0
      %2979 = vmatmul.mubr.f32.gmra.mxu0 %v2865
      %v2980 = vpop.f32.mrf.mxu0
      %v2981 = vadd.f32 0.0, %v2980
      %v2982 = vpop.f32.mrf.mxu0
      %2983 = vmatprep.mubr.f32.mxu0 0.0
      %2984 = vmatmul.mubr.f32.gmra.mxu0 %v2866
      %v2985 = vpop.f32.mrf.mxu0
      %v2986 = vadd.f32 0.0, %v2985
      %v2987 = vpop.f32.mrf.mxu0
      %2988 = vmatprep.mubr.f32.mxu0 0.0
      %2989 = vmatmul.mubr.f32.gmra.mxu0 %v2867
      %v2990 = vpop.f32.mrf.mxu0
      %v2991 = vadd.f32 0.0, %v2990
      %v2992 = vpop.f32.mrf.mxu0
      %2993 = vmatprep.mubr.f32.mxu0 0.0
      %2994 = vmatmul.mubr.f32.gmra.mxu0 %v2868
      %v2995 = vpop.f32.mrf.mxu0
      %v2996 = vadd.f32 0.0, %v2995
      %v2997 = vpop.f32.mrf.mxu0
      %2998 = vmatprep.mubr.f32.mxu0 0.0
      %2999 = vmatmul.mubr.f32.gmra.mxu0 %v2869
      %v3000 = vpop.f32.mrf.mxu0
      %v3001 = vadd.f32 0.0, %v3000
      %v3002 = vpop.f32.mrf.mxu0
      %3003 = vmatprep.mubr.f32.mxu0 0.0
      %3004 = vmatmul.mubr.f32.gmra.mxu0 %v2870
      %v3005 = vpop.f32.mrf.mxu0
      %v3006 = vadd.f32 0.0, %v3005
      %v3007 = vpop.f32.mrf.mxu0
      %3008 = vmatprep.mubr.f32.mxu0 0.0
      %3009 = vmatmul.mubr.f32.gmra.mxu0 %v2871
      %v3010 = vpop.f32.mrf.mxu0
      %v3011 = vadd.f32 0.0, %v3010
      %v3012 = vpop.f32.mrf.mxu0
      %3013 = vmatprep.mubr.f32.mxu0 0.0
      %3014 = vmatmul.mubr.f32.gmra.mxu0 %v2872
      %v3015 = vpop.f32.mrf.mxu0
      %v3016 = vadd.f32 0.0, %v3015
      %v3017 = vpop.f32.mrf.mxu0
      %3018 = vmatprep.mubr.f32.mxu0 0.0
      %3019 = vmatmul.mubr.f32.gmra.mxu0 %v2873
      %v3020 = vpop.f32.mrf.mxu0
      %v3021 = vadd.f32 0.0, %v3020
      %v3022 = vpop.f32.mrf.mxu0
      %3023 = vmatprep.mubr.f32.mxu0 0.0
      %3024 = vmatmul.mubr.f32.gmra.mxu0 %v2874
      %v3025 = vpop.f32.mrf.mxu0
      %v3026 = vadd.f32 0.0, %v3025
      %v3027 = vpop.f32.mrf.mxu0
      %3028 = vmatprep.mubr.f32.mxu0 0.0
      %3029 = vmatmul.mubr.f32.gmra.mxu0 %v2875
      %v3030 = vpop.f32.mrf.mxu0
      %v3031 = vadd.f32 0.0, %v3030
      %v3032 = vpop.f32.mrf.mxu0
      %3033 = vmatprep.mubr.f32.mxu0 0.0
      %3034 = vmatmul.mubr.f32.gmra.mxu0 %v2876
      %v3035 = vpop.f32.mrf.mxu0
      %v3036 = vadd.f32 0.0, %v3035
      %v3037 = vpop.f32.mrf.mxu0
      %3038 = vmatprep.mubr.f32.mxu0 0.0
      %3039 = vmatmul.mubr.f32.gmra.mxu0 %v2877
      %v3040 = vpop.f32.mrf.mxu0
      %v3041 = vadd.f32 0.0, %v3040
      %v3042 = vpop.f32.mrf.mxu0
      %3043 = vmatprep.mubr.f32.mxu0 0.0
      %3044 = vmatmul.mubr.f32.gmra.mxu0 %v2878
      %v3045 = vpop.f32.mrf.mxu0
      %v3046 = vadd.f32 0.0, %v3045
      %v3047 = vpop.f32.mrf.mxu0
      %3048 = vmatprep.mubr.f32.mxu0 0.0
      %3049 = vmatmul.mubr.f32.gmra.mxu0 %v2879
      %v3050 = vpop.f32.mrf.mxu0
      %v3051 = vadd.f32 0.0, %v3050
      %v3052 = vpop.f32.mrf.mxu0
      %3053 = vmatprep.mubr.f32.mxu0 0.0
      %3054 = vmatmul.mubr.f32.gmra.mxu0 %v2880
      %v3055 = vpop.f32.mrf.mxu0
      %v3056 = vadd.f32 0.0, %v3055
      %v3057 = vpop.f32.mrf.mxu0
      %3058 = vmatprep.mubr.f32.mxu0 0.0
      %3059 = vmatmul.mubr.f32.gmra.mxu0 %v2881
      %v3060 = vpop.f32.mrf.mxu0
      %v3061 = vadd.f32 0.0, %v3060
      %v3062 = vpop.f32.mrf.mxu0
      %3063 = vmatprep.mubr.f32.mxu0 0.0
      %3064 = vmatmul.mubr.f32.gmra.mxu0 %v2882
      %v3065 = vpop.f32.mrf.mxu0
      %v3066 = vadd.f32 0.0, %v3065
      %v3067 = vpop.f32.mrf.mxu0
      %3068 = vmatprep.mubr.f32.mxu0 0.0
      %3069 = vmatmul.mubr.f32.gmra.mxu0 %v2883
      %v3070 = vpop.f32.mrf.mxu0
      %v3071 = vadd.f32 0.0, %v3070
      %v3072 = vpop.f32.mrf.mxu0
      %3073 = vmatprep.mubr.f32.mxu0 0.0
      %3074 = vmatmul.mubr.f32.gmra.mxu0 %v2884
      %v3075 = vpop.f32.mrf.mxu0
      %v3076 = vadd.f32 0.0, %v3075
      %v3077 = vpop.f32.mrf.mxu0
      %3078 = vmatprep.mubr.f32.mxu0 0.0
      %3079 = vmatmul.mubr.f32.gmra.mxu0 %v2885
      %v3080 = vpop.f32.mrf.mxu0
      %v3081 = vadd.f32 0.0, %v3080
      %v3082 = vpop.f32.mrf.mxu0
      %3083 = vmatprep.mubr.f32.mxu0 0.0
      %3084 = vmatmul.mubr.f32.gmra.mxu0 %v2886
      %v3085 = vpop.f32.mrf.mxu0
      %v3086 = vadd.f32 0.0, %v3085
      %v3087 = vpop.f32.mrf.mxu0
      %3088 = vmatprep.mubr.f32.mxu0 0.0
      %3089 = vmatmul.mubr.f32.gmra.mxu0 %v2887
      %v3090 = vpop.f32.mrf.mxu0
      %v3091 = vadd.f32 0.0, %v3090
      %v3092 = vpop.f32.mrf.mxu0
      %3093 = vmatprep.mubr.f32.mxu0 0.0
      %3094 = vmatmul.mubr.f32.gmra.mxu0 %v2888
      %v3095 = vpop.f32.mrf.mxu0
      %v3096 = vadd.f32 0.0, %v3095
      %v3097 = vpop.f32.mrf.mxu0
      %3098 = vmatprep.mubr.f32.mxu0 0.0
      %3099 = vmatmul.mubr.f32.gmra.mxu0 %v2889
      %v3100 = vpop.f32.mrf.mxu0
      %v3101 = vadd.f32 0.0, %v3100
      %v3102 = vpop.f32.mrf.mxu0
      %3103 = vmatprep.mubr.f32.mxu0 0.0
      %3104 = vmatmul.mubr.f32.gmra.mxu0 %v2890
      %v3105 = vpop.f32.mrf.mxu0
      %v3106 = vadd.f32 0.0, %v3105
      %v3107 = vpop.f32.mrf.mxu0
      %3108 = vmatprep.mubr.f32.mxu0 0.0
      %3109 = vmatmul.mubr.f32.gmra.mxu0 %v2891
      %v3110 = vpop.f32.mrf.mxu0
      %v3111 = vadd.f32 0.0, %v3110
      %v3112 = vpop.f32.mrf.mxu0
      %3113 = vmatprep.mubr.f32.mxu0 0.0
      %3114 = vmatmul.mubr.f32.gmra.mxu0 %v2892
      %v3115 = vpop.f32.mrf.mxu0
      %v3116 = vadd.f32 0.0, %v3115
      %v3117 = vpop.f32.mrf.mxu0
      %3118 = vmatprep.mubr.f32.mxu0 0.0
      %3119 = vmatmul.mubr.f32.gmra.mxu0 %v2893
      %v3120 = vpop.f32.mrf.mxu0
      %v3121 = vadd.f32 0.0, %v3120
      %v3122 = vpop.f32.mrf.mxu0
      %3123 = vmatprep.mubr.f32.mxu0 0.0
      %3124 = vmatmul.mubr.f32.gmra.mxu0 %v2894
      %v3125 = vpop.f32.mrf.mxu0
      %v3126 = vadd.f32 0.0, %v3125
      %v3127 = vpop.f32.mrf.mxu0
      %3128 = vmatprep.mubr.f32.mxu0 0.0
      %3129 = vmatmul.mubr.f32.gmra.mxu0 %v2895
      %v3130 = vpop.f32.mrf.mxu0
      %v3131 = vadd.f32 0.0, %v3130
      %v3132 = vpop.f32.mrf.mxu0
      %3133 = vmatprep.mubr.f32.mxu0 0.0
      %3134 = vmatmul.mubr.f32.gmra.mxu0 %v2896
      %v3135 = vpop.f32.mrf.mxu0
      %v3136 = vadd.f32 0.0, %v3135
      %v3137 = vpop.f32.mrf.mxu0
      %3138 = vdwg.mxu0
      %v3139 = vadd.f32 %v2833, %v2981
      %v3140 = vadd.f32 %v2834, %v2986
      %v3141 = vadd.f32 %v2835, %v2991
      %v3142 = vadd.f32 %v2836, %v2996
      %v3143 = vadd.f32 %v2837, %v3001
      %v3144 = vadd.f32 %v2838, %v3006
      %v3145 = vadd.f32 %v2839, %v3011
      %v3146 = vadd.f32 %v2840, %v3016
      %v3147 = vadd.f32 %v2841, %v3021
      %v3148 = vadd.f32 %v2842, %v3026
      %v3149 = vadd.f32 %v2843, %v3031
      %v3150 = vadd.f32 %v2844, %v3036
      %v3151 = vadd.f32 %v2845, %v3041
      %v3152 = vadd.f32 %v2846, %v3046
      %v3153 = vadd.f32 %v2847, %v3051
      %v3154 = vadd.f32 %v2848, %v3056
      %v3155 = vadd.f32 %v2849, %v3061
      %v3156 = vadd.f32 %v2850, %v3066
      %v3157 = vadd.f32 %v2851, %v3071
      %v3158 = vadd.f32 %v2852, %v3076
      %v3159 = vadd.f32 %v2853, %v3081
      %v3160 = vadd.f32 %v2854, %v3086
      %v3161 = vadd.f32 %v2855, %v3091
      %v3162 = vadd.f32 %v2856, %v3096
      %v3163 = vadd.f32 %v2857, %v3101
      %v3164 = vadd.f32 %v2858, %v3106
      %v3165 = vadd.f32 %v2859, %v3111
      %v3166 = vadd.f32 %v2860, %v3116
      %v3167 = vadd.f32 %v2861, %v3121
      %v3168 = vadd.f32 %v2862, %v3126
      %v3169 = vadd.f32 %v2863, %v3131
      %v3170 = vadd.f32 %v2864, %v3136
      %v3171 = vld [vmem:[%s4] sm:$0x1]
      %v3173 = vlaneseq
      %v3174 = vshrl.u32 %v3173, 7
      %v3175 = vsub.s32 0, %v3174
      %v3176 = vrot.slane %v3171, %v3175
      %v3178 = vadd.f32 %v3139, %v3176
      %v3179 = vadd.f32 %v3140, %v3176
      %v3180 = vadd.f32 %v3141, %v3176
      %v3181 = vadd.f32 %v3142, %v3176
      %v3182 = vadd.f32 %v3143, %v3176
      %v3183 = vadd.f32 %v3144, %v3176
      %v3184 = vadd.f32 %v3145, %v3176
      %v3185 = vadd.f32 %v3146, %v3176
      %v3186 = vadd.f32 %v3147, %v3176
      %v3187 = vadd.f32 %v3148, %v3176
      %v3188 = vadd.f32 %v3149, %v3176
      %v3189 = vadd.f32 %v3150, %v3176
      %v3190 = vadd.f32 %v3151, %v3176
      %v3191 = vadd.f32 %v3152, %v3176
      %v3192 = vadd.f32 %v3153, %v3176
      %v3193 = vadd.f32 %v3154, %v3176
      %v3194 = vadd.f32 %v3155, %v3176
      %v3195 = vadd.f32 %v3156, %v3176
      %v3196 = vadd.f32 %v3157, %v3176
      %v3197 = vadd.f32 %v3158, %v3176
      %v3198 = vadd.f32 %v3159, %v3176
      %v3199 = vadd.f32 %v3160, %v3176
      %v3200 = vadd.f32 %v3161, %v3176
      %v3201 = vadd.f32 %v3162, %v3176
      %v3202 = vadd.f32 %v3163, %v3176
      %v3203 = vadd.f32 %v3164, %v3176
      %v3204 = vadd.f32 %v3165, %v3176
      %v3205 = vadd.f32 %v3166, %v3176
      %v3206 = vadd.f32 %v3167, %v3176
      %v3207 = vadd.f32 %v3168, %v3176
      %v3208 = vadd.f32 %v3169, %v3176
      %v3209 = vadd.f32 %v3170, %v3176
      %3210 = vst [vmem:[%s258] sm:$0xff] %v3178
      %3211 = vst [vmem:[%s258 + $0x8] sm:$0xff] %v3179
      %3212 = vst [vmem:[%s258 + $0x10] sm:$0xff] %v3180
      %3213 = vst [vmem:[%s258 + $0x18] sm:$0xff] %v3181
      %3214 = vst [vmem:[%s258 + $0x20] sm:$0xff] %v3182
      %3215 = vst [vmem:[%s258 + $0x28] sm:$0xff] %v3183
      %3216 = vst [vmem:[%s258 + $0x30] sm:$0xff] %v3184
      %3217 = vst [vmem:[%s258 + $0x38] sm:$0xff] %v3185
      %3218 = vst [vmem:[%s258 + $0x40] sm:$0xff] %v3186
      %3219 = vst [vmem:[%s258 + $0x48] sm:$0xff] %v3187
      %3220 = vst [vmem:[%s258 + $0x50] sm:$0xff] %v3188
      %3221 = vst [vmem:[%s258 + $0x58] sm:$0xff] %v3189
      %3222 = vst [vmem:[%s258 + $0x60] sm:$0xff] %v3190
      %3223 = vst [vmem:[%s258 + $0x68] sm:$0xff] %v3191
      %3224 = vst [vmem:[%s258 + $0x70] sm:$0xff] %v3192
      %3225 = vst [vmem:[%s258 + $0x78] sm:$0xff] %v3193
      %3226 = vst [vmem:[%s258 + $0x80] sm:$0xff] %v3194
      %3227 = vst [vmem:[%s258 + $0x88] sm:$0xff] %v3195
      %3228 = vst [vmem:[%s258 + $0x90] sm:$0xff] %v3196
      %3229 = vst [vmem:[%s258 + $0x98] sm:$0xff] %v3197
      %3230 = vst [vmem:[%s258 + $0xa0] sm:$0xff] %v3198
      %3231 = vst [vmem:[%s258 + $0xa8] sm:$0xff] %v3199
      %3232 = vst [vmem:[%s258 + $0xb0] sm:$0xff] %v3200
      %3233 = vst [vmem:[%s258 + $0xb8] sm:$0xff] %v3201
      %3234 = vst [vmem:[%s258 + $0xc0] sm:$0xff] %v3202
      %3235 = vst [vmem:[%s258 + $0xc8] sm:$0xff] %v3203
      %3236 = vst [vmem:[%s258 + $0xd0] sm:$0xff] %v3204
      %3237 = vst [vmem:[%s258 + $0xd8] sm:$0xff] %v3205
      %3238 = vst [vmem:[%s258 + $0xe0] sm:$0xff] %v3206
      %3239 = vst [vmem:[%s258 + $0xe8] sm:$0xff] %v3207
      %3240 = vst [vmem:[%s258 + $0xf0] sm:$0xff] %v3208
      %3241 = vst [vmem:[%s258 + $0xf8] sm:$0xff] %v3209
      %v3242 = vadd.f32 %v3178, %v3179
      %v3243 = vadd.f32 %v3242, %v3180
      %v3244 = vadd.f32 %v3243, %v3181
      %v3245 = vadd.f32 %v3244, %v3182
      %v3246 = vadd.f32 %v3245, %v3183
      %v3247 = vadd.f32 %v3246, %v3184
      %v3248 = vadd.f32 %v3247, %v3185
      %v3249 = vadd.f32 %v3248, %v3186
      %v3250 = vadd.f32 %v3249, %v3187
      %v3251 = vadd.f32 %v3250, %v3188
      %v3252 = vadd.f32 %v3251, %v3189
      %v3253 = vadd.f32 %v3252, %v3190
      %v3254 = vadd.f32 %v3253, %v3191
      %v3255 = vadd.f32 %v3254, %v3192
      %v3256 = vadd.f32 %v3255, %v3193
      %v3257 = vadd.f32 %v3256, %v3194
      %v3258 = vadd.f32 %v3257, %v3195
      %v3259 = vadd.f32 %v3258, %v3196
      %v3260 = vadd.f32 %v3259, %v3197
      %v3261 = vadd.f32 %v3260, %v3198
      %v3262 = vadd.f32 %v3261, %v3199
      %v3263 = vadd.f32 %v3262, %v3200
      %v3264 = vadd.f32 %v3263, %v3201
      %v3265 = vadd.f32 %v3264, %v3202
      %v3266 = vadd.f32 %v3265, %v3203
      %v3267 = vadd.f32 %v3266, %v3204
      %v3268 = vadd.f32 %v3267, %v3205
      %v3269 = vadd.f32 %v3268, %v3206
      %v3270 = vadd.f32 %v3269, %v3207
      %v3271 = vadd.f32 %v3270, %v3208
      %v3272 = vadd.f32 %v3271, %v3209
      %v3273 = vrot.slane %v3272, 4
      %v3274 = vadd.f32 %v3272, %v3273
      %v3275 = vrot.slane %v3274, 2
      %v3276 = vadd.f32 %v3274, %v3275
      %v3277 = vrot.slane %v3276, 1
      %v3278 = vadd.f32 %v3276, %v3277
      %v3279 = vmul.f32 %v3178, %v3178
      %v3280 = vmul.f32 %v3179, %v3179
      %v3281 = vmul.f32 %v3180, %v3180
      %v3282 = vmul.f32 %v3181, %v3181
      %v3283 = vmul.f32 %v3182, %v3182
      %v3284 = vmul.f32 %v3183, %v3183
      %v3285 = vmul.f32 %v3184, %v3184
      %v3286 = vmul.f32 %v3185, %v3185
      %v3287 = vmul.f32 %v3186, %v3186
      %v3288 = vmul.f32 %v3187, %v3187
      %v3289 = vmul.f32 %v3188, %v3188
      %v3290 = vmul.f32 %v3189, %v3189
      %v3291 = vmul.f32 %v3190, %v3190
      %v3292 = vmul.f32 %v3191, %v3191
      %v3293 = vmul.f32 %v3192, %v3192
      %v3294 = vmul.f32 %v3193, %v3193
      %v3295 = vmul.f32 %v3194, %v3194
      %v3296 = vmul.f32 %v3195, %v3195
      %v3297 = vmul.f32 %v3196, %v3196
      %v3298 = vmul.f32 %v3197, %v3197
      %v3299 = vmul.f32 %v3198, %v3198
      %v3300 = vmul.f32 %v3199, %v3199
      %v3301 = vmul.f32 %v3200, %v3200
      %v3302 = vmul.f32 %v3201, %v3201
      %v3303 = vmul.f32 %v3202, %v3202
      %v3304 = vmul.f32 %v3203, %v3203
      %v3305 = vmul.f32 %v3204, %v3204
      %v3306 = vmul.f32 %v3205, %v3205
      %v3307 = vmul.f32 %v3206, %v3206
      %v3308 = vmul.f32 %v3207, %v3207
      %v3309 = vmul.f32 %v3208, %v3208
      %v3310 = vmul.f32 %v3209, %v3209
      %v3311 = vadd.f32 %v3279, %v3280
      %v3312 = vadd.f32 %v3311, %v3281
      %v3313 = vadd.f32 %v3312, %v3282
      %v3314 = vadd.f32 %v3313, %v3283
      %v3315 = vadd.f32 %v3314, %v3284
      %v3316 = vadd.f32 %v3315, %v3285
      %v3317 = vadd.f32 %v3316, %v3286
      %v3318 = vadd.f32 %v3317, %v3287
      %v3319 = vadd.f32 %v3318, %v3288
      %v3320 = vadd.f32 %v3319, %v3289
      %v3321 = vadd.f32 %v3320, %v3290
      %v3322 = vadd.f32 %v3321, %v3291
      %v3323 = vadd.f32 %v3322, %v3292
      %v3324 = vadd.f32 %v3323, %v3293
      %v3325 = vadd.f32 %v3324, %v3294
      %v3326 = vadd.f32 %v3325, %v3295
      %v3327 = vadd.f32 %v3326, %v3296
      %v3328 = vadd.f32 %v3327, %v3297
      %v3329 = vadd.f32 %v3328, %v3298
      %v3330 = vadd.f32 %v3329, %v3299
      %v3331 = vadd.f32 %v3330, %v3300
      %v3332 = vadd.f32 %v3331, %v3301
      %v3333 = vadd.f32 %v3332, %v3302
      %v3334 = vadd.f32 %v3333, %v3303
      %v3335 = vadd.f32 %v3334, %v3304
      %v3336 = vadd.f32 %v3335, %v3305
      %v3337 = vadd.f32 %v3336, %v3306
      %v3338 = vadd.f32 %v3337, %v3307
      %v3339 = vadd.f32 %v3338, %v3308
      %v3340 = vadd.f32 %v3339, %v3309
      %v3341 = vadd.f32 %v3340, %v3310
      %v3342 = vrot.slane %v3341, 4
      %v3343 = vadd.f32 %v3341, %v3342
      %v3344 = vrot.slane %v3343, 2
      %v3345 = vadd.f32 %v3343, %v3344
      %v3346 = vrot.slane %v3345, 1
      %v3347 = vadd.f32 %v3345, %v3346
      %vm3348 = vcmask 1040384
      %v3349 = vsel %vm3348, %v3278, %v3347
      %3350 = vst [vmem:[%s262] sm:$0x3] %v3349
      %p3351 = scmp.lt.s32.totalorder %s18, 1
      %s3352 = scalar_select %p3351, %s18, 1
      %s3353 = smul.addr %s3352, 32
      %s3354 = smul.addr %s3353, 8
      %s3355 = scalar_lea.vmem %s5, %s3354
      %p3356 = scmp.lt.s32.totalorder %s18, 1
      %s3357 = scalar_select %p3356, %s18, 1
      %s3358 = smul.addr %s3357, 2
      %s3359 = scalar_lea.vmem %s6, %s3358
      // Predicated region
      $region41: #{double_conv.4} parent=39 // pred_check
        %p3360 = pneg %p146
      $region42: #{double_conv.4} parent=39 // pred_check_branch
        %3362 = sbr.rel (%p3360) target = $region44
      $region43: #{double_conv.4} parent=39 // pred_region
        _
      $region44: #{double_conv.4} parent=39 // pred_fallthru
        _
      // Predicated region
      $region45: #{double_conv.4} parent=39 // pred_check
        %p3363 = pneg %p172
      $region46: #{double_conv.4} parent=39 // pred_check_branch
        %3365 = sbr.rel (%p3363) target = $region48
      $region47: #{double_conv.4} parent=39 // pred_region
        _
      $region48: #{double_conv.4} parent=39 // pred_fallthru
        _
    $region40: #{double_conv.4} parent=5 // pred_fallthru
      _
    %p3366 = scmp.le.s32.totalorder 2, %s13
    // Predicated region
    $region49: #{double_conv.4} parent=5 // pred_check
      %p3367 = pneg %p3366
    $region50: #{double_conv.4} parent=5 // pred_check_branch
      %3369 = sbr.rel (%p3367) target = $region52
    $region51: #{double_conv.4} parent=5 // pred_region
      %s3370 = ssub.s32 %s13, 2
      // Predicated region
      $region53: #{double_conv.4} parent=51 // pred_check
        %p3371 = pneg %p152
      $region54: #{double_conv.4} parent=51 // pred_check_branch
        %3373 = sbr.rel (%p3371) target = $region56
      $region55: #{double_conv.4} parent=51 // pred_region
        %p3374 = scmp.lt.s32.totalorder %s19, 1
        %s3375 = scalar_select %p3374, %s19, 1
        %s3376 = smul.addr %s3375, 32
        %s3377 = smul.addr %s3376, 8
        %s3378 = scalar_lea.vmem %s5, %s3377
      $region56: #{double_conv.4} parent=51 // pred_fallthru
        _
      // Predicated region
      $region57: #{double_conv.4} parent=51 // pred_check
        %p3379 = pneg %p178
      $region58: #{double_conv.4} parent=51 // pred_check_branch
        %3381 = sbr.rel (%p3379) target = $region60
      $region59: #{double_conv.4} parent=51 // pred_region
        %p3382 = scmp.lt.s32.totalorder %s19, 1
        %s3383 = scalar_select %p3382, %s19, 1
        %s3384 = smul.addr %s3383, 2
        %s3385 = scalar_lea.vmem %s6, %s3384
      $region60: #{double_conv.4} parent=51 // pred_fallthru
        _
    $region52: #{double_conv.4} parent=5 // pred_fallthru
      _
  $region6: #{double_conv.4} parent=0 // loop_footer
    %s17 = sadd.s32 1, %s13
  $region7: #{double_conv.4} parent=0 // loop_footer_branch
    %12 = sbr.rel target = $region3
  $region8: #{double_conv.4} parent=0 // loop_exit
    _

</llo_original>
